<compile_context>
chip_gen: v7x
topology: tpu7x:2x2x1
jax: 0.10.0
libtpu: 0.0.40
codegen_flags: <defaults>
</compile_context>

<pallas_src>
import jax
import jax.numpy as jnp
from jax.experimental import pallas as pl
from jax.experimental.pallas import tpu as pltpu


def _loss_kernel(flag1_ref, flag2_ref, sym_ref,       # SMEM (B_pad,) scalars
                 p1t_ref, p2t_ref, tnt_ref, tt_ref,   # VMEM point tiles
                 loss1_ref, loss2_ref,                # VMEM (Bt, 8, 128) outputs
                 acc_ref):                            # SMEM (4,) scratch scalars
    bt = p1t_ref.shape[0]
    n = p1t_ref.shape[2]
    inv_n = jnp.float32(1.0 / n)
    base = pl.program_id(0) * bt

    for i in range(bt):  # static unroll over the per-step batch tile
        f1 = flag1_ref[base + i]
        f2 = flag2_ref[base + i]
        sym = sym_ref[base + i]

        # Hoisted target-side work, reused by both preds of this element.
        t_t = tt_ref[i]      # (3, N) lane-dense target
        t_nt = tnt_ref[i]    # (N, 3) target, MXU lhs
        tn2_col = jnp.sum(t_nt * t_nt, axis=1, keepdims=True)    # (N, 1)

        def chamfer_mean(p_t):
            # ||p_i - t_j||^2 = ||t_j||^2 - 2 t_j.p_i + ||p_i||^2 ; cross term
            # on the MXU, ||p_i||^2 folded in after the min over target points.
            cross = jnp.dot(t_nt, p_t,
                            preferred_element_type=jnp.float32,
                            precision=jax.lax.Precision.HIGHEST)  # (Nt, Np)
            d2 = tn2_col - 2.0 * cross                            # (Nt, Np)
            m_row = jnp.min(d2, axis=0, keepdims=True)            # (1, Np)
            pn2_row = jnp.sum(p_t * p_t, axis=0, keepdims=True)   # (1, Np)
            cham = jnp.sqrt(jnp.maximum(m_row + pn2_row, 0.0))    # clamp: cancellation
            return jnp.sum(cham) * inv_n

        def l2_mean(p_t):
            dd = p_t - t_t                                         # (3, N)
            d = jnp.sqrt(jnp.sum(dd * dd, axis=0, keepdims=True))  # (1, N)
            return jnp.sum(d) * inv_n

        need1 = f1 != 0.0
        need2 = f2 != 0.0
        need_sym = sym != 0.0       # chamfer weight nonzero
        need_asym = sym != 1.0      # (1 - sym) weight nonzero

        acc_ref[0] = jnp.float32(0.0)
        acc_ref[1] = jnp.float32(0.0)
        acc_ref[2] = jnp.float32(0.0)
        acc_ref[3] = jnp.float32(0.0)

        @pl.when(need1 & need_sym)
        def _():
            acc_ref[0] = chamfer_mean(p1t_ref[i])

        @pl.when(need1 & need_asym)
        def _():
            acc_ref[1] = l2_mean(p1t_ref[i])

        @pl.when(need2 & need_sym)
        def _():
            acc_ref[2] = chamfer_mean(p2t_ref[i])

        @pl.when(need2 & need_asym)
        def _():
            acc_ref[3] = l2_mean(p2t_ref[i])

        loss1 = f1 * (sym * acc_ref[0] + (1.0 - sym) * acc_ref[1])
        loss2 = f2 * (sym * acc_ref[2] + (1.0 - sym) * acc_ref[3])
        loss1_ref[i] = jnp.zeros((8, 128), jnp.float32) + loss1
        loss2_ref[i] = jnp.zeros((8, 128), jnp.float32) + loss2


def _per_batch_losses(pred1, pred2, target, flag1, flag2, sym_flag):
    B, N, _ = pred1.shape

    # Lane-dense (B, 3, N) copies of the big point arrays (contiguous DMA rows,
    # no lane padding). Target is also kept in (B, N, 3) for the MXU lhs.
    p1_t = jnp.transpose(pred1, (0, 2, 1))
    p2_t = jnp.transpose(pred2, (0, 2, 1))
    tgt_t = jnp.transpose(target, (0, 2, 1))

    # Batch-tile a few elements per grid step to amortize per-step overhead,
    # while keeping >= 2 grid steps so v7x's two TensorCores both get work.
    if B >= 8:
        bt = 4
    else:
        bt = max(1, B // 2)
    g = -(-B // bt)
    b_pad = g * bt

    def pad_b(x):
        if b_pad == B:
            return x
        return jnp.pad(x, [(0, b_pad - B)] + [(0, 0)] * (x.ndim - 1))

    p1_t, p2_t, tgt, tgt_t = map(pad_b, (p1_t, p2_t, target, tgt_t))
    flag1_p, flag2_p, sym_p = map(pad_b, (flag1, flag2, sym_flag))

    smem = pl.BlockSpec(memory_space=pltpu.MemorySpace.SMEM)
    pts_t = pl.BlockSpec((bt, 3, N), lambda gi: (gi, 0, 0))
    pts_nt = pl.BlockSpec((bt, N, 3), lambda gi: (gi, 0, 0))
    outs = pl.BlockSpec((bt, 8, 128), lambda gi: (gi, 0, 0))

    loss1, loss2 = pl.pallas_call(
        _loss_kernel,
        out_shape=(jax.ShapeDtypeStruct((b_pad, 8, 128), jnp.float32),
                   jax.ShapeDtypeStruct((b_pad, 8, 128), jnp.float32)),
        grid=(g,),
        in_specs=[smem, smem, smem, pts_t, pts_t, pts_nt, pts_t],
        out_specs=(outs, outs),
        scratch_shapes=[pltpu.SMEM((4,), jnp.float32)],
        compiler_params=pltpu.CompilerParams(
            dimension_semantics=("parallel",)),
    )(flag1_p, flag2_p, sym_p, p1_t, p2_t, tgt, tgt_t)
    return loss1[:B, 0, 0], loss2[:B, 0, 0]


class Loss:
    """Mirror of the PyTorch Loss module (no parameters)."""

    def __init__(self, cfg=None):
        del cfg

    def forward(self, end_points):
        pred1 = end_points['pred_points1'].astype(jnp.float32)
        pred2 = end_points['pred_points2'].astype(jnp.float32)
        flag1 = end_points['flag1'].astype(jnp.float32)
        flag2 = end_points['flag2'].astype(jnp.float32)
        target = end_points['target_points'].astype(jnp.float32)
        sym_flag = end_points['sym_flag'].astype(jnp.float32)

        loss1, loss2_raw = _per_batch_losses(pred1, pred2, target,
                                             flag1, flag2, sym_flag)
        # Data-dependent `if torch.sum(flag2) > 0` -> lazily gated with where.
        loss2 = jnp.where(jnp.sum(flag2) > 0, loss2_raw,
                          jnp.zeros_like(loss2_raw))
        all_loss = loss1 + loss2
        return {'all_loss': all_loss.mean(),
                'stage1': loss1.mean(),
                'stage2': loss2.mean()}

    __call__ = forward


def _reference(end_points):
    """Pure-JAX reference matching the PyTorch semantics, for verification."""
    p1 = end_points['pred_points1']
    p2 = end_points['pred_points2']
    t = end_points['target_points']
    f1 = end_points['flag1']
    f2 = end_points['flag2']
    sym = end_points['sym_flag']

    def chamfer(p):
        d = jnp.linalg.norm(p[:, :, None, :] - t[:, None, :, :], axis=-1)
        return jnp.min(d, axis=2)

    def l2(p):
        return jnp.linalg.norm(p - t, axis=-1)

    sd1, ad1 = chamfer(p1).mean(1), l2(p1).mean(1)
    loss1 = f1 * (sym * sd1 + (1 - sym) * ad1)
    sd2, ad2 = chamfer(p2).mean(1), l2(p2).mean(1)
    loss2 = jnp.where(jnp.sum(f2) > 0,
                      f2 * (sym * sd2 + (1 - sym) * ad2),
                      jnp.zeros_like(loss1))
    all_loss = loss1 + loss2
    return {'all_loss': all_loss.mean(), 'stage1': loss1.mean(),
            'stage2': loss2.mean()}


if __name__ == "__main__":
    key = jax.random.PRNGKey(0)
    k1, k2, k3 = jax.random.split(key, 3)
    B, N = 5, 64   # B=5 exercises batch tiling (bt=2), multiple grid steps, padding
    end_points = {
        'pred_points1': jax.random.normal(k1, (B, N, 3), jnp.float32),
        'pred_points2': jax.random.normal(k2, (B, N, 3), jnp.float32),
        'target_points': jax.random.normal(k3, (B, N, 3), jnp.float32),
        'flag1': jnp.array([1.0, 1.0, 0.0, 1.0, 1.0], jnp.float32),
        'flag2': jnp.array([1.0, 0.0, 1.0, 1.0, 0.0], jnp.float32),
        'sym_flag': jnp.array([1.0, 0.0, 1.0, 0.0, 1.0], jnp.float32),
    }

    loss_mod = Loss(cfg=None)
    losses = loss_mod(end_points)
    losses = jax.block_until_ready(losses)

    ref = _reference(end_points)
    for k in ('all_loss', 'stage1', 'stage2'):
        assert jnp.allclose(losses[k], ref[k], rtol=1e-4, atol=1e-4), (
            k, losses[k], ref[k])

    print("KERNEL_OK")
</pallas_src>

<mosaic_0001>
module attributes {stable_mosaic.version = 11 : i64} {
  func.func @_loss_kernel(%arg0: i32, %arg1: memref<6xf32, #tpu.memory_space<smem>>, %arg2: memref<6xf32, #tpu.memory_space<smem>>, %arg3: memref<6xf32, #tpu.memory_space<smem>>, %arg4: memref<2x3x64xf32, #tpu.memory_space<vmem>>, %arg5: memref<2x3x64xf32, #tpu.memory_space<vmem>>, %arg6: memref<2x64x3xf32, #tpu.memory_space<vmem>>, %arg7: memref<2x3x64xf32, #tpu.memory_space<vmem>>, %arg8: memref<2x8x128xf32, #tpu.memory_space<vmem>>, %arg9: memref<2x8x128xf32, #tpu.memory_space<vmem>>, %arg10: memref<4xf32, #tpu.memory_space<smem>>) attributes {dimension_semantics = [#tpu.dimension_semantics<parallel>], iteration_bounds = array<i64: 3>, scalar_prefetch = 0 : i64, scratch_operands = 1 : i64, tpu.core_type = #tpu.core_type<tc>, window_params = [{transform_indices = @transform_0, window_bounds = array<i64: 6>}, {transform_indices = @transform_1, window_bounds = array<i64: 6>}, {transform_indices = @transform_2, window_bounds = array<i64: 6>}, {transform_indices = @transform_3, window_bounds = array<i64: 2, 3, 64>}, {transform_indices = @transform_4, window_bounds = array<i64: 2, 3, 64>}, {transform_indices = @transform_5, window_bounds = array<i64: 2, 64, 3>}, {transform_indices = @transform_6, window_bounds = array<i64: 2, 3, 64>}, {transform_indices = @transform_7, window_bounds = array<i64: 2, 8, 128>}, {transform_indices = @transform_8, window_bounds = array<i64: 2, 8, 128>}]} {
    %c2_i32 = arith.constant 2 : i32
    %0 = arith.muli %arg0, %c2_i32 : i32
    %c0_i32 = arith.constant 0 : i32
    %1 = arith.addi %0, %c0_i32 : i32
    %2 = arith.index_cast %1 : i32 to index
    %3 = memref.load %arg1[%2] : memref<6xf32, #tpu.memory_space<smem>>
    %c0_i32_0 = arith.constant 0 : i32
    %4 = arith.addi %0, %c0_i32_0 : i32
    %5 = arith.index_cast %4 : i32 to index
    %6 = memref.load %arg2[%5] : memref<6xf32, #tpu.memory_space<smem>>
    %c0_i32_1 = arith.constant 0 : i32
    %7 = arith.addi %0, %c0_i32_1 : i32
    %8 = arith.index_cast %7 : i32 to index
    %9 = memref.load %arg3[%8] : memref<6xf32, #tpu.memory_space<smem>>
    %c0 = arith.constant 0 : index
    %c0_2 = arith.constant 0 : index
    %c0_3 = arith.constant 0 : index
    %10 = vector.load %arg7[%c0, %c0_2, %c0_3] : memref<2x3x64xf32, #tpu.memory_space<vmem>>, vector<1x3x64xf32>
    %11 = vector.shape_cast %10 : vector<1x3x64xf32> to vector<3x64xf32>
    %c0_4 = arith.constant 0 : index
    %c0_5 = arith.constant 0 : index
    %c0_6 = arith.constant 0 : index
    %12 = vector.load %arg6[%c0_4, %c0_5, %c0_6] : memref<2x64x3xf32, #tpu.memory_space<vmem>>, vector<1x64x3xf32>
    %13 = vector.shape_cast %12 : vector<1x64x3xf32> to vector<64x3xf32>
    %14 = arith.mulf %13, %13 : vector<64x3xf32>
    %cst = arith.constant dense<0.000000e+00> : vector<64xf32>
    %15 = vector.multi_reduction <add>, %14, %cst [1] : vector<64x3xf32> to vector<64xf32>
    %16 = vector.shape_cast %15 : vector<64xf32> to vector<64x1xf32>
    %cst_7 = arith.constant 0.000000e+00 : f32
    %17 = arith.cmpf one, %3, %cst_7 : f32
    %cst_8 = arith.constant 0.000000e+00 : f32
    %18 = arith.cmpf one, %6, %cst_8 : f32
    %cst_9 = arith.constant 0.000000e+00 : f32
    %19 = arith.cmpf one, %9, %cst_9 : f32
    %cst_10 = arith.constant 1.000000e+00 : f32
    %20 = arith.cmpf one, %9, %cst_10 : f32
    %cst_11 = arith.constant 0.000000e+00 : f32
    %c0_12 = arith.constant 0 : index
    %21 = memref.load %arg10[%c0_12] : memref<4xf32, #tpu.memory_space<smem>>
    memref.store %cst_11, %arg10[%c0_12] : memref<4xf32, #tpu.memory_space<smem>>
    %cst_13 = arith.constant 0.000000e+00 : f32
    %c1 = arith.constant 1 : index
    %22 = memref.load %arg10[%c1] : memref<4xf32, #tpu.memory_space<smem>>
    memref.store %cst_13, %arg10[%c1] : memref<4xf32, #tpu.memory_space<smem>>
    %cst_14 = arith.constant 0.000000e+00 : f32
    %c2 = arith.constant 2 : index
    %23 = memref.load %arg10[%c2] : memref<4xf32, #tpu.memory_space<smem>>
    memref.store %cst_14, %arg10[%c2] : memref<4xf32, #tpu.memory_space<smem>>
    %cst_15 = arith.constant 0.000000e+00 : f32
    %c3 = arith.constant 3 : index
    %24 = memref.load %arg10[%c3] : memref<4xf32, #tpu.memory_space<smem>>
    memref.store %cst_15, %arg10[%c3] : memref<4xf32, #tpu.memory_space<smem>>
    %25 = arith.andi %17, %19 : i1
    %26 = arith.extui %25 : i1 to i32
    %cst_16 = arith.constant 1.562500e-02 : f32
    %c0_i32_17 = arith.constant 0 : i32
    %27 = arith.cmpi ne, %26, %c0_i32_17 : i32
    scf.if %27 {
      %c0_81 = arith.constant 0 : index
      %c0_82 = arith.constant 0 : index
      %c0_83 = arith.constant 0 : index
      %125 = vector.load %arg4[%c0_81, %c0_82, %c0_83] : memref<2x3x64xf32, #tpu.memory_space<vmem>>, vector<1x3x64xf32>
      %126 = vector.shape_cast %125 : vector<1x3x64xf32> to vector<3x64xf32>
      %cst_84 = arith.constant dense<0.000000e+00> : vector<64x64xf32>
      %127 = tpu.matmul %13, %126, %cst_84 {dimension_numbers = #tpu.dot_dimension_numbers<[1], [0], [0], [1], [0, 0, 1, 1], [], []>, precision = #tpu.contract_precision<fp32>} : vector<64x3xf32>, vector<3x64xf32>, vector<64x64xf32> -> vector<64x64xf32>
      %cst_85 = arith.constant 2.000000e+00 : f32
      %128 = vector.broadcast %cst_85 : f32 to vector<64x64xf32>
      %129 = arith.mulf %128, %127 : vector<64x64xf32>
      %130 = vector.broadcast %16 : vector<64x1xf32> to vector<64x64xf32>
      %131 = arith.subf %130, %129 : vector<64x64xf32>
      %cst_86 = arith.constant dense<0x7F800000> : vector<64xf32>
      %132 = vector.multi_reduction <minimumf>, %131, %cst_86 [0] : vector<64x64xf32> to vector<64xf32>
      %133 = vector.shape_cast %132 : vector<64xf32> to vector<1x64xf32>
      %134 = arith.mulf %126, %126 : vector<3x64xf32>
      %cst_87 = arith.constant dense<0.000000e+00> : vector<64xf32>
      %135 = vector.multi_reduction <add>, %134, %cst_87 [0] : vector<3x64xf32> to vector<64xf32>
      %136 = vector.shape_cast %135 : vector<64xf32> to vector<1x64xf32>
      %137 = arith.addf %133, %136 : vector<1x64xf32>
      %cst_88 = arith.constant 0.000000e+00 : f32
      %138 = vector.broadcast %cst_88 : f32 to vector<1x64xf32>
      %139 = arith.maximumf %137, %138 : vector<1x64xf32>
      %140 = math.sqrt %139 : vector<1x64xf32>
      %141 = vector.shape_cast %140 : vector<1x64xf32> to vector<1x1x64xf32>
      %cst_89 = arith.constant dense<0.000000e+00> : vector<1xf32>
      %142 = vector.multi_reduction <add>, %141, %cst_89 [1, 2] : vector<1x1x64xf32> to vector<1xf32>
      %143 = vector.shape_cast %142 : vector<1xf32> to vector<1x1x1xf32>
      %144 = vector.extract %143[0, 0, 0] : f32 from vector<1x1x1xf32>
      %145 = arith.mulf %144, %cst_16 : f32
      %c0_90 = arith.constant 0 : index
      %146 = memref.load %arg10[%c0_90] : memref<4xf32, #tpu.memory_space<smem>>
      memref.store %145, %arg10[%c0_90] : memref<4xf32, #tpu.memory_space<smem>>
    } else {
    }
    %28 = arith.andi %17, %20 : i1
    %29 = arith.extui %28 : i1 to i32
    %cst_18 = arith.constant 1.562500e-02 : f32
    %c0_i32_19 = arith.constant 0 : i32
    %30 = arith.cmpi ne, %29, %c0_i32_19 : i32
    scf.if %30 {
      %c0_81 = arith.constant 0 : index
      %c0_82 = arith.constant 0 : index
      %c0_83 = arith.constant 0 : index
      %125 = vector.load %arg4[%c0_81, %c0_82, %c0_83] : memref<2x3x64xf32, #tpu.memory_space<vmem>>, vector<1x3x64xf32>
      %126 = vector.shape_cast %125 : vector<1x3x64xf32> to vector<3x64xf32>
      %127 = arith.subf %126, %11 : vector<3x64xf32>
      %128 = arith.mulf %127, %127 : vector<3x64xf32>
      %cst_84 = arith.constant dense<0.000000e+00> : vector<64xf32>
      %129 = vector.multi_reduction <add>, %128, %cst_84 [0] : vector<3x64xf32> to vector<64xf32>
      %130 = vector.shape_cast %129 : vector<64xf32> to vector<1x64xf32>
      %131 = math.sqrt %130 : vector<1x64xf32>
      %132 = vector.shape_cast %131 : vector<1x64xf32> to vector<1x1x64xf32>
      %cst_85 = arith.constant dense<0.000000e+00> : vector<1xf32>
      %133 = vector.multi_reduction <add>, %132, %cst_85 [1, 2] : vector<1x1x64xf32> to vector<1xf32>
      %134 = vector.shape_cast %133 : vector<1xf32> to vector<1x1x1xf32>
      %135 = vector.extract %134[0, 0, 0] : f32 from vector<1x1x1xf32>
      %136 = arith.mulf %135, %cst_18 : f32
      %c1_86 = arith.constant 1 : index
      %137 = memref.load %arg10[%c1_86] : memref<4xf32, #tpu.memory_space<smem>>
      memref.store %136, %arg10[%c1_86] : memref<4xf32, #tpu.memory_space<smem>>
    } else {
    }
    %31 = arith.andi %18, %19 : i1
    %32 = arith.extui %31 : i1 to i32
    %cst_20 = arith.constant 1.562500e-02 : f32
    %c0_i32_21 = arith.constant 0 : i32
    %33 = arith.cmpi ne, %32, %c0_i32_21 : i32
    scf.if %33 {
      %c0_81 = arith.constant 0 : index
      %c0_82 = arith.constant 0 : index
      %c0_83 = arith.constant 0 : index
      %125 = vector.load %arg5[%c0_81, %c0_82, %c0_83] : memref<2x3x64xf32, #tpu.memory_space<vmem>>, vector<1x3x64xf32>
      %126 = vector.shape_cast %125 : vector<1x3x64xf32> to vector<3x64xf32>
      %cst_84 = arith.constant dense<0.000000e+00> : vector<64x64xf32>
      %127 = tpu.matmul %13, %126, %cst_84 {dimension_numbers = #tpu.dot_dimension_numbers<[1], [0], [0], [1], [0, 0, 1, 1], [], []>, precision = #tpu.contract_precision<fp32>} : vector<64x3xf32>, vector<3x64xf32>, vector<64x64xf32> -> vector<64x64xf32>
      %cst_85 = arith.constant 2.000000e+00 : f32
      %128 = vector.broadcast %cst_85 : f32 to vector<64x64xf32>
      %129 = arith.mulf %128, %127 : vector<64x64xf32>
      %130 = vector.broadcast %16 : vector<64x1xf32> to vector<64x64xf32>
      %131 = arith.subf %130, %129 : vector<64x64xf32>
      %cst_86 = arith.constant dense<0x7F800000> : vector<64xf32>
      %132 = vector.multi_reduction <minimumf>, %131, %cst_86 [0] : vector<64x64xf32> to vector<64xf32>
      %133 = vector.shape_cast %132 : vector<64xf32> to vector<1x64xf32>
      %134 = arith.mulf %126, %126 : vector<3x64xf32>
      %cst_87 = arith.constant dense<0.000000e+00> : vector<64xf32>
      %135 = vector.multi_reduction <add>, %134, %cst_87 [0] : vector<3x64xf32> to vector<64xf32>
      %136 = vector.shape_cast %135 : vector<64xf32> to vector<1x64xf32>
      %137 = arith.addf %133, %136 : vector<1x64xf32>
      %cst_88 = arith.constant 0.000000e+00 : f32
      %138 = vector.broadcast %cst_88 : f32 to vector<1x64xf32>
      %139 = arith.maximumf %137, %138 : vector<1x64xf32>
      %140 = math.sqrt %139 : vector<1x64xf32>
      %141 = vector.shape_cast %140 : vector<1x64xf32> to vector<1x1x64xf32>
      %cst_89 = arith.constant dense<0.000000e+00> : vector<1xf32>
      %142 = vector.multi_reduction <add>, %141, %cst_89 [1, 2] : vector<1x1x64xf32> to vector<1xf32>
      %143 = vector.shape_cast %142 : vector<1xf32> to vector<1x1x1xf32>
      %144 = vector.extract %143[0, 0, 0] : f32 from vector<1x1x1xf32>
      %145 = arith.mulf %144, %cst_20 : f32
      %c2_90 = arith.constant 2 : index
      %146 = memref.load %arg10[%c2_90] : memref<4xf32, #tpu.memory_space<smem>>
      memref.store %145, %arg10[%c2_90] : memref<4xf32, #tpu.memory_space<smem>>
    } else {
    }
    %34 = arith.andi %18, %20 : i1
    %35 = arith.extui %34 : i1 to i32
    %cst_22 = arith.constant 1.562500e-02 : f32
    %c0_i32_23 = arith.constant 0 : i32
    %36 = arith.cmpi ne, %35, %c0_i32_23 : i32
    scf.if %36 {
      %c0_81 = arith.constant 0 : index
      %c0_82 = arith.constant 0 : index
      %c0_83 = arith.constant 0 : index
      %125 = vector.load %arg5[%c0_81, %c0_82, %c0_83] : memref<2x3x64xf32, #tpu.memory_space<vmem>>, vector<1x3x64xf32>
      %126 = vector.shape_cast %125 : vector<1x3x64xf32> to vector<3x64xf32>
      %127 = arith.subf %126, %11 : vector<3x64xf32>
      %128 = arith.mulf %127, %127 : vector<3x64xf32>
      %cst_84 = arith.constant dense<0.000000e+00> : vector<64xf32>
      %129 = vector.multi_reduction <add>, %128, %cst_84 [0] : vector<3x64xf32> to vector<64xf32>
      %130 = vector.shape_cast %129 : vector<64xf32> to vector<1x64xf32>
      %131 = math.sqrt %130 : vector<1x64xf32>
      %132 = vector.shape_cast %131 : vector<1x64xf32> to vector<1x1x64xf32>
      %cst_85 = arith.constant dense<0.000000e+00> : vector<1xf32>
      %133 = vector.multi_reduction <add>, %132, %cst_85 [1, 2] : vector<1x1x64xf32> to vector<1xf32>
      %134 = vector.shape_cast %133 : vector<1xf32> to vector<1x1x1xf32>
      %135 = vector.extract %134[0, 0, 0] : f32 from vector<1x1x1xf32>
      %136 = arith.mulf %135, %cst_22 : f32
      %c3_86 = arith.constant 3 : index
      %137 = memref.load %arg10[%c3_86] : memref<4xf32, #tpu.memory_space<smem>>
      memref.store %136, %arg10[%c3_86] : memref<4xf32, #tpu.memory_space<smem>>
    } else {
    }
    %c0_24 = arith.constant 0 : index
    %37 = memref.load %arg10[%c0_24] : memref<4xf32, #tpu.memory_space<smem>>
    %38 = arith.mulf %9, %37 : f32
    %cst_25 = arith.constant 1.000000e+00 : f32
    %39 = arith.subf %cst_25, %9 : f32
    %c1_26 = arith.constant 1 : index
    %40 = memref.load %arg10[%c1_26] : memref<4xf32, #tpu.memory_space<smem>>
    %41 = arith.mulf %39, %40 : f32
    %42 = arith.addf %38, %41 : f32
    %43 = arith.mulf %3, %42 : f32
    %c2_27 = arith.constant 2 : index
    %44 = memref.load %arg10[%c2_27] : memref<4xf32, #tpu.memory_space<smem>>
    %45 = arith.mulf %9, %44 : f32
    %cst_28 = arith.constant 1.000000e+00 : f32
    %46 = arith.subf %cst_28, %9 : f32
    %c3_29 = arith.constant 3 : index
    %47 = memref.load %arg10[%c3_29] : memref<4xf32, #tpu.memory_space<smem>>
    %48 = arith.mulf %46, %47 : f32
    %49 = arith.addf %45, %48 : f32
    %50 = arith.mulf %6, %49 : f32
    %cst_30 = arith.constant 0.000000e+00 : f32
    %51 = vector.broadcast %cst_30 : f32 to vector<8x128xf32>
    %52 = vector.broadcast %43 : f32 to vector<8x128xf32>
    %53 = arith.addf %51, %52 : vector<8x128xf32>
    %c0_31 = arith.constant 0 : index
    %c0_32 = arith.constant 0 : index
    %c0_33 = arith.constant 0 : index
    %54 = vector.load %arg8[%c0_31, %c0_32, %c0_33] : memref<2x8x128xf32, #tpu.memory_space<vmem>>, vector<1x8x128xf32>
    %55 = vector.shape_cast %54 : vector<1x8x128xf32> to vector<8x128xf32>
    %56 = vector.shape_cast %53 : vector<8x128xf32> to vector<1x8x128xf32>
    tpu.vector_store %arg8[%c0_31, %c0_32, %c0_33], %56 {strides = array<i32>} : memref<2x8x128xf32, #tpu.memory_space<vmem>>, vector<1x8x128xf32>,
    %cst_34 = arith.constant 0.000000e+00 : f32
    %57 = vector.broadcast %cst_34 : f32 to vector<8x128xf32>
    %58 = vector.broadcast %50 : f32 to vector<8x128xf32>
    %59 = arith.addf %57, %58 : vector<8x128xf32>
    %c0_35 = arith.constant 0 : index
    %c0_36 = arith.constant 0 : index
    %c0_37 = arith.constant 0 : index
    %60 = vector.load %arg9[%c0_35, %c0_36, %c0_37] : memref<2x8x128xf32, #tpu.memory_space<vmem>>, vector<1x8x128xf32>
    %61 = vector.shape_cast %60 : vector<1x8x128xf32> to vector<8x128xf32>
    %62 = vector.shape_cast %59 : vector<8x128xf32> to vector<1x8x128xf32>
    tpu.vector_store %arg9[%c0_35, %c0_36, %c0_37], %62 {strides = array<i32>} : memref<2x8x128xf32, #tpu.memory_space<vmem>>, vector<1x8x128xf32>,
    %c1_i32 = arith.constant 1 : i32
    %63 = arith.addi %0, %c1_i32 : i32
    %64 = arith.index_cast %63 : i32 to index
    %65 = memref.load %arg1[%64] : memref<6xf32, #tpu.memory_space<smem>>
    %c1_i32_38 = arith.constant 1 : i32
    %66 = arith.addi %0, %c1_i32_38 : i32
    %67 = arith.index_cast %66 : i32 to index
    %68 = memref.load %arg2[%67] : memref<6xf32, #tpu.memory_space<smem>>
    %c1_i32_39 = arith.constant 1 : i32
    %69 = arith.addi %0, %c1_i32_39 : i32
    %70 = arith.index_cast %69 : i32 to index
    %71 = memref.load %arg3[%70] : memref<6xf32, #tpu.memory_space<smem>>
    %c1_40 = arith.constant 1 : index
    %c0_41 = arith.constant 0 : index
    %c0_42 = arith.constant 0 : index
    %72 = vector.load %arg7[%c1_40, %c0_41, %c0_42] : memref<2x3x64xf32, #tpu.memory_space<vmem>>, vector<1x3x64xf32>
    %73 = vector.shape_cast %72 : vector<1x3x64xf32> to vector<3x64xf32>
    %c1_43 = arith.constant 1 : index
    %c0_44 = arith.constant 0 : index
    %c0_45 = arith.constant 0 : index
    %74 = vector.load %arg6[%c1_43, %c0_44, %c0_45] : memref<2x64x3xf32, #tpu.memory_space<vmem>>, vector<1x64x3xf32>
    %75 = vector.shape_cast %74 : vector<1x64x3xf32> to vector<64x3xf32>
    %76 = arith.mulf %75, %75 : vector<64x3xf32>
    %cst_46 = arith.constant dense<0.000000e+00> : vector<64xf32>
    %77 = vector.multi_reduction <add>, %76, %cst_46 [1] : vector<64x3xf32> to vector<64xf32>
    %78 = vector.shape_cast %77 : vector<64xf32> to vector<64x1xf32>
    %cst_47 = arith.constant 0.000000e+00 : f32
    %79 = arith.cmpf one, %65, %cst_47 : f32
    %cst_48 = arith.constant 0.000000e+00 : f32
    %80 = arith.cmpf one, %68, %cst_48 : f32
    %cst_49 = arith.constant 0.000000e+00 : f32
    %81 = arith.cmpf one, %71, %cst_49 : f32
    %cst_50 = arith.constant 1.000000e+00 : f32
    %82 = arith.cmpf one, %71, %cst_50 : f32
    %cst_51 = arith.constant 0.000000e+00 : f32
    %c0_52 = arith.constant 0 : index
    %83 = memref.load %arg10[%c0_52] : memref<4xf32, #tpu.memory_space<smem>>
    memref.store %cst_51, %arg10[%c0_52] : memref<4xf32, #tpu.memory_space<smem>>
    %cst_53 = arith.constant 0.000000e+00 : f32
    %c1_54 = arith.constant 1 : index
    %84 = memref.load %arg10[%c1_54] : memref<4xf32, #tpu.memory_space<smem>>
    memref.store %cst_53, %arg10[%c1_54] : memref<4xf32, #tpu.memory_space<smem>>
    %cst_55 = arith.constant 0.000000e+00 : f32
    %c2_56 = arith.constant 2 : index
    %85 = memref.load %arg10[%c2_56] : memref<4xf32, #tpu.memory_space<smem>>
    memref.store %cst_55, %arg10[%c2_56] : memref<4xf32, #tpu.memory_space<smem>>
    %cst_57 = arith.constant 0.000000e+00 : f32
    %c3_58 = arith.constant 3 : index
    %86 = memref.load %arg10[%c3_58] : memref<4xf32, #tpu.memory_space<smem>>
    memref.store %cst_57, %arg10[%c3_58] : memref<4xf32, #tpu.memory_space<smem>>
    %87 = arith.andi %79, %81 : i1
    %88 = arith.extui %87 : i1 to i32
    %cst_59 = arith.constant 1.562500e-02 : f32
    %c0_i32_60 = arith.constant 0 : i32
    %89 = arith.cmpi ne, %88, %c0_i32_60 : i32
    scf.if %89 {
      %c1_81 = arith.constant 1 : index
      %c0_82 = arith.constant 0 : index
      %c0_83 = arith.constant 0 : index
      %125 = vector.load %arg4[%c1_81, %c0_82, %c0_83] : memref<2x3x64xf32, #tpu.memory_space<vmem>>, vector<1x3x64xf32>
      %126 = vector.shape_cast %125 : vector<1x3x64xf32> to vector<3x64xf32>
      %cst_84 = arith.constant dense<0.000000e+00> : vector<64x64xf32>
      %127 = tpu.matmul %75, %126, %cst_84 {dimension_numbers = #tpu.dot_dimension_numbers<[1], [0], [0], [1], [0, 0, 1, 1], [], []>, precision = #tpu.contract_precision<fp32>} : vector<64x3xf32>, vector<3x64xf32>, vector<64x64xf32> -> vector<64x64xf32>
      %cst_85 = arith.constant 2.000000e+00 : f32
      %128 = vector.broadcast %cst_85 : f32 to vector<64x64xf32>
      %129 = arith.mulf %128, %127 : vector<64x64xf32>
      %130 = vector.broadcast %78 : vector<64x1xf32> to vector<64x64xf32>
      %131 = arith.subf %130, %129 : vector<64x64xf32>
      %cst_86 = arith.constant dense<0x7F800000> : vector<64xf32>
      %132 = vector.multi_reduction <minimumf>, %131, %cst_86 [0] : vector<64x64xf32> to vector<64xf32>
      %133 = vector.shape_cast %132 : vector<64xf32> to vector<1x64xf32>
      %134 = arith.mulf %126, %126 : vector<3x64xf32>
      %cst_87 = arith.constant dense<0.000000e+00> : vector<64xf32>
      %135 = vector.multi_reduction <add>, %134, %cst_87 [0] : vector<3x64xf32> to vector<64xf32>
      %136 = vector.shape_cast %135 : vector<64xf32> to vector<1x64xf32>
      %137 = arith.addf %133, %136 : vector<1x64xf32>
      %cst_88 = arith.constant 0.000000e+00 : f32
      %138 = vector.broadcast %cst_88 : f32 to vector<1x64xf32>
      %139 = arith.maximumf %137, %138 : vector<1x64xf32>
      %140 = math.sqrt %139 : vector<1x64xf32>
      %141 = vector.shape_cast %140 : vector<1x64xf32> to vector<1x1x64xf32>
      %cst_89 = arith.constant dense<0.000000e+00> : vector<1xf32>
      %142 = vector.multi_reduction <add>, %141, %cst_89 [1, 2] : vector<1x1x64xf32> to vector<1xf32>
      %143 = vector.shape_cast %142 : vector<1xf32> to vector<1x1x1xf32>
      %144 = vector.extract %143[0, 0, 0] : f32 from vector<1x1x1xf32>
      %145 = arith.mulf %144, %cst_59 : f32
      %c0_90 = arith.constant 0 : index
      %146 = memref.load %arg10[%c0_90] : memref<4xf32, #tpu.memory_space<smem>>
      memref.store %145, %arg10[%c0_90] : memref<4xf32, #tpu.memory_space<smem>>
    } else {
    }
    %90 = arith.andi %79, %82 : i1
    %91 = arith.extui %90 : i1 to i32
    %cst_61 = arith.constant 1.562500e-02 : f32
    %c0_i32_62 = arith.constant 0 : i32
    %92 = arith.cmpi ne, %91, %c0_i32_62 : i32
    scf.if %92 {
      %c1_81 = arith.constant 1 : index
      %c0_82 = arith.constant 0 : index
      %c0_83 = arith.constant 0 : index
      %125 = vector.load %arg4[%c1_81, %c0_82, %c0_83] : memref<2x3x64xf32, #tpu.memory_space<vmem>>, vector<1x3x64xf32>
      %126 = vector.shape_cast %125 : vector<1x3x64xf32> to vector<3x64xf32>
      %127 = arith.subf %126, %73 : vector<3x64xf32>
      %128 = arith.mulf %127, %127 : vector<3x64xf32>
      %cst_84 = arith.constant dense<0.000000e+00> : vector<64xf32>
      %129 = vector.multi_reduction <add>, %128, %cst_84 [0] : vector<3x64xf32> to vector<64xf32>
      %130 = vector.shape_cast %129 : vector<64xf32> to vector<1x64xf32>
      %131 = math.sqrt %130 : vector<1x64xf32>
      %132 = vector.shape_cast %131 : vector<1x64xf32> to vector<1x1x64xf32>
      %cst_85 = arith.constant dense<0.000000e+00> : vector<1xf32>
      %133 = vector.multi_reduction <add>, %132, %cst_85 [1, 2] : vector<1x1x64xf32> to vector<1xf32>
      %134 = vector.shape_cast %133 : vector<1xf32> to vector<1x1x1xf32>
      %135 = vector.extract %134[0, 0, 0] : f32 from vector<1x1x1xf32>
      %136 = arith.mulf %135, %cst_61 : f32
      %c1_86 = arith.constant 1 : index
      %137 = memref.load %arg10[%c1_86] : memref<4xf32, #tpu.memory_space<smem>>
      memref.store %136, %arg10[%c1_86] : memref<4xf32, #tpu.memory_space<smem>>
    } else {
    }
    %93 = arith.andi %80, %81 : i1
    %94 = arith.extui %93 : i1 to i32
    %cst_63 = arith.constant 1.562500e-02 : f32
    %c0_i32_64 = arith.constant 0 : i32
    %95 = arith.cmpi ne, %94, %c0_i32_64 : i32
    scf.if %95 {
      %c1_81 = arith.constant 1 : index
      %c0_82 = arith.constant 0 : index
      %c0_83 = arith.constant 0 : index
      %125 = vector.load %arg5[%c1_81, %c0_82, %c0_83] : memref<2x3x64xf32, #tpu.memory_space<vmem>>, vector<1x3x64xf32>
      %126 = vector.shape_cast %125 : vector<1x3x64xf32> to vector<3x64xf32>
      %cst_84 = arith.constant dense<0.000000e+00> : vector<64x64xf32>
      %127 = tpu.matmul %75, %126, %cst_84 {dimension_numbers = #tpu.dot_dimension_numbers<[1], [0], [0], [1], [0, 0, 1, 1], [], []>, precision = #tpu.contract_precision<fp32>} : vector<64x3xf32>, vector<3x64xf32>, vector<64x64xf32> -> vector<64x64xf32>
      %cst_85 = arith.constant 2.000000e+00 : f32
      %128 = vector.broadcast %cst_85 : f32 to vector<64x64xf32>
      %129 = arith.mulf %128, %127 : vector<64x64xf32>
      %130 = vector.broadcast %78 : vector<64x1xf32> to vector<64x64xf32>
      %131 = arith.subf %130, %129 : vector<64x64xf32>
      %cst_86 = arith.constant dense<0x7F800000> : vector<64xf32>
      %132 = vector.multi_reduction <minimumf>, %131, %cst_86 [0] : vector<64x64xf32> to vector<64xf32>
      %133 = vector.shape_cast %132 : vector<64xf32> to vector<1x64xf32>
      %134 = arith.mulf %126, %126 : vector<3x64xf32>
      %cst_87 = arith.constant dense<0.000000e+00> : vector<64xf32>
      %135 = vector.multi_reduction <add>, %134, %cst_87 [0] : vector<3x64xf32> to vector<64xf32>
      %136 = vector.shape_cast %135 : vector<64xf32> to vector<1x64xf32>
      %137 = arith.addf %133, %136 : vector<1x64xf32>
      %cst_88 = arith.constant 0.000000e+00 : f32
      %138 = vector.broadcast %cst_88 : f32 to vector<1x64xf32>
      %139 = arith.maximumf %137, %138 : vector<1x64xf32>
      %140 = math.sqrt %139 : vector<1x64xf32>
      %141 = vector.shape_cast %140 : vector<1x64xf32> to vector<1x1x64xf32>
      %cst_89 = arith.constant dense<0.000000e+00> : vector<1xf32>
      %142 = vector.multi_reduction <add>, %141, %cst_89 [1, 2] : vector<1x1x64xf32> to vector<1xf32>
      %143 = vector.shape_cast %142 : vector<1xf32> to vector<1x1x1xf32>
      %144 = vector.extract %143[0, 0, 0] : f32 from vector<1x1x1xf32>
      %145 = arith.mulf %144, %cst_63 : f32
      %c2_90 = arith.constant 2 : index
      %146 = memref.load %arg10[%c2_90] : memref<4xf32, #tpu.memory_space<smem>>
      memref.store %145, %arg10[%c2_90] : memref<4xf32, #tpu.memory_space<smem>>
    } else {
    }
    %96 = arith.andi %80, %82 : i1
    %97 = arith.extui %96 : i1 to i32
    %cst_65 = arith.constant 1.562500e-02 : f32
    %c0_i32_66 = arith.constant 0 : i32
    %98 = arith.cmpi ne, %97, %c0_i32_66 : i32
    scf.if %98 {
      %c1_81 = arith.constant 1 : index
      %c0_82 = arith.constant 0 : index
      %c0_83 = arith.constant 0 : index
      %125 = vector.load %arg5[%c1_81, %c0_82, %c0_83] : memref<2x3x64xf32, #tpu.memory_space<vmem>>, vector<1x3x64xf32>
      %126 = vector.shape_cast %125 : vector<1x3x64xf32> to vector<3x64xf32>
      %127 = arith.subf %126, %73 : vector<3x64xf32>
      %128 = arith.mulf %127, %127 : vector<3x64xf32>
      %cst_84 = arith.constant dense<0.000000e+00> : vector<64xf32>
      %129 = vector.multi_reduction <add>, %128, %cst_84 [0] : vector<3x64xf32> to vector<64xf32>
      %130 = vector.shape_cast %129 : vector<64xf32> to vector<1x64xf32>
      %131 = math.sqrt %130 : vector<1x64xf32>
      %132 = vector.shape_cast %131 : vector<1x64xf32> to vector<1x1x64xf32>
      %cst_85 = arith.constant dense<0.000000e+00> : vector<1xf32>
      %133 = vector.multi_reduction <add>, %132, %cst_85 [1, 2] : vector<1x1x64xf32> to vector<1xf32>
      %134 = vector.shape_cast %133 : vector<1xf32> to vector<1x1x1xf32>
      %135 = vector.extract %134[0, 0, 0] : f32 from vector<1x1x1xf32>
      %136 = arith.mulf %135, %cst_65 : f32
      %c3_86 = arith.constant 3 : index
      %137 = memref.load %arg10[%c3_86] : memref<4xf32, #tpu.memory_space<smem>>
      memref.store %136, %arg10[%c3_86] : memref<4xf32, #tpu.memory_space<smem>>
    } else {
    }
    %c0_67 = arith.constant 0 : index
    %99 = memref.load %arg10[%c0_67] : memref<4xf32, #tpu.memory_space<smem>>
    %100 = arith.mulf %71, %99 : f32
    %cst_68 = arith.constant 1.000000e+00 : f32
    %101 = arith.subf %cst_68, %71 : f32
    %c1_69 = arith.constant 1 : index
    %102 = memref.load %arg10[%c1_69] : memref<4xf32, #tpu.memory_space<smem>>
    %103 = arith.mulf %101, %102 : f32
    %104 = arith.addf %100, %103 : f32
    %105 = arith.mulf %65, %104 : f32
    %c2_70 = arith.constant 2 : index
    %106 = memref.load %arg10[%c2_70] : memref<4xf32, #tpu.memory_space<smem>>
    %107 = arith.mulf %71, %106 : f32
    %cst_71 = arith.constant 1.000000e+00 : f32
    %108 = arith.subf %cst_71, %71 : f32
    %c3_72 = arith.constant 3 : index
    %109 = memref.load %arg10[%c3_72] : memref<4xf32, #tpu.memory_space<smem>>
    %110 = arith.mulf %108, %109 : f32
    %111 = arith.addf %107, %110 : f32
    %112 = arith.mulf %68, %111 : f32
    %cst_73 = arith.constant 0.000000e+00 : f32
    %113 = vector.broadcast %cst_73 : f32 to vector<8x128xf32>
    %114 = vector.broadcast %105 : f32 to vector<8x128xf32>
    %115 = arith.addf %113, %114 : vector<8x128xf32>
    %c1_74 = arith.constant 1 : index
    %c0_75 = arith.constant 0 : index
    %c0_76 = arith.constant 0 : index
    %116 = vector.load %arg8[%c1_74, %c0_75, %c0_76] : memref<2x8x128xf32, #tpu.memory_space<vmem>>, vector<1x8x128xf32>
    %117 = vector.shape_cast %116 : vector<1x8x128xf32> to vector<8x128xf32>
    %118 = vector.shape_cast %115 : vector<8x128xf32> to vector<1x8x128xf32>
    tpu.vector_store %arg8[%c1_74, %c0_75, %c0_76], %118 {strides = array<i32>} : memref<2x8x128xf32, #tpu.memory_space<vmem>>, vector<1x8x128xf32>,
    %cst_77 = arith.constant 0.000000e+00 : f32
    %119 = vector.broadcast %cst_77 : f32 to vector<8x128xf32>
    %120 = vector.broadcast %112 : f32 to vector<8x128xf32>
    %121 = arith.addf %119, %120 : vector<8x128xf32>
    %c1_78 = arith.constant 1 : index
    %c0_79 = arith.constant 0 : index
    %c0_80 = arith.constant 0 : index
    %122 = vector.load %arg9[%c1_78, %c0_79, %c0_80] : memref<2x8x128xf32, #tpu.memory_space<vmem>>, vector<1x8x128xf32>
    %123 = vector.shape_cast %122 : vector<1x8x128xf32> to vector<8x128xf32>
    %124 = vector.shape_cast %121 : vector<8x128xf32> to vector<1x8x128xf32>
    tpu.vector_store %arg9[%c1_78, %c0_79, %c0_80], %124 {strides = array<i32>} : memref<2x8x128xf32, #tpu.memory_space<vmem>>, vector<1x8x128xf32>,
    return
  }
  func.func @transform_0(%arg0: i32) -> i32 {
    %c0_i32 = arith.constant 0 : i32
    %c0_i32_0 = arith.constant 0 : i32
    return %c0_i32 : i32
  }
  func.func @transform_1(%arg0: i32) -> i32 {
    %c0_i32 = arith.constant 0 : i32
    %c0_i32_0 = arith.constant 0 : i32
    return %c0_i32 : i32
  }
  func.func @transform_2(%arg0: i32) -> i32 {
    %c0_i32 = arith.constant 0 : i32
    %c0_i32_0 = arith.constant 0 : i32
    return %c0_i32 : i32
  }
  func.func @transform_3(%arg0: i32) -> (i32, i32, i32) {
    %c0_i32 = arith.constant 0 : i32
    %c0_i32_0 = arith.constant 0 : i32
    %c0_i32_1 = arith.constant 0 : i32
    return %arg0, %c0_i32, %c0_i32_0 : i32, i32, i32
  }
  func.func @transform_4(%arg0: i32) -> (i32, i32, i32) {
    %c0_i32 = arith.constant 0 : i32
    %c0_i32_0 = arith.constant 0 : i32
    %c0_i32_1 = arith.constant 0 : i32
    return %arg0, %c0_i32, %c0_i32_0 : i32, i32, i32
  }
  func.func @transform_5(%arg0: i32) -> (i32, i32, i32) {
    %c0_i32 = arith.constant 0 : i32
    %c0_i32_0 = arith.constant 0 : i32
    %c0_i32_1 = arith.constant 0 : i32
    return %arg0, %c0_i32, %c0_i32_0 : i32, i32, i32
  }
  func.func @transform_6(%arg0: i32) -> (i32, i32, i32) {
    %c0_i32 = arith.constant 0 : i32
    %c0_i32_0 = arith.constant 0 : i32
    %c0_i32_1 = arith.constant 0 : i32
    return %arg0, %c0_i32, %c0_i32_0 : i32, i32, i32
  }
  func.func @transform_7(%arg0: i32) -> (i32, i32, i32) {
    %c0_i32 = arith.constant 0 : i32
    %c0_i32_0 = arith.constant 0 : i32
    %c0_i32_1 = arith.constant 0 : i32
    return %arg0, %c0_i32, %c0_i32_0 : i32, i32, i32
  }
  func.func @transform_8(%arg0: i32) -> (i32, i32, i32) {
    %c0_i32 = arith.constant 0 : i32
    %c0_i32_0 = arith.constant 0 : i32
    %c0_i32_1 = arith.constant 0 : i32
    return %arg0, %c0_i32, %c0_i32_0 : i32, i32, i32
  }
}

</mosaic_0001>

<llo_original>
// kernel: tpu_custom_call.1
$region0: #{tpu_custom_call.1}
  #allocation0 [shape = 'u32[]', space=smem, size = 0x4, offset = 0x4, fixed_abs, tag = 'smem constant byte address 0x4 - core index']
  #allocation1 [shape = 'u32[144,128]{1,0:T(1,128)}', space=vmem, size = 0x12000, scoped, tag = 'internal scratch']
  #allocation2 [shape = 'f32[4]{0:T(128)}', space=smem, size = 0x200, scoped, tag = 'scratch operand']
  %s0 = inlined_call_operand.vmem [shape: f32[6], index: 0, kind: input, shape index: {}]
  %s1 = inlined_call_operand.vmem [shape: f32[6], index: 1, kind: input, shape index: {}]
  %s2 = inlined_call_operand.vmem [shape: f32[6], index: 2, kind: input, shape index: {}]
  %s3 = inlined_call_operand.vmem [shape: f32[6,3,64], index: 3, kind: input, shape index: {}]
  %s4 = inlined_call_operand.vmem [shape: f32[6,3,64], index: 4, kind: input, shape index: {}]
  %s5 = inlined_call_operand.vmem [shape: f32[6,64,3], index: 5, kind: input, shape index: {}]
  %s6 = inlined_call_operand.vmem [shape: f32[6,3,64], index: 6, kind: input, shape index: {}]
  %s7 = inlined_call_operand.hbm [shape: f32[6,8,128], index: 7, kind: output, shape index: {0}]
  %s8 = inlined_call_operand.hbm [shape: f32[6,8,128], index: 8, kind: output, shape index: {1}]
  %9 = xla_tuple %s7, %s8
  %s10 = sld [smem:[#allocation0]]
  $region113: #{tpu_custom_call.1} parent=0
    _
  %s12 = ssub.s32 1, %s10
  %s13 = scalar_select 0, %s12, %s10
  $region1: #{tpu_custom_call.1} parent=0
    #allocation3 [shape = 'u8[512]{0}', space=smem, size = 0x200, scoped, tag = 'input window, operand 0, single buffered']
    #allocation4 [shape = 's32[2]{0}', space=sflag, size = 0x8, scoped, tag = 'scoped memory for tpu_custom_call.1']
    #allocation5 [shape = 's32[2]{0}', space=sflag, size = 0x8, scoped, tag = 'scoped memory for tpu_custom_call.1']
    #allocation6 [shape = 'u8[512]{0}', space=smem, size = 0x200, scoped, tag = 'input window, operand 1, single buffered']
    #allocation7 [shape = 's32[1]{0}', space=sflag, size = 0x4, scoped, tag = 'scoped memory for tpu_custom_call.1']
    #allocation8 [shape = 'u8[512]{0}', space=smem, size = 0x200, scoped, tag = 'input window, operand 2, single buffered']
    #allocation9 [shape = 'u8[16384]{0}', space=vmem, size = 0x4000, scoped, tag = 'output window, operand 0']
    #allocation10 [shape = 'u8[16384]{0}', space=vmem, size = 0x4000, scoped, tag = 'output window, operand 1']
    #allocation11 [shape = 's32[2]{0}', space=sflag, size = 0x8, scoped, tag = 'scoped memory for tpu_custom_call.1']
    %14 = vsyncpa [#allocation5], 0
    %15 = vsyncpa [#allocation7], 0
    %16 = vsyncpa [#allocation4], 0
    %s17 = scalar_lea.sflag [#allocation4], 1
    %18 = vsyncpa %s17, 0
    %19 = vsyncpa [#allocation11], 0
    %s20 = scalar_lea.sflag [#allocation11], 1
    %21 = vsyncpa %s20, 0
    loop: start=0, step=1, limit=5
    $region2: #{tpu_custom_call.1} parent=1 // loop_pre_header
      _
    $region3: #{tpu_custom_call.1} parent=1 // loop_header
      %s23 = sphi 0, %s27
      %p24 = scmp.ge.s32.totalorder %s23, 5
      %s31 = sphi 0, %s31
      %s33 = sphi 0, %s31
      %s34 = sphi 0, %s33
      %s48 = sphi 0, %s34
      %s52 = sphi 0, %s52
      %s54 = sphi 0, %s52
      %s55 = sphi 0, %s54
      %s69 = sphi 0, %s55
      %s73 = sphi 0, %s73
      %s75 = sphi 0, %s73
      %s76 = sphi 0, %s75
      %s90 = sphi 0, %s76
      %s96 = sphi 0, %s98
      %s99 = sphi 0, %s96
      %s100 = sphi 0, %s99
      %s116 = sphi 0, %s100
      %s122 = sphi 0, %s124
      %s125 = sphi 0, %s122
      %s126 = sphi 0, %s125
      %s142 = sphi 0, %s126
      %s148 = sphi 0, %s150
      %s151 = sphi 0, %s148
      %s152 = sphi 0, %s151
      %s168 = sphi 0, %s152
      %s174 = sphi 0, %s176
      %s177 = sphi 0, %s174
      %s178 = sphi 0, %s177
      %s194 = sphi 0, %s178
      %s200 = sphi 0, %s202
      %s203 = sphi 0, %s200
      %s204 = sphi 0, %s203
      %s220 = sphi 0, %s204
      %s226 = sphi 0, %s228
      %s229 = sphi 0, %s226
      %s230 = sphi 0, %s229
      %s246 = sphi 0, %s230
    $region4: #{tpu_custom_call.1} parent=1 // loop_header_branch
      %26 = sbr.rel (%p24) target = $region8
    $region5: #{tpu_custom_call.1} parent=1 // loop_body
      %s28 = ssub.s32 %s23, 1
      %s29 = ssub.s32 %s23, 2
      %s30 = sadd.s32 %s23, 1
      %s32 = sadd.s32 %s31, 1
      %p35 = scmp.eq.s32.totalorder %s23, 2
      %p36 = scmp.ne.s32.totalorder %s31, %s33
      %p37 = scmp.eq.s32.totalorder %s23, 0
      %p38 = por %p36, %p37
      %p39 = scmp.ne.s32.totalorder %s31, %s33
      %p40 = scmp.eq.s32.totalorder %s28, 2
      %p41 = por %p39, %p40
      %p42 = scmp.ne.s32.totalorder %s33, %s34
      %p43 = scmp.eq.s32.totalorder %s28, 0
      %p44 = por %p42, %p43
      %p45 = scmp.ne.s32.totalorder %s33, %s34
      %p46 = scmp.eq.s32.totalorder %s29, 2
      %p47 = por %p45, %p46
      %p49 = scmp.ne.s32.totalorder %s34, %s48
      %p50 = scmp.eq.s32.totalorder %s29, 0
      %p51 = por %p49, %p50
      %s53 = sadd.s32 %s52, 1
      %p56 = scmp.eq.s32.totalorder %s23, 2
      %p57 = scmp.ne.s32.totalorder %s52, %s54
      %p58 = scmp.eq.s32.totalorder %s23, 0
      %p59 = por %p57, %p58
      %p60 = scmp.ne.s32.totalorder %s52, %s54
      %p61 = scmp.eq.s32.totalorder %s28, 2
      %p62 = por %p60, %p61
      %p63 = scmp.ne.s32.totalorder %s54, %s55
      %p64 = scmp.eq.s32.totalorder %s28, 0
      %p65 = por %p63, %p64
      %p66 = scmp.ne.s32.totalorder %s54, %s55
      %p67 = scmp.eq.s32.totalorder %s29, 2
      %p68 = por %p66, %p67
      %p70 = scmp.ne.s32.totalorder %s55, %s69
      %p71 = scmp.eq.s32.totalorder %s29, 0
      %p72 = por %p70, %p71
      %s74 = sadd.s32 %s73, 1
      %p77 = scmp.eq.s32.totalorder %s23, 2
      %p78 = scmp.ne.s32.totalorder %s73, %s75
      %p79 = scmp.eq.s32.totalorder %s23, 0
      %p80 = por %p78, %p79
      %p81 = scmp.ne.s32.totalorder %s73, %s75
      %p82 = scmp.eq.s32.totalorder %s28, 2
      %p83 = por %p81, %p82
      %p84 = scmp.ne.s32.totalorder %s75, %s76
      %p85 = scmp.eq.s32.totalorder %s28, 0
      %p86 = por %p84, %p85
      %p87 = scmp.ne.s32.totalorder %s75, %s76
      %p88 = scmp.eq.s32.totalorder %s29, 2
      %p89 = por %p87, %p88
      %p91 = scmp.ne.s32.totalorder %s76, %s90
      %p92 = scmp.eq.s32.totalorder %s29, 0
      %p93 = por %p91, %p92
      %s94 = ssub.s32 %s23, %s30
      %p95 = scmp.eq.s32.totalorder %s94, 0
      %s97 = sadd.s32 %s96, 1
      %s98 = scalar_select %p95, %s96, %s97
      %p101 = pneg %p95
      %p102 = scmp.eq.s32.totalorder %s23, 2
      %p103 = por %p101, %p102
      %p104 = scmp.ne.s32.totalorder %s96, %s99
      %p105 = scmp.eq.s32.totalorder %s23, 0
      %p106 = por %p104, %p105
      %p107 = scmp.ne.s32.totalorder %s96, %s99
      %p108 = scmp.eq.s32.totalorder %s28, 2
      %p109 = por %p107, %p108
      %p110 = scmp.ne.s32.totalorder %s99, %s100
      %p111 = scmp.eq.s32.totalorder %s28, 0
      %p112 = por %p110, %p111
      %p113 = scmp.ne.s32.totalorder %s99, %s100
      %p114 = scmp.eq.s32.totalorder %s29, 2
      %p115 = por %p113, %p114
      %p117 = scmp.ne.s32.totalorder %s100, %s116
      %p118 = scmp.eq.s32.totalorder %s29, 0
      %p119 = por %p117, %p118
      %s120 = ssub.s32 %s23, %s30
      %p121 = scmp.eq.s32.totalorder %s120, 0
      %s123 = sadd.s32 %s122, 1
      %s124 = scalar_select %p121, %s122, %s123
      %p127 = pneg %p121
      %p128 = scmp.eq.s32.totalorder %s23, 2
      %p129 = por %p127, %p128
      %p130 = scmp.ne.s32.totalorder %s122, %s125
      %p131 = scmp.eq.s32.totalorder %s23, 0
      %p132 = por %p130, %p131
      %p133 = scmp.ne.s32.totalorder %s122, %s125
      %p134 = scmp.eq.s32.totalorder %s28, 2
      %p135 = por %p133, %p134
      %p136 = scmp.ne.s32.totalorder %s125, %s126
      %p137 = scmp.eq.s32.totalorder %s28, 0
      %p138 = por %p136, %p137
      %p139 = scmp.ne.s32.totalorder %s125, %s126
      %p140 = scmp.eq.s32.totalorder %s29, 2
      %p141 = por %p139, %p140
      %p143 = scmp.ne.s32.totalorder %s126, %s142
      %p144 = scmp.eq.s32.totalorder %s29, 0
      %p145 = por %p143, %p144
      %s146 = ssub.s32 %s23, %s30
      %p147 = scmp.eq.s32.totalorder %s146, 0
      %s149 = sadd.s32 %s148, 1
      %s150 = scalar_select %p147, %s148, %s149
      %p153 = pneg %p147
      %p154 = scmp.eq.s32.totalorder %s23, 2
      %p155 = por %p153, %p154
      %p156 = scmp.ne.s32.totalorder %s148, %s151
      %p157 = scmp.eq.s32.totalorder %s23, 0
      %p158 = por %p156, %p157
      %p159 = scmp.ne.s32.totalorder %s148, %s151
      %p160 = scmp.eq.s32.totalorder %s28, 2
      %p161 = por %p159, %p160
      %p162 = scmp.ne.s32.totalorder %s151, %s152
      %p163 = scmp.eq.s32.totalorder %s28, 0
      %p164 = por %p162, %p163
      %p165 = scmp.ne.s32.totalorder %s151, %s152
      %p166 = scmp.eq.s32.totalorder %s29, 2
      %p167 = por %p165, %p166
      %p169 = scmp.ne.s32.totalorder %s152, %s168
      %p170 = scmp.eq.s32.totalorder %s29, 0
      %p171 = por %p169, %p170
      %s172 = ssub.s32 %s23, %s30
      %p173 = scmp.eq.s32.totalorder %s172, 0
      %s175 = sadd.s32 %s174, 1
      %s176 = scalar_select %p173, %s174, %s175
      %p179 = pneg %p173
      %p180 = scmp.eq.s32.totalorder %s23, 2
      %p181 = por %p179, %p180
      %p182 = scmp.ne.s32.totalorder %s174, %s177
      %p183 = scmp.eq.s32.totalorder %s23, 0
      %p184 = por %p182, %p183
      %p185 = scmp.ne.s32.totalorder %s174, %s177
      %p186 = scmp.eq.s32.totalorder %s28, 2
      %p187 = por %p185, %p186
      %p188 = scmp.ne.s32.totalorder %s177, %s178
      %p189 = scmp.eq.s32.totalorder %s28, 0
      %p190 = por %p188, %p189
      %p191 = scmp.ne.s32.totalorder %s177, %s178
      %p192 = scmp.eq.s32.totalorder %s29, 2
      %p193 = por %p191, %p192
      %p195 = scmp.ne.s32.totalorder %s178, %s194
      %p196 = scmp.eq.s32.totalorder %s29, 0
      %p197 = por %p195, %p196
      %s198 = ssub.s32 %s23, %s30
      %p199 = scmp.eq.s32.totalorder %s198, 0
      %s201 = sadd.s32 %s200, 1
      %s202 = scalar_select %p199, %s200, %s201
      %p205 = pneg %p199
      %p206 = scmp.eq.s32.totalorder %s23, 2
      %p207 = por %p205, %p206
      %p208 = scmp.ne.s32.totalorder %s200, %s203
      %p209 = scmp.eq.s32.totalorder %s23, 0
      %p210 = por %p208, %p209
      %p211 = scmp.ne.s32.totalorder %s200, %s203
      %p212 = scmp.eq.s32.totalorder %s28, 2
      %p213 = por %p211, %p212
      %p214 = scmp.ne.s32.totalorder %s203, %s204
      %p215 = scmp.eq.s32.totalorder %s28, 0
      %p216 = por %p214, %p215
      %p217 = scmp.ne.s32.totalorder %s203, %s204
      %p218 = scmp.eq.s32.totalorder %s29, 2
      %p219 = por %p217, %p218
      %p221 = scmp.ne.s32.totalorder %s204, %s220
      %p222 = scmp.eq.s32.totalorder %s29, 0
      %p223 = por %p221, %p222
      %s224 = ssub.s32 %s23, %s30
      %p225 = scmp.eq.s32.totalorder %s224, 0
      %s227 = sadd.s32 %s226, 1
      %s228 = scalar_select %p225, %s226, %s227
      %p231 = pneg %p225
      %p232 = scmp.eq.s32.totalorder %s23, 2
      %p233 = por %p231, %p232
      %p234 = scmp.ne.s32.totalorder %s226, %s229
      %p235 = scmp.eq.s32.totalorder %s23, 0
      %p236 = por %p234, %p235
      %p237 = scmp.ne.s32.totalorder %s226, %s229
      %p238 = scmp.eq.s32.totalorder %s28, 2
      %p239 = por %p237, %p238
      %p240 = scmp.ne.s32.totalorder %s229, %s230
      %p241 = scmp.eq.s32.totalorder %s28, 0
      %p242 = por %p240, %p241
      %p243 = scmp.ne.s32.totalorder %s229, %s230
      %p244 = scmp.eq.s32.totalorder %s29, 2
      %p245 = por %p243, %p244
      %p247 = scmp.ne.s32.totalorder %s230, %s246
      %p248 = scmp.eq.s32.totalorder %s29, 0
      %p249 = por %p247, %p248
      %p250 = scmp.le.s32.totalorder 1, %s23
      %p251 = scmp.lt.s32.totalorder %s23, 4
      %p252 = pnand %p250, %p251
      %p253 = pneg %p252
      // Predicated region
      $region9: #{tpu_custom_call.1} parent=5 // pred_check
        _
      $region10: #{tpu_custom_call.1} parent=5 // pred_check_branch
        %255 = sbr.rel (%p252) target = $region12
      $region11: #{tpu_custom_call.1} parent=5 // pred_region
        %s256 = ssub.s32 %s23, 1
        // Predicated region
        $region13: #{tpu_custom_call.1} parent=11 // pred_check
          %p257 = pneg %p44
        $region14: #{tpu_custom_call.1} parent=11 // pred_check_branch
          %259 = sbr.rel (%p257) target = $region16
        $region15: #{tpu_custom_call.1} parent=11 // pred_region
          %s261 = ssub.s32 16, 16
          %262 = vsyncadd [#allocation5], %s261
          %s264 = sshll.u32 %s0, 4
          %s265 = int_to_ptr.vmem [resolvable:$true] %s264
          %267 = dma.vmem_to_smem %s265, 16, [#allocation3], [#allocation5]
        $region16: #{tpu_custom_call.1} parent=11 // pred_fallthru
          _
        // Predicated region
        $region17: #{tpu_custom_call.1} parent=11 // pred_check
          %p268 = pneg %p65
        $region18: #{tpu_custom_call.1} parent=11 // pred_check_branch
          %270 = sbr.rel (%p268) target = $region20
        $region19: #{tpu_custom_call.1} parent=11 // pred_region
          %s272 = ssub.s32 16, 16
          %273 = vsyncadd [#allocation7], %s272
          %s275 = sshll.u32 %s1, 4
          %s276 = int_to_ptr.vmem [resolvable:$true] %s275
          %278 = dma.vmem_to_smem %s276, 16, [#allocation6], [#allocation7]
        $region20: #{tpu_custom_call.1} parent=11 // pred_fallthru
          _
        // Predicated region
        $region21: #{tpu_custom_call.1} parent=11 // pred_check
          %p279 = pneg %p86
        $region22: #{tpu_custom_call.1} parent=11 // pred_check_branch
          %281 = sbr.rel (%p279) target = $region24
        $region23: #{tpu_custom_call.1} parent=11 // pred_region
          %s283 = ssub.s32 16, 16
          %284 = vsyncadd [#allocation7], %s283
          %s286 = sshll.u32 %s2, 4
          %s287 = int_to_ptr.vmem [resolvable:$true] %s286
          %289 = dma.vmem_to_smem %s287, 16, [#allocation8], [#allocation7]
        $region24: #{tpu_custom_call.1} parent=11 // pred_fallthru
          _
      $region12: #{tpu_custom_call.1} parent=5 // pred_fallthru
        _
      %p290 = scmp.lt.s32.totalorder %s23, 3
      // Predicated region
      $region25: #{tpu_custom_call.1} parent=5 // pred_check
        %p291 = pneg %p290
      $region26: #{tpu_custom_call.1} parent=5 // pred_check_branch
        %293 = sbr.rel (%p291) target = $region28
      $region27: #{tpu_custom_call.1} parent=5 // pred_region
        // Predicated region
        $region29: #{tpu_custom_call.1} parent=27 // pred_check
          %p294 = pneg %p106
        $region30: #{tpu_custom_call.1} parent=27 // pred_check_branch
          %296 = sbr.rel (%p294) target = $region32
        $region31: #{tpu_custom_call.1} parent=27 // pred_region
          %s297 = smul.u32 2, %s23
          %p298 = scmp.lt.s32.totalorder %s297, 5
          %s299 = scalar_select %p298, %s297, 5
          %s300 = smul.addr %s299, 4
          %s301 = scalar_lea.vmem %s3, %s300
          %s302 = smul.u32 2, %s23
        $region32: #{tpu_custom_call.1} parent=27 // pred_fallthru
          _
        // Predicated region
        $region33: #{tpu_custom_call.1} parent=27 // pred_check
          %p303 = pneg %p132
        $region34: #{tpu_custom_call.1} parent=27 // pred_check_branch
          %305 = sbr.rel (%p303) target = $region36
        $region35: #{tpu_custom_call.1} parent=27 // pred_region
          %s306 = smul.u32 2, %s23
          %p307 = scmp.lt.s32.totalorder %s306, 5
          %s308 = scalar_select %p307, %s306, 5
          %s309 = smul.addr %s308, 4
          %s310 = scalar_lea.vmem %s4, %s309
          %s311 = smul.u32 2, %s23
        $region36: #{tpu_custom_call.1} parent=27 // pred_fallthru
          _
        // Predicated region
        $region37: #{tpu_custom_call.1} parent=27 // pred_check
          %p312 = pneg %p158
        $region38: #{tpu_custom_call.1} parent=27 // pred_check_branch
          %314 = sbr.rel (%p312) target = $region40
        $region39: #{tpu_custom_call.1} parent=27 // pred_region
          %s315 = smul.u32 2, %s23
          %p316 = scmp.lt.s32.totalorder %s315, 5
          %s317 = scalar_select %p316, %s315, 5
          %s318 = smul.addr %s317, 8
          %s319 = smul.addr %s318, 8
          %s320 = scalar_lea.vmem %s5, %s319
          %s321 = smul.u32 2, %s23
        $region40: #{tpu_custom_call.1} parent=27 // pred_fallthru
          _
        // Predicated region
        $region41: #{tpu_custom_call.1} parent=27 // pred_check
          %p322 = pneg %p184
        $region42: #{tpu_custom_call.1} parent=27 // pred_check_branch
          %324 = sbr.rel (%p322) target = $region44
        $region43: #{tpu_custom_call.1} parent=27 // pred_region
          %s325 = smul.u32 2, %s23
          %p326 = scmp.lt.s32.totalorder %s325, 5
          %s327 = scalar_select %p326, %s325, 5
          %s328 = smul.addr %s327, 4
          %s329 = scalar_lea.vmem %s6, %s328
          %s330 = smul.u32 2, %s23
        $region44: #{tpu_custom_call.1} parent=27 // pred_fallthru
          _
      $region28: #{tpu_custom_call.1} parent=5 // pred_fallthru
        _
      %p331 = scmp.le.s32.totalorder 1, %s23
      %p332 = scmp.lt.s32.totalorder %s23, 4
      %p333 = pnand %p331, %p332
      %p334 = pneg %p333
      // Predicated region
      $region45: #{tpu_custom_call.1} parent=5 // pred_check
        _
      $region46: #{tpu_custom_call.1} parent=5 // pred_check_branch
        %336 = sbr.rel (%p333) target = $region48
      $region47: #{tpu_custom_call.1} parent=5 // pred_region
        %s337 = ssub.s32 %s23, 1
        // Predicated region
        $region49: #{tpu_custom_call.1} parent=47 // pred_check
          %p338 = pneg %p44
        $region50: #{tpu_custom_call.1} parent=47 // pred_check_branch
          %340 = sbr.rel (%p338) target = $region52
        $region51: #{tpu_custom_call.1} parent=47 // pred_region
          %341 = dma.done [#allocation5], 16
        $region52: #{tpu_custom_call.1} parent=47 // pred_fallthru
          _
        // Predicated region
        $region53: #{tpu_custom_call.1} parent=47 // pred_check
          %p342 = pneg %p65
        $region54: #{tpu_custom_call.1} parent=47 // pred_check_branch
          %344 = sbr.rel (%p342) target = $region56
        $region55: #{tpu_custom_call.1} parent=47 // pred_region
          %345 = dma.done [#allocation7], 16
        $region56: #{tpu_custom_call.1} parent=47 // pred_fallthru
          _
        // Predicated region
        $region57: #{tpu_custom_call.1} parent=47 // pred_check
          %p346 = pneg %p86
        $region58: #{tpu_custom_call.1} parent=47 // pred_check_branch
          %348 = sbr.rel (%p346) target = $region60
        $region59: #{tpu_custom_call.1} parent=47 // pred_region
          %349 = dma.done [#allocation7], 16
        $region60: #{tpu_custom_call.1} parent=47 // pred_fallthru
          _
        %350 = sfence
        %p351 = pneg %p44
        %p352 = pneg %p41
        %p353 = pneg %p65
        %p354 = pneg %p62
        %p355 = pneg %p86
        %p356 = pneg %p83
        %s357 = smul.u32 2, %s28
        %p358 = scmp.lt.s32.totalorder %s357, 5
        %s359 = scalar_select %p358, %s357, 5
        %s360 = smul.addr %s359, 4
        %s361 = scalar_lea.vmem %s3, %s360
        %p362 = pneg %p112
        %p363 = pneg %p109
        %s364 = smul.u32 2, %s28
        %p365 = scmp.lt.s32.totalorder %s364, 5
        %s366 = scalar_select %p365, %s364, 5
        %s367 = smul.addr %s366, 4
        %s368 = scalar_lea.vmem %s4, %s367
        %p369 = pneg %p138
        %p370 = pneg %p135
        %s371 = smul.u32 2, %s28
        %p372 = scmp.lt.s32.totalorder %s371, 5
        %s373 = scalar_select %p372, %s371, 5
        %s374 = smul.addr %s373, 8
        %s375 = smul.addr %s374, 8
        %s376 = scalar_lea.vmem %s5, %s375
        %p377 = pneg %p164
        %p378 = pneg %p161
        %s379 = smul.u32 2, %s28
        %p380 = scmp.lt.s32.totalorder %s379, 5
        %s381 = scalar_select %p380, %s379, 5
        %s382 = smul.addr %s381, 4
        %s383 = scalar_lea.vmem %s6, %s382
        %p384 = pneg %p190
        %p385 = pneg %p187
        %p386 = pneg %p216
        %p387 = pneg %p213
        %s388 = sand.u32 %s203, 1
        %s389 = scalar_lea.sflag [#allocation4], %s388
        %s390 = sand.u32 %s203, 1
        %s391 = smul.addr %s390, 16
        %s392 = scalar_lea.vmem [#allocation9], %s391
        %p393 = pneg %p242
        %p394 = pneg %p239
        %s395 = sand.u32 %s229, 1
        %s396 = scalar_lea.sflag [#allocation11], %s395
        %s397 = sand.u32 %s229, 1
        %s398 = smul.addr %s397, 16
        %s399 = scalar_lea.vmem [#allocation10], %s398
        %s400 = smul.u32 2, %s28
        %p401 = scmp.lt.s32.totalorder %s400, 5
        %s402 = scalar_select %p401, %s400, 5
        %s403 = smul.addr %s402, 4
        %s404 = scalar_lea.vmem %s3, %s403
        %s405 = smul.u32 2, %s28
        %s406 = smul.u32 2, %s28
        %p407 = scmp.lt.s32.totalorder %s406, 5
        %s408 = scalar_select %p407, %s406, 5
        %s409 = smul.addr %s408, 4
        %s410 = scalar_lea.vmem %s4, %s409
        %s411 = smul.u32 2, %s28
        %s412 = smul.u32 2, %s28
        %p413 = scmp.lt.s32.totalorder %s412, 5
        %s414 = scalar_select %p413, %s412, 5
        %s415 = smul.addr %s414, 8
        %s416 = smul.addr %s415, 8
        %s417 = scalar_lea.vmem %s5, %s416
        %s418 = smul.u32 2, %s28
        %s419 = smul.u32 2, %s28
        %p420 = scmp.lt.s32.totalorder %s419, 5
        %s421 = scalar_select %p420, %s419, 5
        %s422 = smul.addr %s421, 4
        %s423 = scalar_lea.vmem %s6, %s422
        %s424 = smul.u32 2, %s28
        %s425 = smul.u32 2, %s28
        %s426 = smul.u32 2, %s28
        %s427 = smul.u32 %s28, 2
        %s428 = sld [smem:[#allocation3 + %s427]]
        %s429 = sld [smem:[#allocation6 + %s427]]
        %s430 = sld [smem:[#allocation8 + %s427]]
        %v431 = vld [vmem:[%s423] sm:$0x7]
        %v432 = vld [vmem:[%s417] sm:$0xff]
        %v433 = vld [vmem:[%s417 + $0x8] sm:$0xff]
        %v434 = vld [vmem:[%s417 + $0x10] sm:$0xff]
        %v435 = vld [vmem:[%s417 + $0x18] sm:$0xff]
        %v436 = vld [vmem:[%s417 + $0x20] sm:$0xff]
        %v437 = vld [vmem:[%s417 + $0x28] sm:$0xff]
        %v438 = vld [vmem:[%s417 + $0x30] sm:$0xff]
        %v439 = vld [vmem:[%s417 + $0x38] sm:$0xff]
        %v440 = vmul.f32 %v432, %v432
        %v441 = vmul.f32 %v433, %v433
        %v442 = vmul.f32 %v434, %v434
        %v443 = vmul.f32 %v435, %v435
        %v444 = vmul.f32 %v436, %v436
        %v445 = vmul.f32 %v437, %v437
        %v446 = vmul.f32 %v438, %v438
        %v447 = vmul.f32 %v439, %v439
        %vm448 = vcmask 23552
        %v449 = vsel %vm448, %v440, 0.0
        %450 = vadd.xlane.f32.xlu0 %v449
        %v451 = vpop.xlane.xlu0 %450
        %v452 = vsel %vm448, %v441, 0.0
        %453 = vadd.xlane.f32.xlu0 %v452
        %v454 = vpop.xlane.xlu0 %453
        %v455 = vsel %vm448, %v442, 0.0
        %456 = vadd.xlane.f32.xlu0 %v455
        %v457 = vpop.xlane.xlu0 %456
        %v458 = vsel %vm448, %v443, 0.0
        %459 = vadd.xlane.f32.xlu0 %v458
        %v460 = vpop.xlane.xlu0 %459
        %v461 = vsel %vm448, %v444, 0.0
        %462 = vadd.xlane.f32.xlu0 %v461
        %v463 = vpop.xlane.xlu0 %462
        %v464 = vsel %vm448, %v445, 0.0
        %465 = vadd.xlane.f32.xlu0 %v464
        %v466 = vpop.xlane.xlu0 %465
        %v467 = vsel %vm448, %v446, 0.0
        %468 = vadd.xlane.f32.xlu0 %v467
        %v469 = vpop.xlane.xlu0 %468
        %v470 = vsel %vm448, %v447, 0.0
        %471 = vadd.xlane.f32.xlu0 %v470
        %v472 = vpop.xlane.xlu0 %471
        %p473 = scmp.ne.f32.partialorder %s428, 0.0
        %p474 = scmp.ne.f32.partialorder %s429, 0.0
        %p475 = scmp.ne.f32.partialorder %s430, 0.0
        %p476 = scmp.ne.f32.partialorder %s430, 1.0
        %s477 = scalar_lea.smem [#allocation2], 0
        %478 = sst [smem:[%s477]] 0.0
        %s479 = scalar_lea.smem [#allocation2], 1
        %480 = sst [smem:[%s479]] 0.0
        %s481 = scalar_lea.smem [#allocation2], 2
        %482 = sst [smem:[%s481]] 0.0
        %s483 = scalar_lea.smem [#allocation2], 3
        %484 = sst [smem:[%s483]] 0.0
        %p485 = pnand %p473, %p475
        %p486 = pneg %p485
        // Predicated region
        $region61: #{tpu_custom_call.1} parent=47 // pred_check
          _
        $region62: #{tpu_custom_call.1} parent=47 // pred_check_branch
          %488 = sbr.rel (%p485) target = $region64
        $region63: #{tpu_custom_call.1} parent=47 // pred_region
          %v489 = vld [vmem:[%s404] sm:$0x7]
          %v491 = vsel %vm448, %v432, 0
          %v494 = vsel %vm448, %v433, 0
          %v497 = vsel %vm448, %v434, 0
          %v500 = vsel %vm448, %v435, 0
          %v503 = vsel %vm448, %v436, 0
          %v506 = vsel %vm448, %v437, 0
          %v509 = vsel %vm448, %v438, 0
          %v512 = vsel %vm448, %v439, 0
          %vm514 = vcmask 1042432
          %v516 = vsel %vm514, %v489, 0
          %518 = vmatprep.subr.mxu0 0.0
          %v519 = vand.u32 %v516, 4294901760
          %520 = vmatpush1.msra.mxu0 %v519
          %521 = vmatprep.subr.mxu0 0.0
          %522 = vmatpush1.msra.mxu0 0.0
          %523 = vmatprep.subr.mxu0 0.0
          %524 = vmatpush1.msra.mxu0 0.0
          %525 = vmatprep.subr.mxu0 0.0
          %526 = vmatpush1.msra.mxu0 0.0
          %527 = vmatprep.subr.mxu0 0.0
          %528 = vmatpush1.msra.mxu0 0.0
          %529 = vmatprep.subr.mxu0 0.0
          %530 = vmatpush1.msra.mxu0 0.0
          %531 = vmatprep.subr.mxu0 0.0
          %532 = vmatpush1.msra.mxu0 0.0
          %533 = vmatprep.subr.mxu0 0.0
          %534 = vmatpush1.msra.mxu0 0.0
          %535 = vmatprep.subr.mxu0 0.0
          %536 = vmatpush1.msra.mxu0 0.0
          %537 = vmatprep.subr.mxu0 0.0
          %538 = vmatpush1.msra.mxu0 0.0
          %539 = vmatprep.subr.mxu0 0.0
          %540 = vmatpush1.msra.mxu0 0.0
          %541 = vmatprep.subr.mxu0 0.0
          %542 = vmatpush1.msra.mxu0 0.0
          %543 = vmatprep.subr.mxu0 0.0
          %544 = vmatpush1.msra.mxu0 0.0
          %545 = vmatprep.subr.mxu0 0.0
          %546 = vmatpush1.msra.mxu0 0.0
          %547 = vmatprep.subr.mxu0 0.0
          %548 = vmatpush1.msra.mxu0 0.0
          %549 = vmatprep.subr.mxu0 0.0
          %550 = vmatpush1.msra.mxu0 0.0
          %551 = vmatprep.subr.mxu0 0.0
          %552 = vmatpush1.msra.mxu0 0.0
          %553 = vmatprep.subr.mxu0 0.0
          %554 = vmatpush1.msra.mxu0 0.0
          %555 = vmatprep.subr.mxu0 0.0
          %556 = vmatpush1.msra.mxu0 0.0
          %557 = vmatprep.subr.mxu0 0.0
          %558 = vmatpush1.msra.mxu0 0.0
          %559 = vmatprep.subr.mxu0 0.0
          %560 = vmatpush1.msra.mxu0 0.0
          %561 = vmatprep.subr.mxu0 0.0
          %562 = vmatpush1.msra.mxu0 0.0
          %563 = vmatprep.subr.mxu0 0.0
          %564 = vmatpush1.msra.mxu0 0.0
          %565 = vmatprep.subr.mxu0 0.0
          %566 = vmatpush1.msra.mxu0 0.0
          %567 = vmatprep.subr.mxu0 0.0
          %568 = vmatpush1.msra.mxu0 0.0
          %569 = vmatprep.subr.mxu0 0.0
          %570 = vmatpush1.msra.mxu0 0.0
          %571 = vmatprep.subr.mxu0 0.0
          %572 = vmatpush1.msra.mxu0 0.0
          %573 = vmatprep.subr.mxu0 0.0
          %574 = vmatpush1.msra.mxu0 0.0
          %575 = vmatprep.subr.mxu0 0.0
          %576 = vmatpush1.msra.mxu0 0.0
          %577 = vmatprep.subr.mxu0 0.0
          %578 = vmatpush1.msra.mxu0 0.0
          %579 = vmatprep.subr.mxu0 0.0
          %580 = vmatpush1.msra.mxu0 0.0
          %581 = vmatprep.subr.mxu0 0.0
          %582 = vmatpush1.msra.mxu0 0.0
          %583 = vmatprep.mubr.f32.mxu0 0.0
          %v584 = vand.u32 %v491, 4294901760
          %v585 = vsub.f32 %v491, %v584
          %v586 = vand.u32 %v585, 4294901760
          %v587 = vsub.f32 %v585, %v586
          %v588 = vand.u32 %v587, 4294901760
          %589 = vmatmul.mubr.f32.gmra.mrb[0].mxu0 %v588
          %v590 = vpop.f32.mrb[0].mxu0
          %v591 = vadd.f32 0.0, %v590
          %v592 = vpop.f32.mrb[0].mxu0
          %593 = vmatprep.mubr.f32.mxu0 0.0
          %v594 = vand.u32 %v494, 4294901760
          %v595 = vsub.f32 %v494, %v594
          %v596 = vand.u32 %v595, 4294901760
          %v597 = vsub.f32 %v595, %v596
          %v598 = vand.u32 %v597, 4294901760
          %599 = vmatmul.mubr.f32.gmra.mrb[0].mxu0 %v598
          %v600 = vpop.f32.mrb[0].mxu0
          %v601 = vadd.f32 0.0, %v600
          %v602 = vpop.f32.mrb[0].mxu0
          %603 = vmatprep.mubr.f32.mxu0 0.0
          %v604 = vand.u32 %v497, 4294901760
          %v605 = vsub.f32 %v497, %v604
          %v606 = vand.u32 %v605, 4294901760
          %v607 = vsub.f32 %v605, %v606
          %v608 = vand.u32 %v607, 4294901760
          %609 = vmatmul.mubr.f32.gmra.mrb[0].mxu0 %v608
          %v610 = vpop.f32.mrb[0].mxu0
          %v611 = vadd.f32 0.0, %v610
          %v612 = vpop.f32.mrb[0].mxu0
          %613 = vmatprep.mubr.f32.mxu0 0.0
          %v614 = vand.u32 %v500, 4294901760
          %v615 = vsub.f32 %v500, %v614
          %v616 = vand.u32 %v615, 4294901760
          %v617 = vsub.f32 %v615, %v616
          %v618 = vand.u32 %v617, 4294901760
          %619 = vmatmul.mubr.f32.gmra.mrb[0].mxu0 %v618
          %v620 = vpop.f32.mrb[0].mxu0
          %v621 = vadd.f32 0.0, %v620
          %v622 = vpop.f32.mrb[0].mxu0
          %623 = vmatprep.mubr.f32.mxu0 0.0
          %v624 = vand.u32 %v503, 4294901760
          %v625 = vsub.f32 %v503, %v624
          %v626 = vand.u32 %v625, 4294901760
          %v627 = vsub.f32 %v625, %v626
          %v628 = vand.u32 %v627, 4294901760
          %629 = vmatmul.mubr.f32.gmra.mrb[0].mxu0 %v628
          %v630 = vpop.f32.mrb[0].mxu0
          %v631 = vadd.f32 0.0, %v630
          %v632 = vpop.f32.mrb[0].mxu0
          %633 = vmatprep.mubr.f32.mxu0 0.0
          %v634 = vand.u32 %v506, 4294901760
          %v635 = vsub.f32 %v506, %v634
          %v636 = vand.u32 %v635, 4294901760
          %v637 = vsub.f32 %v635, %v636
          %v638 = vand.u32 %v637, 4294901760
          %639 = vmatmul.mubr.f32.gmra.mrb[0].mxu0 %v638
          %v640 = vpop.f32.mrb[0].mxu0
          %v641 = vadd.f32 0.0, %v640
          %v642 = vpop.f32.mrb[0].mxu0
          %643 = vmatprep.mubr.f32.mxu0 0.0
          %v644 = vand.u32 %v509, 4294901760
          %v645 = vsub.f32 %v509, %v644
          %v646 = vand.u32 %v645, 4294901760
          %v647 = vsub.f32 %v645, %v646
          %v648 = vand.u32 %v647, 4294901760
          %649 = vmatmul.mubr.f32.gmra.mrb[0].mxu0 %v648
          %v650 = vpop.f32.mrb[0].mxu0
          %v651 = vadd.f32 0.0, %v650
          %v652 = vpop.f32.mrb[0].mxu0
          %653 = vmatprep.mubr.f32.mxu0 0.0
          %v654 = vand.u32 %v512, 4294901760
          %v655 = vsub.f32 %v512, %v654
          %v656 = vand.u32 %v655, 4294901760
          %v657 = vsub.f32 %v655, %v656
          %v658 = vand.u32 %v657, 4294901760
          %659 = vmatmul.mubr.f32.gmra.mrb[0].mxu0 %v658
          %v660 = vpop.f32.mrb[0].mxu0
          %v661 = vadd.f32 0.0, %v660
          %v662 = vpop.f32.mrb[0].mxu0
          %663 = vdwg.mxu0
          %664 = vmatprep.subr.mxu0 0.0
          %v665 = vand.u32 %v516, 4294901760
          %v666 = vsub.f32 %v516, %v665
          %v667 = vand.u32 %v666, 4294901760
          %v668 = vsub.f32 %v666, %v667
          %v669 = vand.u32 %v668, 4294901760
          %670 = vmatpush1.msra.mxu0 %v669
          %671 = vmatprep.subr.mxu0 0.0
          %672 = vmatpush1.msra.mxu0 0.0
          %673 = vmatprep.subr.mxu0 0.0
          %674 = vmatpush1.msra.mxu0 0.0
          %675 = vmatprep.subr.mxu0 0.0
          %676 = vmatpush1.msra.mxu0 0.0
          %677 = vmatprep.subr.mxu0 0.0
          %678 = vmatpush1.msra.mxu0 0.0
          %679 = vmatprep.subr.mxu0 0.0
          %680 = vmatpush1.msra.mxu0 0.0
          %681 = vmatprep.subr.mxu0 0.0
          %682 = vmatpush1.msra.mxu0 0.0
          %683 = vmatprep.subr.mxu0 0.0
          %684 = vmatpush1.msra.mxu0 0.0
          %685 = vmatprep.subr.mxu0 0.0
          %686 = vmatpush1.msra.mxu0 0.0
          %687 = vmatprep.subr.mxu0 0.0
          %688 = vmatpush1.msra.mxu0 0.0
          %689 = vmatprep.subr.mxu0 0.0
          %690 = vmatpush1.msra.mxu0 0.0
          %691 = vmatprep.subr.mxu0 0.0
          %692 = vmatpush1.msra.mxu0 0.0
          %693 = vmatprep.subr.mxu0 0.0
          %694 = vmatpush1.msra.mxu0 0.0
          %695 = vmatprep.subr.mxu0 0.0
          %696 = vmatpush1.msra.mxu0 0.0
          %697 = vmatprep.subr.mxu0 0.0
          %698 = vmatpush1.msra.mxu0 0.0
          %699 = vmatprep.subr.mxu0 0.0
          %700 = vmatpush1.msra.mxu0 0.0
          %701 = vmatprep.subr.mxu0 0.0
          %702 = vmatpush1.msra.mxu0 0.0
          %703 = vmatprep.subr.mxu0 0.0
          %704 = vmatpush1.msra.mxu0 0.0
          %705 = vmatprep.subr.mxu0 0.0
          %706 = vmatpush1.msra.mxu0 0.0
          %707 = vmatprep.subr.mxu0 0.0
          %708 = vmatpush1.msra.mxu0 0.0
          %709 = vmatprep.subr.mxu0 0.0
          %710 = vmatpush1.msra.mxu0 0.0
          %711 = vmatprep.subr.mxu0 0.0
          %712 = vmatpush1.msra.mxu0 0.0
          %713 = vmatprep.subr.mxu0 0.0
          %714 = vmatpush1.msra.mxu0 0.0
          %715 = vmatprep.subr.mxu0 0.0
          %716 = vmatpush1.msra.mxu0 0.0
          %717 = vmatprep.subr.mxu0 0.0
          %718 = vmatpush1.msra.mxu0 0.0
          %719 = vmatprep.subr.mxu0 0.0
          %720 = vmatpush1.msra.mxu0 0.0
          %721 = vmatprep.subr.mxu0 0.0
          %722 = vmatpush1.msra.mxu0 0.0
          %723 = vmatprep.subr.mxu0 0.0
          %724 = vmatpush1.msra.mxu0 0.0
          %725 = vmatprep.subr.mxu0 0.0
          %726 = vmatpush1.msra.mxu0 0.0
          %727 = vmatprep.subr.mxu0 0.0
          %728 = vmatpush1.msra.mxu0 0.0
          %729 = vmatprep.subr.mxu0 0.0
          %730 = vmatpush1.msra.mxu0 0.0
          %731 = vmatprep.subr.mxu0 0.0
          %732 = vmatpush1.msra.mxu0 0.0
          %733 = vmatprep.mubr.f32.mxu0 0.0
          %v734 = vand.u32 %v491, 4294901760
          %735 = vmatmul.mubr.f32.gmra.mrb[0].mxu0 %v734
          %v736 = vpop.f32.mrb[0].mxu0
          %v737 = vadd.f32 %v591, %v736
          %v738 = vpop.f32.mrb[0].mxu0
          %739 = vmatprep.mubr.f32.mxu0 0.0
          %v740 = vand.u32 %v494, 4294901760
          %741 = vmatmul.mubr.f32.gmra.mrb[0].mxu0 %v740
          %v742 = vpop.f32.mrb[0].mxu0
          %v743 = vadd.f32 %v601, %v742
          %v744 = vpop.f32.mrb[0].mxu0
          %745 = vmatprep.mubr.f32.mxu0 0.0
          %v746 = vand.u32 %v497, 4294901760
          %747 = vmatmul.mubr.f32.gmra.mrb[0].mxu0 %v746
          %v748 = vpop.f32.mrb[0].mxu0
          %v749 = vadd.f32 %v611, %v748
          %v750 = vpop.f32.mrb[0].mxu0
          %751 = vmatprep.mubr.f32.mxu0 0.0
          %v752 = vand.u32 %v500, 4294901760
          %753 = vmatmul.mubr.f32.gmra.mrb[0].mxu0 %v752
          %v754 = vpop.f32.mrb[0].mxu0
          %v755 = vadd.f32 %v621, %v754
          %v756 = vpop.f32.mrb[0].mxu0
          %757 = vmatprep.mubr.f32.mxu0 0.0
          %v758 = vand.u32 %v503, 4294901760
          %759 = vmatmul.mubr.f32.gmra.mrb[0].mxu0 %v758
          %v760 = vpop.f32.mrb[0].mxu0
          %v761 = vadd.f32 %v631, %v760
          %v762 = vpop.f32.mrb[0].mxu0
          %763 = vmatprep.mubr.f32.mxu0 0.0
          %v764 = vand.u32 %v506, 4294901760
          %765 = vmatmul.mubr.f32.gmra.mrb[0].mxu0 %v764
          %v766 = vpop.f32.mrb[0].mxu0
          %v767 = vadd.f32 %v641, %v766
          %v768 = vpop.f32.mrb[0].mxu0
          %769 = vmatprep.mubr.f32.mxu0 0.0
          %v770 = vand.u32 %v509, 4294901760
          %771 = vmatmul.mubr.f32.gmra.mrb[0].mxu0 %v770
          %v772 = vpop.f32.mrb[0].mxu0
          %v773 = vadd.f32 %v651, %v772
          %v774 = vpop.f32.mrb[0].mxu0
          %775 = vmatprep.mubr.f32.mxu0 0.0
          %v776 = vand.u32 %v512, 4294901760
          %777 = vmatmul.mubr.f32.gmra.mrb[0].mxu0 %v776
          %v778 = vpop.f32.mrb[0].mxu0
          %v779 = vadd.f32 %v661, %v778
          %v780 = vpop.f32.mrb[0].mxu0
          %781 = vdwg.mxu0
          %782 = vmatprep.subr.mxu0 0.0
          %v783 = vand.u32 %v516, 4294901760
          %v784 = vsub.f32 %v516, %v783
          %785 = vmatpush1.msra.mxu0 %v784
          %786 = vmatprep.subr.mxu0 0.0
          %787 = vmatpush1.msra.mxu0 0.0
          %788 = vmatprep.subr.mxu0 0.0
          %789 = vmatpush1.msra.mxu0 0.0
          %790 = vmatprep.subr.mxu0 0.0
          %791 = vmatpush1.msra.mxu0 0.0
          %792 = vmatprep.subr.mxu0 0.0
          %793 = vmatpush1.msra.mxu0 0.0
          %794 = vmatprep.subr.mxu0 0.0
          %795 = vmatpush1.msra.mxu0 0.0
          %796 = vmatprep.subr.mxu0 0.0
          %797 = vmatpush1.msra.mxu0 0.0
          %798 = vmatprep.subr.mxu0 0.0
          %799 = vmatpush1.msra.mxu0 0.0
          %800 = vmatprep.subr.mxu0 0.0
          %801 = vmatpush1.msra.mxu0 0.0
          %802 = vmatprep.subr.mxu0 0.0
          %803 = vmatpush1.msra.mxu0 0.0
          %804 = vmatprep.subr.mxu0 0.0
          %805 = vmatpush1.msra.mxu0 0.0
          %806 = vmatprep.subr.mxu0 0.0
          %807 = vmatpush1.msra.mxu0 0.0
          %808 = vmatprep.subr.mxu0 0.0
          %809 = vmatpush1.msra.mxu0 0.0
          %810 = vmatprep.subr.mxu0 0.0
          %811 = vmatpush1.msra.mxu0 0.0
          %812 = vmatprep.subr.mxu0 0.0
          %813 = vmatpush1.msra.mxu0 0.0
          %814 = vmatprep.subr.mxu0 0.0
          %815 = vmatpush1.msra.mxu0 0.0
          %816 = vmatprep.subr.mxu0 0.0
          %817 = vmatpush1.msra.mxu0 0.0
          %818 = vmatprep.subr.mxu0 0.0
          %819 = vmatpush1.msra.mxu0 0.0
          %820 = vmatprep.subr.mxu0 0.0
          %821 = vmatpush1.msra.mxu0 0.0
          %822 = vmatprep.subr.mxu0 0.0
          %823 = vmatpush1.msra.mxu0 0.0
          %824 = vmatprep.subr.mxu0 0.0
          %825 = vmatpush1.msra.mxu0 0.0
          %826 = vmatprep.subr.mxu0 0.0
          %827 = vmatpush1.msra.mxu0 0.0
          %828 = vmatprep.subr.mxu0 0.0
          %829 = vmatpush1.msra.mxu0 0.0
          %830 = vmatprep.subr.mxu0 0.0
          %831 = vmatpush1.msra.mxu0 0.0
          %832 = vmatprep.subr.mxu0 0.0
          %833 = vmatpush1.msra.mxu0 0.0
          %834 = vmatprep.subr.mxu0 0.0
          %835 = vmatpush1.msra.mxu0 0.0
          %836 = vmatprep.subr.mxu0 0.0
          %837 = vmatpush1.msra.mxu0 0.0
          %838 = vmatprep.subr.mxu0 0.0
          %839 = vmatpush1.msra.mxu0 0.0
          %840 = vmatprep.subr.mxu0 0.0
          %841 = vmatpush1.msra.mxu0 0.0
          %842 = vmatprep.subr.mxu0 0.0
          %843 = vmatpush1.msra.mxu0 0.0
          %844 = vmatprep.subr.mxu0 0.0
          %845 = vmatpush1.msra.mxu0 0.0
          %846 = vmatprep.subr.mxu0 0.0
          %847 = vmatpush1.msra.mxu0 0.0
          %848 = vmatprep.mubr.f32.mxu0 0.0
          %v849 = vand.u32 %v491, 4294901760
          %v850 = vsub.f32 %v491, %v849
          %851 = vmatmul.mubr.f32.gmra.mrb[0].mxu0 %v850
          %v852 = vpop.f32.mrb[0].mxu0
          %v853 = vadd.f32 %v737, %v852
          %v854 = vpop.f32.mrb[0].mxu0
          %855 = vmatprep.mubr.f32.mxu0 0.0
          %v856 = vand.u32 %v494, 4294901760
          %v857 = vsub.f32 %v494, %v856
          %858 = vmatmul.mubr.f32.gmra.mrb[0].mxu0 %v857
          %v859 = vpop.f32.mrb[0].mxu0
          %v860 = vadd.f32 %v743, %v859
          %v861 = vpop.f32.mrb[0].mxu0
          %862 = vmatprep.mubr.f32.mxu0 0.0
          %v863 = vand.u32 %v497, 4294901760
          %v864 = vsub.f32 %v497, %v863
          %865 = vmatmul.mubr.f32.gmra.mrb[0].mxu0 %v864
          %v866 = vpop.f32.mrb[0].mxu0
          %v867 = vadd.f32 %v749, %v866
          %v868 = vpop.f32.mrb[0].mxu0
          %869 = vmatprep.mubr.f32.mxu0 0.0
          %v870 = vand.u32 %v500, 4294901760
          %v871 = vsub.f32 %v500, %v870
          %872 = vmatmul.mubr.f32.gmra.mrb[0].mxu0 %v871
          %v873 = vpop.f32.mrb[0].mxu0
          %v874 = vadd.f32 %v755, %v873
          %v875 = vpop.f32.mrb[0].mxu0
          %876 = vmatprep.mubr.f32.mxu0 0.0
          %v877 = vand.u32 %v503, 4294901760
          %v878 = vsub.f32 %v503, %v877
          %879 = vmatmul.mubr.f32.gmra.mrb[0].mxu0 %v878
          %v880 = vpop.f32.mrb[0].mxu0
          %v881 = vadd.f32 %v761, %v880
          %v882 = vpop.f32.mrb[0].mxu0
          %883 = vmatprep.mubr.f32.mxu0 0.0
          %v884 = vand.u32 %v506, 4294901760
          %v885 = vsub.f32 %v506, %v884
          %886 = vmatmul.mubr.f32.gmra.mrb[0].mxu0 %v885
          %v887 = vpop.f32.mrb[0].mxu0
          %v888 = vadd.f32 %v767, %v887
          %v889 = vpop.f32.mrb[0].mxu0
          %890 = vmatprep.mubr.f32.mxu0 0.0
          %v891 = vand.u32 %v509, 4294901760
          %v892 = vsub.f32 %v509, %v891
          %893 = vmatmul.mubr.f32.gmra.mrb[0].mxu0 %v892
          %v894 = vpop.f32.mrb[0].mxu0
          %v895 = vadd.f32 %v773, %v894
          %v896 = vpop.f32.mrb[0].mxu0
          %897 = vmatprep.mubr.f32.mxu0 0.0
          %v898 = vand.u32 %v512, 4294901760
          %v899 = vsub.f32 %v512, %v898
          %900 = vmatmul.mubr.f32.gmra.mrb[0].mxu0 %v899
          %v901 = vpop.f32.mrb[0].mxu0
          %v902 = vadd.f32 %v779, %v901
          %v903 = vpop.f32.mrb[0].mxu0
          %904 = vdwg.mxu0
          %905 = vmatprep.subr.mxu0 0.0
          %v906 = vand.u32 %v516, 4294901760
          %907 = vmatpush1.msra.mxu0 %v906
          %908 = vmatprep.subr.mxu0 0.0
          %909 = vmatpush1.msra.mxu0 0.0
          %910 = vmatprep.subr.mxu0 0.0
          %911 = vmatpush1.msra.mxu0 0.0
          %912 = vmatprep.subr.mxu0 0.0
          %913 = vmatpush1.msra.mxu0 0.0
          %914 = vmatprep.subr.mxu0 0.0
          %915 = vmatpush1.msra.mxu0 0.0
          %916 = vmatprep.subr.mxu0 0.0
          %917 = vmatpush1.msra.mxu0 0.0
          %918 = vmatprep.subr.mxu0 0.0
          %919 = vmatpush1.msra.mxu0 0.0
          %920 = vmatprep.subr.mxu0 0.0
          %921 = vmatpush1.msra.mxu0 0.0
          %922 = vmatprep.subr.mxu0 0.0
          %923 = vmatpush1.msra.mxu0 0.0
          %924 = vmatprep.subr.mxu0 0.0
          %925 = vmatpush1.msra.mxu0 0.0
          %926 = vmatprep.subr.mxu0 0.0
          %927 = vmatpush1.msra.mxu0 0.0
          %928 = vmatprep.subr.mxu0 0.0
          %929 = vmatpush1.msra.mxu0 0.0
          %930 = vmatprep.subr.mxu0 0.0
          %931 = vmatpush1.msra.mxu0 0.0
          %932 = vmatprep.subr.mxu0 0.0
          %933 = vmatpush1.msra.mxu0 0.0
          %934 = vmatprep.subr.mxu0 0.0
          %935 = vmatpush1.msra.mxu0 0.0
          %936 = vmatprep.subr.mxu0 0.0
          %937 = vmatpush1.msra.mxu0 0.0
          %938 = vmatprep.subr.mxu0 0.0
          %939 = vmatpush1.msra.mxu0 0.0
          %940 = vmatprep.subr.mxu0 0.0
          %941 = vmatpush1.msra.mxu0 0.0
          %942 = vmatprep.subr.mxu0 0.0
          %943 = vmatpush1.msra.mxu0 0.0
          %944 = vmatprep.subr.mxu0 0.0
          %945 = vmatpush1.msra.mxu0 0.0
          %946 = vmatprep.subr.mxu0 0.0
          %947 = vmatpush1.msra.mxu0 0.0
          %948 = vmatprep.subr.mxu0 0.0
          %949 = vmatpush1.msra.mxu0 0.0
          %950 = vmatprep.subr.mxu0 0.0
          %951 = vmatpush1.msra.mxu0 0.0
          %952 = vmatprep.subr.mxu0 0.0
          %953 = vmatpush1.msra.mxu0 0.0
          %954 = vmatprep.subr.mxu0 0.0
          %955 = vmatpush1.msra.mxu0 0.0
          %956 = vmatprep.subr.mxu0 0.0
          %957 = vmatpush1.msra.mxu0 0.0
          %958 = vmatprep.subr.mxu0 0.0
          %959 = vmatpush1.msra.mxu0 0.0
          %960 = vmatprep.subr.mxu0 0.0
          %961 = vmatpush1.msra.mxu0 0.0
          %962 = vmatprep.subr.mxu0 0.0
          %963 = vmatpush1.msra.mxu0 0.0
          %964 = vmatprep.subr.mxu0 0.0
          %965 = vmatpush1.msra.mxu0 0.0
          %966 = vmatprep.subr.mxu0 0.0
          %967 = vmatpush1.msra.mxu0 0.0
          %968 = vmatprep.subr.mxu0 0.0
          %969 = vmatpush1.msra.mxu0 0.0
          %970 = vmatprep.mubr.f32.mxu0 0.0
          %v971 = vand.u32 %v491, 4294901760
          %v972 = vsub.f32 %v491, %v971
          %v973 = vand.u32 %v972, 4294901760
          %974 = vmatmul.mubr.f32.gmra.mrb[0].mxu0 %v973
          %v975 = vpop.f32.mrb[0].mxu0
          %v976 = vadd.f32 %v853, %v975
          %v977 = vpop.f32.mrb[0].mxu0
          %978 = vmatprep.mubr.f32.mxu0 0.0
          %v979 = vand.u32 %v494, 4294901760
          %v980 = vsub.f32 %v494, %v979
          %v981 = vand.u32 %v980, 4294901760
          %982 = vmatmul.mubr.f32.gmra.mrb[0].mxu0 %v981
          %v983 = vpop.f32.mrb[0].mxu0
          %v984 = vadd.f32 %v860, %v983
          %v985 = vpop.f32.mrb[0].mxu0
          %986 = vmatprep.mubr.f32.mxu0 0.0
          %v987 = vand.u32 %v497, 4294901760
          %v988 = vsub.f32 %v497, %v987
          %v989 = vand.u32 %v988, 4294901760
          %990 = vmatmul.mubr.f32.gmra.mrb[0].mxu0 %v989
          %v991 = vpop.f32.mrb[0].mxu0
          %v992 = vadd.f32 %v867, %v991
          %v993 = vpop.f32.mrb[0].mxu0
          %994 = vmatprep.mubr.f32.mxu0 0.0
          %v995 = vand.u32 %v500, 4294901760
          %v996 = vsub.f32 %v500, %v995
          %v997 = vand.u32 %v996, 4294901760
          %998 = vmatmul.mubr.f32.gmra.mrb[0].mxu0 %v997
          %v999 = vpop.f32.mrb[0].mxu0
          %v1000 = vadd.f32 %v874, %v999
          %v1001 = vpop.f32.mrb[0].mxu0
          %1002 = vmatprep.mubr.f32.mxu0 0.0
          %v1003 = vand.u32 %v503, 4294901760
          %v1004 = vsub.f32 %v503, %v1003
          %v1005 = vand.u32 %v1004, 4294901760
          %1006 = vmatmul.mubr.f32.gmra.mrb[0].mxu0 %v1005
          %v1007 = vpop.f32.mrb[0].mxu0
          %v1008 = vadd.f32 %v881, %v1007
          %v1009 = vpop.f32.mrb[0].mxu0
          %1010 = vmatprep.mubr.f32.mxu0 0.0
          %v1011 = vand.u32 %v506, 4294901760
          %v1012 = vsub.f32 %v506, %v1011
          %v1013 = vand.u32 %v1012, 4294901760
          %1014 = vmatmul.mubr.f32.gmra.mrb[0].mxu0 %v1013
          %v1015 = vpop.f32.mrb[0].mxu0
          %v1016 = vadd.f32 %v888, %v1015
          %v1017 = vpop.f32.mrb[0].mxu0
          %1018 = vmatprep.mubr.f32.mxu0 0.0
          %v1019 = vand.u32 %v509, 4294901760
          %v1020 = vsub.f32 %v509, %v1019
          %v1021 = vand.u32 %v1020, 4294901760
          %1022 = vmatmul.mubr.f32.gmra.mrb[0].mxu0 %v1021
          %v1023 = vpop.f32.mrb[0].mxu0
          %v1024 = vadd.f32 %v895, %v1023
          %v1025 = vpop.f32.mrb[0].mxu0
          %1026 = vmatprep.mubr.f32.mxu0 0.0
          %v1027 = vand.u32 %v512, 4294901760
          %v1028 = vsub.f32 %v512, %v1027
          %v1029 = vand.u32 %v1028, 4294901760
          %1030 = vmatmul.mubr.f32.gmra.mrb[0].mxu0 %v1029
          %v1031 = vpop.f32.mrb[0].mxu0
          %v1032 = vadd.f32 %v902, %v1031
          %v1033 = vpop.f32.mrb[0].mxu0
          %1034 = vdwg.mxu0
          %1035 = vmatprep.subr.mxu0 0.0
          %v1036 = vand.u32 %v516, 4294901760
          %v1037 = vsub.f32 %v516, %v1036
          %v1038 = vand.u32 %v1037, 4294901760
          %1039 = vmatpush1.msra.mxu0 %v1038
          %1040 = vmatprep.subr.mxu0 0.0
          %1041 = vmatpush1.msra.mxu0 0.0
          %1042 = vmatprep.subr.mxu0 0.0
          %1043 = vmatpush1.msra.mxu0 0.0
          %1044 = vmatprep.subr.mxu0 0.0
          %1045 = vmatpush1.msra.mxu0 0.0
          %1046 = vmatprep.subr.mxu0 0.0
          %1047 = vmatpush1.msra.mxu0 0.0
          %1048 = vmatprep.subr.mxu0 0.0
          %1049 = vmatpush1.msra.mxu0 0.0
          %1050 = vmatprep.subr.mxu0 0.0
          %1051 = vmatpush1.msra.mxu0 0.0
          %1052 = vmatprep.subr.mxu0 0.0
          %1053 = vmatpush1.msra.mxu0 0.0
          %1054 = vmatprep.subr.mxu0 0.0
          %1055 = vmatpush1.msra.mxu0 0.0
          %1056 = vmatprep.subr.mxu0 0.0
          %1057 = vmatpush1.msra.mxu0 0.0
          %1058 = vmatprep.subr.mxu0 0.0
          %1059 = vmatpush1.msra.mxu0 0.0
          %1060 = vmatprep.subr.mxu0 0.0
          %1061 = vmatpush1.msra.mxu0 0.0
          %1062 = vmatprep.subr.mxu0 0.0
          %1063 = vmatpush1.msra.mxu0 0.0
          %1064 = vmatprep.subr.mxu0 0.0
          %1065 = vmatpush1.msra.mxu0 0.0
          %1066 = vmatprep.subr.mxu0 0.0
          %1067 = vmatpush1.msra.mxu0 0.0
          %1068 = vmatprep.subr.mxu0 0.0
          %1069 = vmatpush1.msra.mxu0 0.0
          %1070 = vmatprep.subr.mxu0 0.0
          %1071 = vmatpush1.msra.mxu0 0.0
          %1072 = vmatprep.subr.mxu0 0.0
          %1073 = vmatpush1.msra.mxu0 0.0
          %1074 = vmatprep.subr.mxu0 0.0
          %1075 = vmatpush1.msra.mxu0 0.0
          %1076 = vmatprep.subr.mxu0 0.0
          %1077 = vmatpush1.msra.mxu0 0.0
          %1078 = vmatprep.subr.mxu0 0.0
          %1079 = vmatpush1.msra.mxu0 0.0
          %1080 = vmatprep.subr.mxu0 0.0
          %1081 = vmatpush1.msra.mxu0 0.0
          %1082 = vmatprep.subr.mxu0 0.0
          %1083 = vmatpush1.msra.mxu0 0.0
          %1084 = vmatprep.subr.mxu0 0.0
          %1085 = vmatpush1.msra.mxu0 0.0
          %1086 = vmatprep.subr.mxu0 0.0
          %1087 = vmatpush1.msra.mxu0 0.0
          %1088 = vmatprep.subr.mxu0 0.0
          %1089 = vmatpush1.msra.mxu0 0.0
          %1090 = vmatprep.subr.mxu0 0.0
          %1091 = vmatpush1.msra.mxu0 0.0
          %1092 = vmatprep.subr.mxu0 0.0
          %1093 = vmatpush1.msra.mxu0 0.0
          %1094 = vmatprep.subr.mxu0 0.0
          %1095 = vmatpush1.msra.mxu0 0.0
          %1096 = vmatprep.subr.mxu0 0.0
          %1097 = vmatpush1.msra.mxu0 0.0
          %1098 = vmatprep.subr.mxu0 0.0
          %1099 = vmatpush1.msra.mxu0 0.0
          %1100 = vmatprep.subr.mxu0 0.0
          %1101 = vmatpush1.msra.mxu0 0.0
          %1102 = vmatprep.mubr.f32.mxu0 0.0
          %v1103 = vand.u32 %v491, 4294901760
          %1104 = vmatmul.mubr.f32.gmra.mrb[0].mxu0 %v1103
          %v1105 = vpop.f32.mrb[0].mxu0
          %v1106 = vadd.f32 %v976, %v1105
          %v1107 = vpop.f32.mrb[0].mxu0
          %1108 = vmatprep.mubr.f32.mxu0 0.0
          %v1109 = vand.u32 %v494, 4294901760
          %1110 = vmatmul.mubr.f32.gmra.mrb[0].mxu0 %v1109
          %v1111 = vpop.f32.mrb[0].mxu0
          %v1112 = vadd.f32 %v984, %v1111
          %v1113 = vpop.f32.mrb[0].mxu0
          %1114 = vmatprep.mubr.f32.mxu0 0.0
          %v1115 = vand.u32 %v497, 4294901760
          %1116 = vmatmul.mubr.f32.gmra.mrb[0].mxu0 %v1115
          %v1117 = vpop.f32.mrb[0].mxu0
          %v1118 = vadd.f32 %v992, %v1117
          %v1119 = vpop.f32.mrb[0].mxu0
          %1120 = vmatprep.mubr.f32.mxu0 0.0
          %v1121 = vand.u32 %v500, 4294901760
          %1122 = vmatmul.mubr.f32.gmra.mrb[0].mxu0 %v1121
          %v1123 = vpop.f32.mrb[0].mxu0
          %v1124 = vadd.f32 %v1000, %v1123
          %v1125 = vpop.f32.mrb[0].mxu0
          %1126 = vmatprep.mubr.f32.mxu0 0.0
          %v1127 = vand.u32 %v503, 4294901760
          %1128 = vmatmul.mubr.f32.gmra.mrb[0].mxu0 %v1127
          %v1129 = vpop.f32.mrb[0].mxu0
          %v1130 = vadd.f32 %v1008, %v1129
          %v1131 = vpop.f32.mrb[0].mxu0
          %1132 = vmatprep.mubr.f32.mxu0 0.0
          %v1133 = vand.u32 %v506, 4294901760
          %1134 = vmatmul.mubr.f32.gmra.mrb[0].mxu0 %v1133
          %v1135 = vpop.f32.mrb[0].mxu0
          %v1136 = vadd.f32 %v1016, %v1135
          %v1137 = vpop.f32.mrb[0].mxu0
          %1138 = vmatprep.mubr.f32.mxu0 0.0
          %v1139 = vand.u32 %v509, 4294901760
          %1140 = vmatmul.mubr.f32.gmra.mrb[0].mxu0 %v1139
          %v1141 = vpop.f32.mrb[0].mxu0
          %v1142 = vadd.f32 %v1024, %v1141
          %v1143 = vpop.f32.mrb[0].mxu0
          %1144 = vmatprep.mubr.f32.mxu0 0.0
          %v1145 = vand.u32 %v512, 4294901760
          %1146 = vmatmul.mubr.f32.gmra.mrb[0].mxu0 %v1145
          %v1147 = vpop.f32.mrb[0].mxu0
          %v1148 = vadd.f32 %v1032, %v1147
          %v1149 = vpop.f32.mrb[0].mxu0
          %1150 = vdwg.mxu0
          %1151 = vmatprep.subr.mxu0 0.0
          %v1152 = vand.u32 %v516, 4294901760
          %1153 = vmatpush1.msra.mxu0 %v1152
          %1154 = vmatprep.subr.mxu0 0.0
          %1155 = vmatpush1.msra.mxu0 0.0
          %1156 = vmatprep.subr.mxu0 0.0
          %1157 = vmatpush1.msra.mxu0 0.0
          %1158 = vmatprep.subr.mxu0 0.0
          %1159 = vmatpush1.msra.mxu0 0.0
          %1160 = vmatprep.subr.mxu0 0.0
          %1161 = vmatpush1.msra.mxu0 0.0
          %1162 = vmatprep.subr.mxu0 0.0
          %1163 = vmatpush1.msra.mxu0 0.0
          %1164 = vmatprep.subr.mxu0 0.0
          %1165 = vmatpush1.msra.mxu0 0.0
          %1166 = vmatprep.subr.mxu0 0.0
          %1167 = vmatpush1.msra.mxu0 0.0
          %1168 = vmatprep.subr.mxu0 0.0
          %1169 = vmatpush1.msra.mxu0 0.0
          %1170 = vmatprep.subr.mxu0 0.0
          %1171 = vmatpush1.msra.mxu0 0.0
          %1172 = vmatprep.subr.mxu0 0.0
          %1173 = vmatpush1.msra.mxu0 0.0
          %1174 = vmatprep.subr.mxu0 0.0
          %1175 = vmatpush1.msra.mxu0 0.0
          %1176 = vmatprep.subr.mxu0 0.0
          %1177 = vmatpush1.msra.mxu0 0.0
          %1178 = vmatprep.subr.mxu0 0.0
          %1179 = vmatpush1.msra.mxu0 0.0
          %1180 = vmatprep.subr.mxu0 0.0
          %1181 = vmatpush1.msra.mxu0 0.0
          %1182 = vmatprep.subr.mxu0 0.0
          %1183 = vmatpush1.msra.mxu0 0.0
          %1184 = vmatprep.subr.mxu0 0.0
          %1185 = vmatpush1.msra.mxu0 0.0
          %1186 = vmatprep.subr.mxu0 0.0
          %1187 = vmatpush1.msra.mxu0 0.0
          %1188 = vmatprep.subr.mxu0 0.0
          %1189 = vmatpush1.msra.mxu0 0.0
          %1190 = vmatprep.subr.mxu0 0.0
          %1191 = vmatpush1.msra.mxu0 0.0
          %1192 = vmatprep.subr.mxu0 0.0
          %1193 = vmatpush1.msra.mxu0 0.0
          %1194 = vmatprep.subr.mxu0 0.0
          %1195 = vmatpush1.msra.mxu0 0.0
          %1196 = vmatprep.subr.mxu0 0.0
          %1197 = vmatpush1.msra.mxu0 0.0
          %1198 = vmatprep.subr.mxu0 0.0
          %1199 = vmatpush1.msra.mxu0 0.0
          %1200 = vmatprep.subr.mxu0 0.0
          %1201 = vmatpush1.msra.mxu0 0.0
          %1202 = vmatprep.subr.mxu0 0.0
          %1203 = vmatpush1.msra.mxu0 0.0
          %1204 = vmatprep.subr.mxu0 0.0
          %1205 = vmatpush1.msra.mxu0 0.0
          %1206 = vmatprep.subr.mxu0 0.0
          %1207 = vmatpush1.msra.mxu0 0.0
          %1208 = vmatprep.subr.mxu0 0.0
          %1209 = vmatpush1.msra.mxu0 0.0
          %1210 = vmatprep.subr.mxu0 0.0
          %1211 = vmatpush1.msra.mxu0 0.0
          %1212 = vmatprep.subr.mxu0 0.0
          %1213 = vmatpush1.msra.mxu0 0.0
          %1214 = vmatprep.subr.mxu0 0.0
          %1215 = vmatpush1.msra.mxu0 0.0
          %1216 = vmatprep.mubr.f32.mxu0 0.0
          %v1217 = vand.u32 %v491, 4294901760
          %1218 = vmatmul.mubr.f32.gmra.mrb[0].mxu0 %v1217
          %v1219 = vpop.f32.mrb[0].mxu0
          %v1220 = vadd.f32 %v1106, %v1219
          %v1221 = vpop.f32.mrb[0].mxu0
          %1222 = vmatprep.mubr.f32.mxu0 0.0
          %v1223 = vand.u32 %v494, 4294901760
          %1224 = vmatmul.mubr.f32.gmra.mrb[0].mxu0 %v1223
          %v1225 = vpop.f32.mrb[0].mxu0
          %v1226 = vadd.f32 %v1112, %v1225
          %v1227 = vpop.f32.mrb[0].mxu0
          %1228 = vmatprep.mubr.f32.mxu0 0.0
          %v1229 = vand.u32 %v497, 4294901760
          %1230 = vmatmul.mubr.f32.gmra.mrb[0].mxu0 %v1229
          %v1231 = vpop.f32.mrb[0].mxu0
          %v1232 = vadd.f32 %v1118, %v1231
          %v1233 = vpop.f32.mrb[0].mxu0
          %1234 = vmatprep.mubr.f32.mxu0 0.0
          %v1235 = vand.u32 %v500, 4294901760
          %1236 = vmatmul.mubr.f32.gmra.mrb[0].mxu0 %v1235
          %v1237 = vpop.f32.mrb[0].mxu0
          %v1238 = vadd.f32 %v1124, %v1237
          %v1239 = vpop.f32.mrb[0].mxu0
          %1240 = vmatprep.mubr.f32.mxu0 0.0
          %v1241 = vand.u32 %v503, 4294901760
          %1242 = vmatmul.mubr.f32.gmra.mrb[0].mxu0 %v1241
          %v1243 = vpop.f32.mrb[0].mxu0
          %v1244 = vadd.f32 %v1130, %v1243
          %v1245 = vpop.f32.mrb[0].mxu0
          %1246 = vmatprep.mubr.f32.mxu0 0.0
          %v1247 = vand.u32 %v506, 4294901760
          %1248 = vmatmul.mubr.f32.gmra.mrb[0].mxu0 %v1247
          %v1249 = vpop.f32.mrb[0].mxu0
          %v1250 = vadd.f32 %v1136, %v1249
          %v1251 = vpop.f32.mrb[0].mxu0
          %1252 = vmatprep.mubr.f32.mxu0 0.0
          %v1253 = vand.u32 %v509, 4294901760
          %1254 = vmatmul.mubr.f32.gmra.mrb[0].mxu0 %v1253
          %v1255 = vpop.f32.mrb[0].mxu0
          %v1256 = vadd.f32 %v1142, %v1255
          %v1257 = vpop.f32.mrb[0].mxu0
          %1258 = vmatprep.mubr.f32.mxu0 0.0
          %v1259 = vand.u32 %v512, 4294901760
          %1260 = vmatmul.mubr.f32.gmra.mrb[0].mxu0 %v1259
          %v1261 = vpop.f32.mrb[0].mxu0
          %v1262 = vadd.f32 %v1148, %v1261
          %v1263 = vpop.f32.mrb[0].mxu0
          %1264 = vdwg.mxu0
          %v1265 = vmul.f32 %v1220, 2.0
          %v1266 = vmul.f32 %v1226, 2.0
          %v1267 = vmul.f32 %v1232, 2.0
          %v1268 = vmul.f32 %v1238, 2.0
          %v1269 = vmul.f32 %v1244, 2.0
          %v1270 = vmul.f32 %v1250, 2.0
          %v1271 = vmul.f32 %v1256, 2.0
          %v1272 = vmul.f32 %v1262, 2.0
          %v1273 = vsub.f32 %v451, %v1265
          %v1274 = vsub.f32 %v454, %v1266
          %v1275 = vsub.f32 %v457, %v1267
          %v1276 = vsub.f32 %v460, %v1268
          %v1277 = vsub.f32 %v463, %v1269
          %v1278 = vsub.f32 %v466, %v1270
          %v1279 = vsub.f32 %v469, %v1271
          %v1280 = vsub.f32 %v472, %v1272
          %vm1281 = vcmask 523264
          %v1282 = vsel %vm1281, %v1273, inf
          %v1283 = vsel %vm1281, %v1274, inf
          %v1284 = vsel %vm1281, %v1275, inf
          %v1285 = vsel %vm1281, %v1276, inf
          %v1286 = vsel %vm1281, %v1277, inf
          %v1287 = vmin.f32 %v1282, %v1286
          %v1288 = vsel %vm1281, %v1278, inf
          %v1289 = vmin.f32 %v1283, %v1288
          %v1290 = vsel %vm1281, %v1279, inf
          %v1291 = vmin.f32 %v1284, %v1290
          %v1292 = vsel %vm1281, %v1280, inf
          %v1293 = vmin.f32 %v1285, %v1292
          %v1294 = vmin.f32 %v1287, %v1289
          %v1295 = vmin.f32 %v1291, %v1293
          %v1296 = vmin.f32 %v1294, %v1295
          %v1297 = vrot.slane %v1296, 4
          %v1298 = vmin.f32 %v1296, %v1297
          %v1299 = vrot.slane %v1298, 2
          %v1300 = vmin.f32 %v1298, %v1299
          %v1301 = vrot.slane %v1300, 1
          %v1302 = vmin.f32 %v1300, %v1301
          %v1303 = vmul.f32 %v489, %v489
          %vm1304 = vcmask 518144
          %v1305 = vsel %vm1304, %v1303, 0.0
          %v1306 = vrot.slane %v1305, 4
          %v1307 = vadd.f32 %v1305, %v1306
          %v1308 = vrot.slane %v1307, 2
          %v1309 = vadd.f32 %v1307, %v1308
          %v1310 = vrot.slane %v1309, 1
          %v1311 = vadd.f32 %v1309, %v1310
          %v1312 = vadd.f32 %v1302, %v1311
          %v1313 = vmax.f32 %v1312, 0.0
          %v1314 = vrsqrt.pop %v1313
          %v1315 = vmul.f32 %v1313, %v1314
          %vm1316 = vcmp.eq.f32.partialorder %v1313, inf
          %v1317 = vsel %vm1316, %v1313, %v1315
          %vm1318 = vcmp.eq.f32.partialorder %v1313, 0.0
          %v1319 = vand.u32 %v1313, 2147483648
          %v1320 = vsel %vm1318, %v1319, %v1317
          %vm1321 = vcmask 516096
          %v1322 = vsel %vm1321, %v1320, 0.0
          %1323 = vadd.xlane.f32.xlu0 %v1322
          %v1324 = vpop.xlane.xlu0 %1323
          %v1325 = vrot.slane %v1324, 4
          %v1326 = vadd.f32 %v1324, %v1325
          %v1327 = vrot.slane %v1326, 2
          %v1328 = vadd.f32 %v1326, %v1327
          %v1329 = vrot.slane %v1328, 1
          %v1330 = vadd.f32 %v1328, %v1329
          %s1331 = vtos %v1330
          %s1332 = smul.f32 %s1331, 0.015625
          %1333 = sst [smem:[%s477]] %s1332
        $region64: #{tpu_custom_call.1} parent=47 // pred_fallthru
          _
        %p1334 = pnand %p473, %p476
        %p1335 = pneg %p1334
        // Predicated region
        $region65: #{tpu_custom_call.1} parent=47 // pred_check
          _
        $region66: #{tpu_custom_call.1} parent=47 // pred_check_branch
          %1337 = sbr.rel (%p1334) target = $region68
        $region67: #{tpu_custom_call.1} parent=47 // pred_region
          %v1338 = vld [vmem:[%s404] sm:$0x7]
          %v1339 = vsub.f32 %v1338, %v431
          %v1340 = vmul.f32 %v1339, %v1339
          %vm1341 = vcmask 518144
          %v1342 = vsel %vm1341, %v1340, 0.0
          %v1343 = vrot.slane %v1342, 4
          %v1344 = vadd.f32 %v1342, %v1343
          %v1345 = vrot.slane %v1344, 2
          %v1346 = vadd.f32 %v1344, %v1345
          %v1347 = vrot.slane %v1346, 1
          %v1348 = vadd.f32 %v1346, %v1347
          %v1349 = vrsqrt.pop %v1348
          %v1350 = vmul.f32 %v1348, %v1349
          %vm1351 = vcmp.eq.f32.partialorder %v1348, inf
          %v1352 = vsel %vm1351, %v1348, %v1350
          %vm1353 = vcmp.eq.f32.partialorder %v1348, 0.0
          %v1354 = vand.u32 %v1348, 2147483648
          %v1355 = vsel %vm1353, %v1354, %v1352
          %vm1356 = vcmask 516096
          %v1357 = vsel %vm1356, %v1355, 0.0
          %1358 = vadd.xlane.f32.xlu0 %v1357
          %v1359 = vpop.xlane.xlu0 %1358
          %v1360 = vrot.slane %v1359, 4
          %v1361 = vadd.f32 %v1359, %v1360
          %v1362 = vrot.slane %v1361, 2
          %v1363 = vadd.f32 %v1361, %v1362
          %v1364 = vrot.slane %v1363, 1
          %v1365 = vadd.f32 %v1363, %v1364
          %s1366 = vtos %v1365
          %s1367 = smul.f32 %s1366, 0.015625
          %1368 = sst [smem:[%s479]] %s1367
        $region68: #{tpu_custom_call.1} parent=47 // pred_fallthru
          _
        %p1369 = pnand %p474, %p475
        %p1370 = pneg %p1369
        // Predicated region
        $region69: #{tpu_custom_call.1} parent=47 // pred_check
          _
        $region70: #{tpu_custom_call.1} parent=47 // pred_check_branch
          %1372 = sbr.rel (%p1369) target = $region72
        $region71: #{tpu_custom_call.1} parent=47 // pred_region
          %v1373 = vld [vmem:[%s410] sm:$0x7]
          %v1375 = vsel %vm448, %v432, 0
          %v1378 = vsel %vm448, %v433, 0
          %v1381 = vsel %vm448, %v434, 0
          %v1384 = vsel %vm448, %v435, 0
          %v1387 = vsel %vm448, %v436, 0
          %v1390 = vsel %vm448, %v437, 0
          %v1393 = vsel %vm448, %v438, 0
          %v1396 = vsel %vm448, %v439, 0
          %vm1398 = vcmask 1042432
          %v1400 = vsel %vm1398, %v1373, 0
          %1402 = vmatprep.subr.mxu0 0.0
          %v1403 = vand.u32 %v1400, 4294901760
          %1404 = vmatpush1.msra.mxu0 %v1403
          %1405 = vmatprep.subr.mxu0 0.0
          %1406 = vmatpush1.msra.mxu0 0.0
          %1407 = vmatprep.subr.mxu0 0.0
          %1408 = vmatpush1.msra.mxu0 0.0
          %1409 = vmatprep.subr.mxu0 0.0
          %1410 = vmatpush1.msra.mxu0 0.0
          %1411 = vmatprep.subr.mxu0 0.0
          %1412 = vmatpush1.msra.mxu0 0.0
          %1413 = vmatprep.subr.mxu0 0.0
          %1414 = vmatpush1.msra.mxu0 0.0
          %1415 = vmatprep.subr.mxu0 0.0
          %1416 = vmatpush1.msra.mxu0 0.0
          %1417 = vmatprep.subr.mxu0 0.0
          %1418 = vmatpush1.msra.mxu0 0.0
          %1419 = vmatprep.subr.mxu0 0.0
          %1420 = vmatpush1.msra.mxu0 0.0
          %1421 = vmatprep.subr.mxu0 0.0
          %1422 = vmatpush1.msra.mxu0 0.0
          %1423 = vmatprep.subr.mxu0 0.0
          %1424 = vmatpush1.msra.mxu0 0.0
          %1425 = vmatprep.subr.mxu0 0.0
          %1426 = vmatpush1.msra.mxu0 0.0
          %1427 = vmatprep.subr.mxu0 0.0
          %1428 = vmatpush1.msra.mxu0 0.0
          %1429 = vmatprep.subr.mxu0 0.0
          %1430 = vmatpush1.msra.mxu0 0.0
          %1431 = vmatprep.subr.mxu0 0.0
          %1432 = vmatpush1.msra.mxu0 0.0
          %1433 = vmatprep.subr.mxu0 0.0
          %1434 = vmatpush1.msra.mxu0 0.0
          %1435 = vmatprep.subr.mxu0 0.0
          %1436 = vmatpush1.msra.mxu0 0.0
          %1437 = vmatprep.subr.mxu0 0.0
          %1438 = vmatpush1.msra.mxu0 0.0
          %1439 = vmatprep.subr.mxu0 0.0
          %1440 = vmatpush1.msra.mxu0 0.0
          %1441 = vmatprep.subr.mxu0 0.0
          %1442 = vmatpush1.msra.mxu0 0.0
          %1443 = vmatprep.subr.mxu0 0.0
          %1444 = vmatpush1.msra.mxu0 0.0
          %1445 = vmatprep.subr.mxu0 0.0
          %1446 = vmatpush1.msra.mxu0 0.0
          %1447 = vmatprep.subr.mxu0 0.0
          %1448 = vmatpush1.msra.mxu0 0.0
          %1449 = vmatprep.subr.mxu0 0.0
          %1450 = vmatpush1.msra.mxu0 0.0
          %1451 = vmatprep.subr.mxu0 0.0
          %1452 = vmatpush1.msra.mxu0 0.0
          %1453 = vmatprep.subr.mxu0 0.0
          %1454 = vmatpush1.msra.mxu0 0.0
          %1455 = vmatprep.subr.mxu0 0.0
          %1456 = vmatpush1.msra.mxu0 0.0
          %1457 = vmatprep.subr.mxu0 0.0
          %1458 = vmatpush1.msra.mxu0 0.0
          %1459 = vmatprep.subr.mxu0 0.0
          %1460 = vmatpush1.msra.mxu0 0.0
          %1461 = vmatprep.subr.mxu0 0.0
          %1462 = vmatpush1.msra.mxu0 0.0
          %1463 = vmatprep.subr.mxu0 0.0
          %1464 = vmatpush1.msra.mxu0 0.0
          %1465 = vmatprep.subr.mxu0 0.0
          %1466 = vmatpush1.msra.mxu0 0.0
          %1467 = vmatprep.mubr.f32.mxu0 0.0
          %v1468 = vand.u32 %v1375, 4294901760
          %v1469 = vsub.f32 %v1375, %v1468
          %v1470 = vand.u32 %v1469, 4294901760
          %v1471 = vsub.f32 %v1469, %v1470
          %v1472 = vand.u32 %v1471, 4294901760
          %1473 = vmatmul.mubr.f32.gmra.mrb[0].mxu0 %v1472
          %v1474 = vpop.f32.mrb[0].mxu0
          %v1475 = vadd.f32 0.0, %v1474
          %v1476 = vpop.f32.mrb[0].mxu0
          %1477 = vmatprep.mubr.f32.mxu0 0.0
          %v1478 = vand.u32 %v1378, 4294901760
          %v1479 = vsub.f32 %v1378, %v1478
          %v1480 = vand.u32 %v1479, 4294901760
          %v1481 = vsub.f32 %v1479, %v1480
          %v1482 = vand.u32 %v1481, 4294901760
          %1483 = vmatmul.mubr.f32.gmra.mrb[0].mxu0 %v1482
          %v1484 = vpop.f32.mrb[0].mxu0
          %v1485 = vadd.f32 0.0, %v1484
          %v1486 = vpop.f32.mrb[0].mxu0
          %1487 = vmatprep.mubr.f32.mxu0 0.0
          %v1488 = vand.u32 %v1381, 4294901760
          %v1489 = vsub.f32 %v1381, %v1488
          %v1490 = vand.u32 %v1489, 4294901760
          %v1491 = vsub.f32 %v1489, %v1490
          %v1492 = vand.u32 %v1491, 4294901760
          %1493 = vmatmul.mubr.f32.gmra.mrb[0].mxu0 %v1492
          %v1494 = vpop.f32.mrb[0].mxu0
          %v1495 = vadd.f32 0.0, %v1494
          %v1496 = vpop.f32.mrb[0].mxu0
          %1497 = vmatprep.mubr.f32.mxu0 0.0
          %v1498 = vand.u32 %v1384, 4294901760
          %v1499 = vsub.f32 %v1384, %v1498
          %v1500 = vand.u32 %v1499, 4294901760
          %v1501 = vsub.f32 %v1499, %v1500
          %v1502 = vand.u32 %v1501, 4294901760
          %1503 = vmatmul.mubr.f32.gmra.mrb[0].mxu0 %v1502
          %v1504 = vpop.f32.mrb[0].mxu0
          %v1505 = vadd.f32 0.0, %v1504
          %v1506 = vpop.f32.mrb[0].mxu0
          %1507 = vmatprep.mubr.f32.mxu0 0.0
          %v1508 = vand.u32 %v1387, 4294901760
          %v1509 = vsub.f32 %v1387, %v1508
          %v1510 = vand.u32 %v1509, 4294901760
          %v1511 = vsub.f32 %v1509, %v1510
          %v1512 = vand.u32 %v1511, 4294901760
          %1513 = vmatmul.mubr.f32.gmra.mrb[0].mxu0 %v1512
          %v1514 = vpop.f32.mrb[0].mxu0
          %v1515 = vadd.f32 0.0, %v1514
          %v1516 = vpop.f32.mrb[0].mxu0
          %1517 = vmatprep.mubr.f32.mxu0 0.0
          %v1518 = vand.u32 %v1390, 4294901760
          %v1519 = vsub.f32 %v1390, %v1518
          %v1520 = vand.u32 %v1519, 4294901760
          %v1521 = vsub.f32 %v1519, %v1520
          %v1522 = vand.u32 %v1521, 4294901760
          %1523 = vmatmul.mubr.f32.gmra.mrb[0].mxu0 %v1522
          %v1524 = vpop.f32.mrb[0].mxu0
          %v1525 = vadd.f32 0.0, %v1524
          %v1526 = vpop.f32.mrb[0].mxu0
          %1527 = vmatprep.mubr.f32.mxu0 0.0
          %v1528 = vand.u32 %v1393, 4294901760
          %v1529 = vsub.f32 %v1393, %v1528
          %v1530 = vand.u32 %v1529, 4294901760
          %v1531 = vsub.f32 %v1529, %v1530
          %v1532 = vand.u32 %v1531, 4294901760
          %1533 = vmatmul.mubr.f32.gmra.mrb[0].mxu0 %v1532
          %v1534 = vpop.f32.mrb[0].mxu0
          %v1535 = vadd.f32 0.0, %v1534
          %v1536 = vpop.f32.mrb[0].mxu0
          %1537 = vmatprep.mubr.f32.mxu0 0.0
          %v1538 = vand.u32 %v1396, 4294901760
          %v1539 = vsub.f32 %v1396, %v1538
          %v1540 = vand.u32 %v1539, 4294901760
          %v1541 = vsub.f32 %v1539, %v1540
          %v1542 = vand.u32 %v1541, 4294901760
          %1543 = vmatmul.mubr.f32.gmra.mrb[0].mxu0 %v1542
          %v1544 = vpop.f32.mrb[0].mxu0
          %v1545 = vadd.f32 0.0, %v1544
          %v1546 = vpop.f32.mrb[0].mxu0
          %1547 = vdwg.mxu0
          %1548 = vmatprep.subr.mxu0 0.0
          %v1549 = vand.u32 %v1400, 4294901760
          %v1550 = vsub.f32 %v1400, %v1549
          %v1551 = vand.u32 %v1550, 4294901760
          %v1552 = vsub.f32 %v1550, %v1551
          %v1553 = vand.u32 %v1552, 4294901760
          %1554 = vmatpush1.msra.mxu0 %v1553
          %1555 = vmatprep.subr.mxu0 0.0
          %1556 = vmatpush1.msra.mxu0 0.0
          %1557 = vmatprep.subr.mxu0 0.0
          %1558 = vmatpush1.msra.mxu0 0.0
          %1559 = vmatprep.subr.mxu0 0.0
          %1560 = vmatpush1.msra.mxu0 0.0
          %1561 = vmatprep.subr.mxu0 0.0
          %1562 = vmatpush1.msra.mxu0 0.0
          %1563 = vmatprep.subr.mxu0 0.0
          %1564 = vmatpush1.msra.mxu0 0.0
          %1565 = vmatprep.subr.mxu0 0.0
          %1566 = vmatpush1.msra.mxu0 0.0
          %1567 = vmatprep.subr.mxu0 0.0
          %1568 = vmatpush1.msra.mxu0 0.0
          %1569 = vmatprep.subr.mxu0 0.0
          %1570 = vmatpush1.msra.mxu0 0.0
          %1571 = vmatprep.subr.mxu0 0.0
          %1572 = vmatpush1.msra.mxu0 0.0
          %1573 = vmatprep.subr.mxu0 0.0
          %1574 = vmatpush1.msra.mxu0 0.0
          %1575 = vmatprep.subr.mxu0 0.0
          %1576 = vmatpush1.msra.mxu0 0.0
          %1577 = vmatprep.subr.mxu0 0.0
          %1578 = vmatpush1.msra.mxu0 0.0
          %1579 = vmatprep.subr.mxu0 0.0
          %1580 = vmatpush1.msra.mxu0 0.0
          %1581 = vmatprep.subr.mxu0 0.0
          %1582 = vmatpush1.msra.mxu0 0.0
          %1583 = vmatprep.subr.mxu0 0.0
          %1584 = vmatpush1.msra.mxu0 0.0
          %1585 = vmatprep.subr.mxu0 0.0
          %1586 = vmatpush1.msra.mxu0 0.0
          %1587 = vmatprep.subr.mxu0 0.0
          %1588 = vmatpush1.msra.mxu0 0.0
          %1589 = vmatprep.subr.mxu0 0.0
          %1590 = vmatpush1.msra.mxu0 0.0
          %1591 = vmatprep.subr.mxu0 0.0
          %1592 = vmatpush1.msra.mxu0 0.0
          %1593 = vmatprep.subr.mxu0 0.0
          %1594 = vmatpush1.msra.mxu0 0.0
          %1595 = vmatprep.subr.mxu0 0.0
          %1596 = vmatpush1.msra.mxu0 0.0
          %1597 = vmatprep.subr.mxu0 0.0
          %1598 = vmatpush1.msra.mxu0 0.0
          %1599 = vmatprep.subr.mxu0 0.0
          %1600 = vmatpush1.msra.mxu0 0.0
          %1601 = vmatprep.subr.mxu0 0.0
          %1602 = vmatpush1.msra.mxu0 0.0
          %1603 = vmatprep.subr.mxu0 0.0
          %1604 = vmatpush1.msra.mxu0 0.0
          %1605 = vmatprep.subr.mxu0 0.0
          %1606 = vmatpush1.msra.mxu0 0.0
          %1607 = vmatprep.subr.mxu0 0.0
          %1608 = vmatpush1.msra.mxu0 0.0
          %1609 = vmatprep.subr.mxu0 0.0
          %1610 = vmatpush1.msra.mxu0 0.0
          %1611 = vmatprep.subr.mxu0 0.0
          %1612 = vmatpush1.msra.mxu0 0.0
          %1613 = vmatprep.subr.mxu0 0.0
          %1614 = vmatpush1.msra.mxu0 0.0
          %1615 = vmatprep.subr.mxu0 0.0
          %1616 = vmatpush1.msra.mxu0 0.0
          %1617 = vmatprep.mubr.f32.mxu0 0.0
          %v1618 = vand.u32 %v1375, 4294901760
          %1619 = vmatmul.mubr.f32.gmra.mrb[0].mxu0 %v1618
          %v1620 = vpop.f32.mrb[0].mxu0
          %v1621 = vadd.f32 %v1475, %v1620
          %v1622 = vpop.f32.mrb[0].mxu0
          %1623 = vmatprep.mubr.f32.mxu0 0.0
          %v1624 = vand.u32 %v1378, 4294901760
          %1625 = vmatmul.mubr.f32.gmra.mrb[0].mxu0 %v1624
          %v1626 = vpop.f32.mrb[0].mxu0
          %v1627 = vadd.f32 %v1485, %v1626
          %v1628 = vpop.f32.mrb[0].mxu0
          %1629 = vmatprep.mubr.f32.mxu0 0.0
          %v1630 = vand.u32 %v1381, 4294901760
          %1631 = vmatmul.mubr.f32.gmra.mrb[0].mxu0 %v1630
          %v1632 = vpop.f32.mrb[0].mxu0
          %v1633 = vadd.f32 %v1495, %v1632
          %v1634 = vpop.f32.mrb[0].mxu0
          %1635 = vmatprep.mubr.f32.mxu0 0.0
          %v1636 = vand.u32 %v1384, 4294901760
          %1637 = vmatmul.mubr.f32.gmra.mrb[0].mxu0 %v1636
          %v1638 = vpop.f32.mrb[0].mxu0
          %v1639 = vadd.f32 %v1505, %v1638
          %v1640 = vpop.f32.mrb[0].mxu0
          %1641 = vmatprep.mubr.f32.mxu0 0.0
          %v1642 = vand.u32 %v1387, 4294901760
          %1643 = vmatmul.mubr.f32.gmra.mrb[0].mxu0 %v1642
          %v1644 = vpop.f32.mrb[0].mxu0
          %v1645 = vadd.f32 %v1515, %v1644
          %v1646 = vpop.f32.mrb[0].mxu0
          %1647 = vmatprep.mubr.f32.mxu0 0.0
          %v1648 = vand.u32 %v1390, 4294901760
          %1649 = vmatmul.mubr.f32.gmra.mrb[0].mxu0 %v1648
          %v1650 = vpop.f32.mrb[0].mxu0
          %v1651 = vadd.f32 %v1525, %v1650
          %v1652 = vpop.f32.mrb[0].mxu0
          %1653 = vmatprep.mubr.f32.mxu0 0.0
          %v1654 = vand.u32 %v1393, 4294901760
          %1655 = vmatmul.mubr.f32.gmra.mrb[0].mxu0 %v1654
          %v1656 = vpop.f32.mrb[0].mxu0
          %v1657 = vadd.f32 %v1535, %v1656
          %v1658 = vpop.f32.mrb[0].mxu0
          %1659 = vmatprep.mubr.f32.mxu0 0.0
          %v1660 = vand.u32 %v1396, 4294901760
          %1661 = vmatmul.mubr.f32.gmra.mrb[0].mxu0 %v1660
          %v1662 = vpop.f32.mrb[0].mxu0
          %v1663 = vadd.f32 %v1545, %v1662
          %v1664 = vpop.f32.mrb[0].mxu0
          %1665 = vdwg.mxu0
          %1666 = vmatprep.subr.mxu0 0.0
          %v1667 = vand.u32 %v1400, 4294901760
          %v1668 = vsub.f32 %v1400, %v1667
          %1669 = vmatpush1.msra.mxu0 %v1668
          %1670 = vmatprep.subr.mxu0 0.0
          %1671 = vmatpush1.msra.mxu0 0.0
          %1672 = vmatprep.subr.mxu0 0.0
          %1673 = vmatpush1.msra.mxu0 0.0
          %1674 = vmatprep.subr.mxu0 0.0
          %1675 = vmatpush1.msra.mxu0 0.0
          %1676 = vmatprep.subr.mxu0 0.0
          %1677 = vmatpush1.msra.mxu0 0.0
          %1678 = vmatprep.subr.mxu0 0.0
          %1679 = vmatpush1.msra.mxu0 0.0
          %1680 = vmatprep.subr.mxu0 0.0
          %1681 = vmatpush1.msra.mxu0 0.0
          %1682 = vmatprep.subr.mxu0 0.0
          %1683 = vmatpush1.msra.mxu0 0.0
          %1684 = vmatprep.subr.mxu0 0.0
          %1685 = vmatpush1.msra.mxu0 0.0
          %1686 = vmatprep.subr.mxu0 0.0
          %1687 = vmatpush1.msra.mxu0 0.0
          %1688 = vmatprep.subr.mxu0 0.0
          %1689 = vmatpush1.msra.mxu0 0.0
          %1690 = vmatprep.subr.mxu0 0.0
          %1691 = vmatpush1.msra.mxu0 0.0
          %1692 = vmatprep.subr.mxu0 0.0
          %1693 = vmatpush1.msra.mxu0 0.0
          %1694 = vmatprep.subr.mxu0 0.0
          %1695 = vmatpush1.msra.mxu0 0.0
          %1696 = vmatprep.subr.mxu0 0.0
          %1697 = vmatpush1.msra.mxu0 0.0
          %1698 = vmatprep.subr.mxu0 0.0
          %1699 = vmatpush1.msra.mxu0 0.0
          %1700 = vmatprep.subr.mxu0 0.0
          %1701 = vmatpush1.msra.mxu0 0.0
          %1702 = vmatprep.subr.mxu0 0.0
          %1703 = vmatpush1.msra.mxu0 0.0
          %1704 = vmatprep.subr.mxu0 0.0
          %1705 = vmatpush1.msra.mxu0 0.0
          %1706 = vmatprep.subr.mxu0 0.0
          %1707 = vmatpush1.msra.mxu0 0.0
          %1708 = vmatprep.subr.mxu0 0.0
          %1709 = vmatpush1.msra.mxu0 0.0
          %1710 = vmatprep.subr.mxu0 0.0
          %1711 = vmatpush1.msra.mxu0 0.0
          %1712 = vmatprep.subr.mxu0 0.0
          %1713 = vmatpush1.msra.mxu0 0.0
          %1714 = vmatprep.subr.mxu0 0.0
          %1715 = vmatpush1.msra.mxu0 0.0
          %1716 = vmatprep.subr.mxu0 0.0
          %1717 = vmatpush1.msra.mxu0 0.0
          %1718 = vmatprep.subr.mxu0 0.0
          %1719 = vmatpush1.msra.mxu0 0.0
          %1720 = vmatprep.subr.mxu0 0.0
          %1721 = vmatpush1.msra.mxu0 0.0
          %1722 = vmatprep.subr.mxu0 0.0
          %1723 = vmatpush1.msra.mxu0 0.0
          %1724 = vmatprep.subr.mxu0 0.0
          %1725 = vmatpush1.msra.mxu0 0.0
          %1726 = vmatprep.subr.mxu0 0.0
          %1727 = vmatpush1.msra.mxu0 0.0
          %1728 = vmatprep.subr.mxu0 0.0
          %1729 = vmatpush1.msra.mxu0 0.0
          %1730 = vmatprep.subr.mxu0 0.0
          %1731 = vmatpush1.msra.mxu0 0.0
          %1732 = vmatprep.mubr.f32.mxu0 0.0
          %v1733 = vand.u32 %v1375, 4294901760
          %v1734 = vsub.f32 %v1375, %v1733
          %1735 = vmatmul.mubr.f32.gmra.mrb[0].mxu0 %v1734
          %v1736 = vpop.f32.mrb[0].mxu0
          %v1737 = vadd.f32 %v1621, %v1736
          %v1738 = vpop.f32.mrb[0].mxu0
          %1739 = vmatprep.mubr.f32.mxu0 0.0
          %v1740 = vand.u32 %v1378, 4294901760
          %v1741 = vsub.f32 %v1378, %v1740
          %1742 = vmatmul.mubr.f32.gmra.mrb[0].mxu0 %v1741
          %v1743 = vpop.f32.mrb[0].mxu0
          %v1744 = vadd.f32 %v1627, %v1743
          %v1745 = vpop.f32.mrb[0].mxu0
          %1746 = vmatprep.mubr.f32.mxu0 0.0
          %v1747 = vand.u32 %v1381, 4294901760
          %v1748 = vsub.f32 %v1381, %v1747
          %1749 = vmatmul.mubr.f32.gmra.mrb[0].mxu0 %v1748
          %v1750 = vpop.f32.mrb[0].mxu0
          %v1751 = vadd.f32 %v1633, %v1750
          %v1752 = vpop.f32.mrb[0].mxu0
          %1753 = vmatprep.mubr.f32.mxu0 0.0
          %v1754 = vand.u32 %v1384, 4294901760
          %v1755 = vsub.f32 %v1384, %v1754
          %1756 = vmatmul.mubr.f32.gmra.mrb[0].mxu0 %v1755
          %v1757 = vpop.f32.mrb[0].mxu0
          %v1758 = vadd.f32 %v1639, %v1757
          %v1759 = vpop.f32.mrb[0].mxu0
          %1760 = vmatprep.mubr.f32.mxu0 0.0
          %v1761 = vand.u32 %v1387, 4294901760
          %v1762 = vsub.f32 %v1387, %v1761
          %1763 = vmatmul.mubr.f32.gmra.mrb[0].mxu0 %v1762
          %v1764 = vpop.f32.mrb[0].mxu0
          %v1765 = vadd.f32 %v1645, %v1764
          %v1766 = vpop.f32.mrb[0].mxu0
          %1767 = vmatprep.mubr.f32.mxu0 0.0
          %v1768 = vand.u32 %v1390, 4294901760
          %v1769 = vsub.f32 %v1390, %v1768
          %1770 = vmatmul.mubr.f32.gmra.mrb[0].mxu0 %v1769
          %v1771 = vpop.f32.mrb[0].mxu0
          %v1772 = vadd.f32 %v1651, %v1771
          %v1773 = vpop.f32.mrb[0].mxu0
          %1774 = vmatprep.mubr.f32.mxu0 0.0
          %v1775 = vand.u32 %v1393, 4294901760
          %v1776 = vsub.f32 %v1393, %v1775
          %1777 = vmatmul.mubr.f32.gmra.mrb[0].mxu0 %v1776
          %v1778 = vpop.f32.mrb[0].mxu0
          %v1779 = vadd.f32 %v1657, %v1778
          %v1780 = vpop.f32.mrb[0].mxu0
          %1781 = vmatprep.mubr.f32.mxu0 0.0
          %v1782 = vand.u32 %v1396, 4294901760
          %v1783 = vsub.f32 %v1396, %v1782
          %1784 = vmatmul.mubr.f32.gmra.mrb[0].mxu0 %v1783
          %v1785 = vpop.f32.mrb[0].mxu0
          %v1786 = vadd.f32 %v1663, %v1785
          %v1787 = vpop.f32.mrb[0].mxu0
          %1788 = vdwg.mxu0
          %1789 = vmatprep.subr.mxu0 0.0
          %v1790 = vand.u32 %v1400, 4294901760
          %1791 = vmatpush1.msra.mxu0 %v1790
          %1792 = vmatprep.subr.mxu0 0.0
          %1793 = vmatpush1.msra.mxu0 0.0
          %1794 = vmatprep.subr.mxu0 0.0
          %1795 = vmatpush1.msra.mxu0 0.0
          %1796 = vmatprep.subr.mxu0 0.0
          %1797 = vmatpush1.msra.mxu0 0.0
          %1798 = vmatprep.subr.mxu0 0.0
          %1799 = vmatpush1.msra.mxu0 0.0
          %1800 = vmatprep.subr.mxu0 0.0
          %1801 = vmatpush1.msra.mxu0 0.0
          %1802 = vmatprep.subr.mxu0 0.0
          %1803 = vmatpush1.msra.mxu0 0.0
          %1804 = vmatprep.subr.mxu0 0.0
          %1805 = vmatpush1.msra.mxu0 0.0
          %1806 = vmatprep.subr.mxu0 0.0
          %1807 = vmatpush1.msra.mxu0 0.0
          %1808 = vmatprep.subr.mxu0 0.0
          %1809 = vmatpush1.msra.mxu0 0.0
          %1810 = vmatprep.subr.mxu0 0.0
          %1811 = vmatpush1.msra.mxu0 0.0
          %1812 = vmatprep.subr.mxu0 0.0
          %1813 = vmatpush1.msra.mxu0 0.0
          %1814 = vmatprep.subr.mxu0 0.0
          %1815 = vmatpush1.msra.mxu0 0.0
          %1816 = vmatprep.subr.mxu0 0.0
          %1817 = vmatpush1.msra.mxu0 0.0
          %1818 = vmatprep.subr.mxu0 0.0
          %1819 = vmatpush1.msra.mxu0 0.0
          %1820 = vmatprep.subr.mxu0 0.0
          %1821 = vmatpush1.msra.mxu0 0.0
          %1822 = vmatprep.subr.mxu0 0.0
          %1823 = vmatpush1.msra.mxu0 0.0
          %1824 = vmatprep.subr.mxu0 0.0
          %1825 = vmatpush1.msra.mxu0 0.0
          %1826 = vmatprep.subr.mxu0 0.0
          %1827 = vmatpush1.msra.mxu0 0.0
          %1828 = vmatprep.subr.mxu0 0.0
          %1829 = vmatpush1.msra.mxu0 0.0
          %1830 = vmatprep.subr.mxu0 0.0
          %1831 = vmatpush1.msra.mxu0 0.0
          %1832 = vmatprep.subr.mxu0 0.0
          %1833 = vmatpush1.msra.mxu0 0.0
          %1834 = vmatprep.subr.mxu0 0.0
          %1835 = vmatpush1.msra.mxu0 0.0
          %1836 = vmatprep.subr.mxu0 0.0
          %1837 = vmatpush1.msra.mxu0 0.0
          %1838 = vmatprep.subr.mxu0 0.0
          %1839 = vmatpush1.msra.mxu0 0.0
          %1840 = vmatprep.subr.mxu0 0.0
          %1841 = vmatpush1.msra.mxu0 0.0
          %1842 = vmatprep.subr.mxu0 0.0
          %1843 = vmatpush1.msra.mxu0 0.0
          %1844 = vmatprep.subr.mxu0 0.0
          %1845 = vmatpush1.msra.mxu0 0.0
          %1846 = vmatprep.subr.mxu0 0.0
          %1847 = vmatpush1.msra.mxu0 0.0
          %1848 = vmatprep.subr.mxu0 0.0
          %1849 = vmatpush1.msra.mxu0 0.0
          %1850 = vmatprep.subr.mxu0 0.0
          %1851 = vmatpush1.msra.mxu0 0.0
          %1852 = vmatprep.subr.mxu0 0.0
          %1853 = vmatpush1.msra.mxu0 0.0
          %1854 = vmatprep.mubr.f32.mxu0 0.0
          %v1855 = vand.u32 %v1375, 4294901760
          %v1856 = vsub.f32 %v1375, %v1855
          %v1857 = vand.u32 %v1856, 4294901760
          %1858 = vmatmul.mubr.f32.gmra.mrb[0].mxu0 %v1857
          %v1859 = vpop.f32.mrb[0].mxu0
          %v1860 = vadd.f32 %v1737, %v1859
          %v1861 = vpop.f32.mrb[0].mxu0
          %1862 = vmatprep.mubr.f32.mxu0 0.0
          %v1863 = vand.u32 %v1378, 4294901760
          %v1864 = vsub.f32 %v1378, %v1863
          %v1865 = vand.u32 %v1864, 4294901760
          %1866 = vmatmul.mubr.f32.gmra.mrb[0].mxu0 %v1865
          %v1867 = vpop.f32.mrb[0].mxu0
          %v1868 = vadd.f32 %v1744, %v1867
          %v1869 = vpop.f32.mrb[0].mxu0
          %1870 = vmatprep.mubr.f32.mxu0 0.0
          %v1871 = vand.u32 %v1381, 4294901760
          %v1872 = vsub.f32 %v1381, %v1871
          %v1873 = vand.u32 %v1872, 4294901760
          %1874 = vmatmul.mubr.f32.gmra.mrb[0].mxu0 %v1873
          %v1875 = vpop.f32.mrb[0].mxu0
          %v1876 = vadd.f32 %v1751, %v1875
          %v1877 = vpop.f32.mrb[0].mxu0
          %1878 = vmatprep.mubr.f32.mxu0 0.0
          %v1879 = vand.u32 %v1384, 4294901760
          %v1880 = vsub.f32 %v1384, %v1879
          %v1881 = vand.u32 %v1880, 4294901760
          %1882 = vmatmul.mubr.f32.gmra.mrb[0].mxu0 %v1881
          %v1883 = vpop.f32.mrb[0].mxu0
          %v1884 = vadd.f32 %v1758, %v1883
          %v1885 = vpop.f32.mrb[0].mxu0
          %1886 = vmatprep.mubr.f32.mxu0 0.0
          %v1887 = vand.u32 %v1387, 4294901760
          %v1888 = vsub.f32 %v1387, %v1887
          %v1889 = vand.u32 %v1888, 4294901760
          %1890 = vmatmul.mubr.f32.gmra.mrb[0].mxu0 %v1889
          %v1891 = vpop.f32.mrb[0].mxu0
          %v1892 = vadd.f32 %v1765, %v1891
          %v1893 = vpop.f32.mrb[0].mxu0
          %1894 = vmatprep.mubr.f32.mxu0 0.0
          %v1895 = vand.u32 %v1390, 4294901760
          %v1896 = vsub.f32 %v1390, %v1895
          %v1897 = vand.u32 %v1896, 4294901760
          %1898 = vmatmul.mubr.f32.gmra.mrb[0].mxu0 %v1897
          %v1899 = vpop.f32.mrb[0].mxu0
          %v1900 = vadd.f32 %v1772, %v1899
          %v1901 = vpop.f32.mrb[0].mxu0
          %1902 = vmatprep.mubr.f32.mxu0 0.0
          %v1903 = vand.u32 %v1393, 4294901760
          %v1904 = vsub.f32 %v1393, %v1903
          %v1905 = vand.u32 %v1904, 4294901760
          %1906 = vmatmul.mubr.f32.gmra.mrb[0].mxu0 %v1905
          %v1907 = vpop.f32.mrb[0].mxu0
          %v1908 = vadd.f32 %v1779, %v1907
          %v1909 = vpop.f32.mrb[0].mxu0
          %1910 = vmatprep.mubr.f32.mxu0 0.0
          %v1911 = vand.u32 %v1396, 4294901760
          %v1912 = vsub.f32 %v1396, %v1911
          %v1913 = vand.u32 %v1912, 4294901760
          %1914 = vmatmul.mubr.f32.gmra.mrb[0].mxu0 %v1913
          %v1915 = vpop.f32.mrb[0].mxu0
          %v1916 = vadd.f32 %v1786, %v1915
          %v1917 = vpop.f32.mrb[0].mxu0
          %1918 = vdwg.mxu0
          %1919 = vmatprep.subr.mxu0 0.0
          %v1920 = vand.u32 %v1400, 4294901760
          %v1921 = vsub.f32 %v1400, %v1920
          %v1922 = vand.u32 %v1921, 4294901760
          %1923 = vmatpush1.msra.mxu0 %v1922
          %1924 = vmatprep.subr.mxu0 0.0
          %1925 = vmatpush1.msra.mxu0 0.0
          %1926 = vmatprep.subr.mxu0 0.0
          %1927 = vmatpush1.msra.mxu0 0.0
          %1928 = vmatprep.subr.mxu0 0.0
          %1929 = vmatpush1.msra.mxu0 0.0
          %1930 = vmatprep.subr.mxu0 0.0
          %1931 = vmatpush1.msra.mxu0 0.0
          %1932 = vmatprep.subr.mxu0 0.0
          %1933 = vmatpush1.msra.mxu0 0.0
          %1934 = vmatprep.subr.mxu0 0.0
          %1935 = vmatpush1.msra.mxu0 0.0
          %1936 = vmatprep.subr.mxu0 0.0
          %1937 = vmatpush1.msra.mxu0 0.0
          %1938 = vmatprep.subr.mxu0 0.0
          %1939 = vmatpush1.msra.mxu0 0.0
          %1940 = vmatprep.subr.mxu0 0.0
          %1941 = vmatpush1.msra.mxu0 0.0
          %1942 = vmatprep.subr.mxu0 0.0
          %1943 = vmatpush1.msra.mxu0 0.0
          %1944 = vmatprep.subr.mxu0 0.0
          %1945 = vmatpush1.msra.mxu0 0.0
          %1946 = vmatprep.subr.mxu0 0.0
          %1947 = vmatpush1.msra.mxu0 0.0
          %1948 = vmatprep.subr.mxu0 0.0
          %1949 = vmatpush1.msra.mxu0 0.0
          %1950 = vmatprep.subr.mxu0 0.0
          %1951 = vmatpush1.msra.mxu0 0.0
          %1952 = vmatprep.subr.mxu0 0.0
          %1953 = vmatpush1.msra.mxu0 0.0
          %1954 = vmatprep.subr.mxu0 0.0
          %1955 = vmatpush1.msra.mxu0 0.0
          %1956 = vmatprep.subr.mxu0 0.0
          %1957 = vmatpush1.msra.mxu0 0.0
          %1958 = vmatprep.subr.mxu0 0.0
          %1959 = vmatpush1.msra.mxu0 0.0
          %1960 = vmatprep.subr.mxu0 0.0
          %1961 = vmatpush1.msra.mxu0 0.0
          %1962 = vmatprep.subr.mxu0 0.0
          %1963 = vmatpush1.msra.mxu0 0.0
          %1964 = vmatprep.subr.mxu0 0.0
          %1965 = vmatpush1.msra.mxu0 0.0
          %1966 = vmatprep.subr.mxu0 0.0
          %1967 = vmatpush1.msra.mxu0 0.0
          %1968 = vmatprep.subr.mxu0 0.0
          %1969 = vmatpush1.msra.mxu0 0.0
          %1970 = vmatprep.subr.mxu0 0.0
          %1971 = vmatpush1.msra.mxu0 0.0
          %1972 = vmatprep.subr.mxu0 0.0
          %1973 = vmatpush1.msra.mxu0 0.0
          %1974 = vmatprep.subr.mxu0 0.0
          %1975 = vmatpush1.msra.mxu0 0.0
          %1976 = vmatprep.subr.mxu0 0.0
          %1977 = vmatpush1.msra.mxu0 0.0
          %1978 = vmatprep.subr.mxu0 0.0
          %1979 = vmatpush1.msra.mxu0 0.0
          %1980 = vmatprep.subr.mxu0 0.0
          %1981 = vmatpush1.msra.mxu0 0.0
          %1982 = vmatprep.subr.mxu0 0.0
          %1983 = vmatpush1.msra.mxu0 0.0
          %1984 = vmatprep.subr.mxu0 0.0
          %1985 = vmatpush1.msra.mxu0 0.0
          %1986 = vmatprep.mubr.f32.mxu0 0.0
          %v1987 = vand.u32 %v1375, 4294901760
          %1988 = vmatmul.mubr.f32.gmra.mrb[0].mxu0 %v1987
          %v1989 = vpop.f32.mrb[0].mxu0
          %v1990 = vadd.f32 %v1860, %v1989
          %v1991 = vpop.f32.mrb[0].mxu0
          %1992 = vmatprep.mubr.f32.mxu0 0.0
          %v1993 = vand.u32 %v1378, 4294901760
          %1994 = vmatmul.mubr.f32.gmra.mrb[0].mxu0 %v1993
          %v1995 = vpop.f32.mrb[0].mxu0
          %v1996 = vadd.f32 %v1868, %v1995
          %v1997 = vpop.f32.mrb[0].mxu0
          %1998 = vmatprep.mubr.f32.mxu0 0.0
          %v1999 = vand.u32 %v1381, 4294901760
          %2000 = vmatmul.mubr.f32.gmra.mrb[0].mxu0 %v1999
          %v2001 = vpop.f32.mrb[0].mxu0
          %v2002 = vadd.f32 %v1876, %v2001
          %v2003 = vpop.f32.mrb[0].mxu0
          %2004 = vmatprep.mubr.f32.mxu0 0.0
          %v2005 = vand.u32 %v1384, 4294901760
          %2006 = vmatmul.mubr.f32.gmra.mrb[0].mxu0 %v2005
          %v2007 = vpop.f32.mrb[0].mxu0
          %v2008 = vadd.f32 %v1884, %v2007
          %v2009 = vpop.f32.mrb[0].mxu0
          %2010 = vmatprep.mubr.f32.mxu0 0.0
          %v2011 = vand.u32 %v1387, 4294901760
          %2012 = vmatmul.mubr.f32.gmra.mrb[0].mxu0 %v2011
          %v2013 = vpop.f32.mrb[0].mxu0
          %v2014 = vadd.f32 %v1892, %v2013
          %v2015 = vpop.f32.mrb[0].mxu0
          %2016 = vmatprep.mubr.f32.mxu0 0.0
          %v2017 = vand.u32 %v1390, 4294901760
          %2018 = vmatmul.mubr.f32.gmra.mrb[0].mxu0 %v2017
          %v2019 = vpop.f32.mrb[0].mxu0
          %v2020 = vadd.f32 %v1900, %v2019
          %v2021 = vpop.f32.mrb[0].mxu0
          %2022 = vmatprep.mubr.f32.mxu0 0.0
          %v2023 = vand.u32 %v1393, 4294901760
          %2024 = vmatmul.mubr.f32.gmra.mrb[0].mxu0 %v2023
          %v2025 = vpop.f32.mrb[0].mxu0
          %v2026 = vadd.f32 %v1908, %v2025
          %v2027 = vpop.f32.mrb[0].mxu0
          %2028 = vmatprep.mubr.f32.mxu0 0.0
          %v2029 = vand.u32 %v1396, 4294901760
          %2030 = vmatmul.mubr.f32.gmra.mrb[0].mxu0 %v2029
          %v2031 = vpop.f32.mrb[0].mxu0
          %v2032 = vadd.f32 %v1916, %v2031
          %v2033 = vpop.f32.mrb[0].mxu0
          %2034 = vdwg.mxu0
          %2035 = vmatprep.subr.mxu0 0.0
          %v2036 = vand.u32 %v1400, 4294901760
          %2037 = vmatpush1.msra.mxu0 %v2036
          %2038 = vmatprep.subr.mxu0 0.0
          %2039 = vmatpush1.msra.mxu0 0.0
          %2040 = vmatprep.subr.mxu0 0.0
          %2041 = vmatpush1.msra.mxu0 0.0
          %2042 = vmatprep.subr.mxu0 0.0
          %2043 = vmatpush1.msra.mxu0 0.0
          %2044 = vmatprep.subr.mxu0 0.0
          %2045 = vmatpush1.msra.mxu0 0.0
          %2046 = vmatprep.subr.mxu0 0.0
          %2047 = vmatpush1.msra.mxu0 0.0
          %2048 = vmatprep.subr.mxu0 0.0
          %2049 = vmatpush1.msra.mxu0 0.0
          %2050 = vmatprep.subr.mxu0 0.0
          %2051 = vmatpush1.msra.mxu0 0.0
          %2052 = vmatprep.subr.mxu0 0.0
          %2053 = vmatpush1.msra.mxu0 0.0
          %2054 = vmatprep.subr.mxu0 0.0
          %2055 = vmatpush1.msra.mxu0 0.0
          %2056 = vmatprep.subr.mxu0 0.0
          %2057 = vmatpush1.msra.mxu0 0.0
          %2058 = vmatprep.subr.mxu0 0.0
          %2059 = vmatpush1.msra.mxu0 0.0
          %2060 = vmatprep.subr.mxu0 0.0
          %2061 = vmatpush1.msra.mxu0 0.0
          %2062 = vmatprep.subr.mxu0 0.0
          %2063 = vmatpush1.msra.mxu0 0.0
          %2064 = vmatprep.subr.mxu0 0.0
          %2065 = vmatpush1.msra.mxu0 0.0
          %2066 = vmatprep.subr.mxu0 0.0
          %2067 = vmatpush1.msra.mxu0 0.0
          %2068 = vmatprep.subr.mxu0 0.0
          %2069 = vmatpush1.msra.mxu0 0.0
          %2070 = vmatprep.subr.mxu0 0.0
          %2071 = vmatpush1.msra.mxu0 0.0
          %2072 = vmatprep.subr.mxu0 0.0
          %2073 = vmatpush1.msra.mxu0 0.0
          %2074 = vmatprep.subr.mxu0 0.0
          %2075 = vmatpush1.msra.mxu0 0.0
          %2076 = vmatprep.subr.mxu0 0.0
          %2077 = vmatpush1.msra.mxu0 0.0
          %2078 = vmatprep.subr.mxu0 0.0
          %2079 = vmatpush1.msra.mxu0 0.0
          %2080 = vmatprep.subr.mxu0 0.0
          %2081 = vmatpush1.msra.mxu0 0.0
          %2082 = vmatprep.subr.mxu0 0.0
          %2083 = vmatpush1.msra.mxu0 0.0
          %2084 = vmatprep.subr.mxu0 0.0
          %2085 = vmatpush1.msra.mxu0 0.0
          %2086 = vmatprep.subr.mxu0 0.0
          %2087 = vmatpush1.msra.mxu0 0.0
          %2088 = vmatprep.subr.mxu0 0.0
          %2089 = vmatpush1.msra.mxu0 0.0
          %2090 = vmatprep.subr.mxu0 0.0
          %2091 = vmatpush1.msra.mxu0 0.0
          %2092 = vmatprep.subr.mxu0 0.0
          %2093 = vmatpush1.msra.mxu0 0.0
          %2094 = vmatprep.subr.mxu0 0.0
          %2095 = vmatpush1.msra.mxu0 0.0
          %2096 = vmatprep.subr.mxu0 0.0
          %2097 = vmatpush1.msra.mxu0 0.0
          %2098 = vmatprep.subr.mxu0 0.0
          %2099 = vmatpush1.msra.mxu0 0.0
          %2100 = vmatprep.mubr.f32.mxu0 0.0
          %v2101 = vand.u32 %v1375, 4294901760
          %2102 = vmatmul.mubr.f32.gmra.mrb[0].mxu0 %v2101
          %v2103 = vpop.f32.mrb[0].mxu0
          %v2104 = vadd.f32 %v1990, %v2103
          %v2105 = vpop.f32.mrb[0].mxu0
          %2106 = vmatprep.mubr.f32.mxu0 0.0
          %v2107 = vand.u32 %v1378, 4294901760
          %2108 = vmatmul.mubr.f32.gmra.mrb[0].mxu0 %v2107
          %v2109 = vpop.f32.mrb[0].mxu0
          %v2110 = vadd.f32 %v1996, %v2109
          %v2111 = vpop.f32.mrb[0].mxu0
          %2112 = vmatprep.mubr.f32.mxu0 0.0
          %v2113 = vand.u32 %v1381, 4294901760
          %2114 = vmatmul.mubr.f32.gmra.mrb[0].mxu0 %v2113
          %v2115 = vpop.f32.mrb[0].mxu0
          %v2116 = vadd.f32 %v2002, %v2115
          %v2117 = vpop.f32.mrb[0].mxu0
          %2118 = vmatprep.mubr.f32.mxu0 0.0
          %v2119 = vand.u32 %v1384, 4294901760
          %2120 = vmatmul.mubr.f32.gmra.mrb[0].mxu0 %v2119
          %v2121 = vpop.f32.mrb[0].mxu0
          %v2122 = vadd.f32 %v2008, %v2121
          %v2123 = vpop.f32.mrb[0].mxu0
          %2124 = vmatprep.mubr.f32.mxu0 0.0
          %v2125 = vand.u32 %v1387, 4294901760
          %2126 = vmatmul.mubr.f32.gmra.mrb[0].mxu0 %v2125
          %v2127 = vpop.f32.mrb[0].mxu0
          %v2128 = vadd.f32 %v2014, %v2127
          %v2129 = vpop.f32.mrb[0].mxu0
          %2130 = vmatprep.mubr.f32.mxu0 0.0
          %v2131 = vand.u32 %v1390, 4294901760
          %2132 = vmatmul.mubr.f32.gmra.mrb[0].mxu0 %v2131
          %v2133 = vpop.f32.mrb[0].mxu0
          %v2134 = vadd.f32 %v2020, %v2133
          %v2135 = vpop.f32.mrb[0].mxu0
          %2136 = vmatprep.mubr.f32.mxu0 0.0
          %v2137 = vand.u32 %v1393, 4294901760
          %2138 = vmatmul.mubr.f32.gmra.mrb[0].mxu0 %v2137
          %v2139 = vpop.f32.mrb[0].mxu0
          %v2140 = vadd.f32 %v2026, %v2139
          %v2141 = vpop.f32.mrb[0].mxu0
          %2142 = vmatprep.mubr.f32.mxu0 0.0
          %v2143 = vand.u32 %v1396, 4294901760
          %2144 = vmatmul.mubr.f32.gmra.mrb[0].mxu0 %v2143
          %v2145 = vpop.f32.mrb[0].mxu0
          %v2146 = vadd.f32 %v2032, %v2145
          %v2147 = vpop.f32.mrb[0].mxu0
          %2148 = vdwg.mxu0
          %v2149 = vmul.f32 %v2104, 2.0
          %v2150 = vmul.f32 %v2110, 2.0
          %v2151 = vmul.f32 %v2116, 2.0
          %v2152 = vmul.f32 %v2122, 2.0
          %v2153 = vmul.f32 %v2128, 2.0
          %v2154 = vmul.f32 %v2134, 2.0
          %v2155 = vmul.f32 %v2140, 2.0
          %v2156 = vmul.f32 %v2146, 2.0
          %v2157 = vsub.f32 %v451, %v2149
          %v2158 = vsub.f32 %v454, %v2150
          %v2159 = vsub.f32 %v457, %v2151
          %v2160 = vsub.f32 %v460, %v2152
          %v2161 = vsub.f32 %v463, %v2153
          %v2162 = vsub.f32 %v466, %v2154
          %v2163 = vsub.f32 %v469, %v2155
          %v2164 = vsub.f32 %v472, %v2156
          %vm2165 = vcmask 523264
          %v2166 = vsel %vm2165, %v2157, inf
          %v2167 = vsel %vm2165, %v2158, inf
          %v2168 = vsel %vm2165, %v2159, inf
          %v2169 = vsel %vm2165, %v2160, inf
          %v2170 = vsel %vm2165, %v2161, inf
          %v2171 = vmin.f32 %v2166, %v2170
          %v2172 = vsel %vm2165, %v2162, inf
          %v2173 = vmin.f32 %v2167, %v2172
          %v2174 = vsel %vm2165, %v2163, inf
          %v2175 = vmin.f32 %v2168, %v2174
          %v2176 = vsel %vm2165, %v2164, inf
          %v2177 = vmin.f32 %v2169, %v2176
          %v2178 = vmin.f32 %v2171, %v2173
          %v2179 = vmin.f32 %v2175, %v2177
          %v2180 = vmin.f32 %v2178, %v2179
          %v2181 = vrot.slane %v2180, 4
          %v2182 = vmin.f32 %v2180, %v2181
          %v2183 = vrot.slane %v2182, 2
          %v2184 = vmin.f32 %v2182, %v2183
          %v2185 = vrot.slane %v2184, 1
          %v2186 = vmin.f32 %v2184, %v2185
          %v2187 = vmul.f32 %v1373, %v1373
          %vm2188 = vcmask 518144
          %v2189 = vsel %vm2188, %v2187, 0.0
          %v2190 = vrot.slane %v2189, 4
          %v2191 = vadd.f32 %v2189, %v2190
          %v2192 = vrot.slane %v2191, 2
          %v2193 = vadd.f32 %v2191, %v2192
          %v2194 = vrot.slane %v2193, 1
          %v2195 = vadd.f32 %v2193, %v2194
          %v2196 = vadd.f32 %v2186, %v2195
          %v2197 = vmax.f32 %v2196, 0.0
          %v2198 = vrsqrt.pop %v2197
          %v2199 = vmul.f32 %v2197, %v2198
          %vm2200 = vcmp.eq.f32.partialorder %v2197, inf
          %v2201 = vsel %vm2200, %v2197, %v2199
          %vm2202 = vcmp.eq.f32.partialorder %v2197, 0.0
          %v2203 = vand.u32 %v2197, 2147483648
          %v2204 = vsel %vm2202, %v2203, %v2201
          %vm2205 = vcmask 516096
          %v2206 = vsel %vm2205, %v2204, 0.0
          %2207 = vadd.xlane.f32.xlu0 %v2206
          %v2208 = vpop.xlane.xlu0 %2207
          %v2209 = vrot.slane %v2208, 4
          %v2210 = vadd.f32 %v2208, %v2209
          %v2211 = vrot.slane %v2210, 2
          %v2212 = vadd.f32 %v2210, %v2211
          %v2213 = vrot.slane %v2212, 1
          %v2214 = vadd.f32 %v2212, %v2213
          %s2215 = vtos %v2214
          %s2216 = smul.f32 %s2215, 0.015625
          %2217 = sst [smem:[%s481]] %s2216
        $region72: #{tpu_custom_call.1} parent=47 // pred_fallthru
          _
        %p2218 = pnand %p474, %p476
        %p2219 = pneg %p2218
        // Predicated region
        $region73: #{tpu_custom_call.1} parent=47 // pred_check
          _
        $region74: #{tpu_custom_call.1} parent=47 // pred_check_branch
          %2221 = sbr.rel (%p2218) target = $region76
        $region75: #{tpu_custom_call.1} parent=47 // pred_region
          %v2222 = vld [vmem:[%s410] sm:$0x7]
          %v2223 = vsub.f32 %v2222, %v431
          %v2224 = vmul.f32 %v2223, %v2223
          %vm2225 = vcmask 518144
          %v2226 = vsel %vm2225, %v2224, 0.0
          %v2227 = vrot.slane %v2226, 4
          %v2228 = vadd.f32 %v2226, %v2227
          %v2229 = vrot.slane %v2228, 2
          %v2230 = vadd.f32 %v2228, %v2229
          %v2231 = vrot.slane %v2230, 1
          %v2232 = vadd.f32 %v2230, %v2231
          %v2233 = vrsqrt.pop %v2232
          %v2234 = vmul.f32 %v2232, %v2233
          %vm2235 = vcmp.eq.f32.partialorder %v2232, inf
          %v2236 = vsel %vm2235, %v2232, %v2234
          %vm2237 = vcmp.eq.f32.partialorder %v2232, 0.0
          %v2238 = vand.u32 %v2232, 2147483648
          %v2239 = vsel %vm2237, %v2238, %v2236
          %vm2240 = vcmask 516096
          %v2241 = vsel %vm2240, %v2239, 0.0
          %2242 = vadd.xlane.f32.xlu0 %v2241
          %v2243 = vpop.xlane.xlu0 %2242
          %v2244 = vrot.slane %v2243, 4
          %v2245 = vadd.f32 %v2243, %v2244
          %v2246 = vrot.slane %v2245, 2
          %v2247 = vadd.f32 %v2245, %v2246
          %v2248 = vrot.slane %v2247, 1
          %v2249 = vadd.f32 %v2247, %v2248
          %s2250 = vtos %v2249
          %s2251 = smul.f32 %s2250, 0.015625
          %2252 = sst [smem:[%s483]] %s2251
        $region76: #{tpu_custom_call.1} parent=47 // pred_fallthru
          _
        %s2253 = sld [smem:[#allocation2]]
        %s2254 = smul.f32 %s430, %s2253
        %s2255 = ssub.f32 1.0, %s430
        %s2256 = sld [smem:[#allocation2 + $0x1]]
        %s2257 = smul.f32 %s2255, %s2256
        %s2258 = sadd.f32 %s2254, %s2257
        %s2259 = smul.f32 %s428, %s2258
        %s2260 = sld [smem:[#allocation2 + $0x2]]
        %s2261 = smul.f32 %s430, %s2260
        %s2262 = sld [smem:[#allocation2 + $0x3]]
        %s2263 = smul.f32 %s2255, %s2262
        %s2264 = sadd.f32 %s2261, %s2263
        %s2265 = smul.f32 %s429, %s2264
        %v2266 = vstv %s2259
        %v2267 = vadd.f32 %v2266, 0.0
        %2268 = vst [vmem:[%s392] sm:$0xff] %v2267
        %v2269 = vstv %s2265
        %v2270 = vadd.f32 %v2269, 0.0
        %2271 = vst [vmem:[%s399] sm:$0xff] %v2270
        %s2272 = sadd.s32 %s427, 1
        %s2273 = sld [smem:[#allocation3 + %s2272]]
        %s2274 = sld [smem:[#allocation6 + %s2272]]
        %s2275 = sld [smem:[#allocation8 + %s2272]]
        %s2276 = scalar_lea.vmem %s423, 4
        %v2277 = vld [vmem:[%s2276] sm:$0x7]
        %s2278 = scalar_lea.vmem %s417, 64
        %v2279 = vld [vmem:[%s2278] sm:$0xff]
        %v2280 = vld [vmem:[%s2278 + $0x8] sm:$0xff]
        %v2281 = vld [vmem:[%s2278 + $0x10] sm:$0xff]
        %v2282 = vld [vmem:[%s2278 + $0x18] sm:$0xff]
        %v2283 = vld [vmem:[%s2278 + $0x20] sm:$0xff]
        %v2284 = vld [vmem:[%s2278 + $0x28] sm:$0xff]
        %v2285 = vld [vmem:[%s2278 + $0x30] sm:$0xff]
        %v2286 = vld [vmem:[%s2278 + $0x38] sm:$0xff]
        %v2287 = vmul.f32 %v2279, %v2279
        %v2288 = vmul.f32 %v2280, %v2280
        %v2289 = vmul.f32 %v2281, %v2281
        %v2290 = vmul.f32 %v2282, %v2282
        %v2291 = vmul.f32 %v2283, %v2283
        %v2292 = vmul.f32 %v2284, %v2284
        %v2293 = vmul.f32 %v2285, %v2285
        %v2294 = vmul.f32 %v2286, %v2286
        %v2295 = vsel %vm448, %v2287, 0.0
        %2296 = vadd.xlane.f32.xlu0 %v2295
        %v2297 = vpop.xlane.xlu0 %2296
        %v2298 = vsel %vm448, %v2288, 0.0
        %2299 = vadd.xlane.f32.xlu0 %v2298
        %v2300 = vpop.xlane.xlu0 %2299
        %v2301 = vsel %vm448, %v2289, 0.0
        %2302 = vadd.xlane.f32.xlu0 %v2301
        %v2303 = vpop.xlane.xlu0 %2302
        %v2304 = vsel %vm448, %v2290, 0.0
        %2305 = vadd.xlane.f32.xlu0 %v2304
        %v2306 = vpop.xlane.xlu0 %2305
        %v2307 = vsel %vm448, %v2291, 0.0
        %2308 = vadd.xlane.f32.xlu0 %v2307
        %v2309 = vpop.xlane.xlu0 %2308
        %v2310 = vsel %vm448, %v2292, 0.0
        %2311 = vadd.xlane.f32.xlu0 %v2310
        %v2312 = vpop.xlane.xlu0 %2311
        %v2313 = vsel %vm448, %v2293, 0.0
        %2314 = vadd.xlane.f32.xlu0 %v2313
        %v2315 = vpop.xlane.xlu0 %2314
        %v2316 = vsel %vm448, %v2294, 0.0
        %2317 = vadd.xlane.f32.xlu0 %v2316
        %v2318 = vpop.xlane.xlu0 %2317
        %p2319 = scmp.ne.f32.partialorder %s2273, 0.0
        %p2320 = scmp.ne.f32.partialorder %s2274, 0.0
        %p2321 = scmp.ne.f32.partialorder %s2275, 0.0
        %p2322 = scmp.ne.f32.partialorder %s2275, 1.0
        %2323 = sst [smem:[%s477]] 0.0
        %2324 = sst [smem:[%s479]] 0.0
        %2325 = sst [smem:[%s481]] 0.0
        %2326 = sst [smem:[%s483]] 0.0
        %p2327 = pnand %p2319, %p2321
        %p2328 = pneg %p2327
        // Predicated region
        $region77: #{tpu_custom_call.1} parent=47 // pred_check
          _
        $region78: #{tpu_custom_call.1} parent=47 // pred_check_branch
          %2330 = sbr.rel (%p2327) target = $region80
        $region79: #{tpu_custom_call.1} parent=47 // pred_region
          %s2331 = scalar_lea.vmem %s404, 4
          %v2332 = vld [vmem:[%s2331] sm:$0x7]
          %v2334 = vsel %vm448, %v2279, 0
          %v2337 = vsel %vm448, %v2280, 0
          %v2340 = vsel %vm448, %v2281, 0
          %v2343 = vsel %vm448, %v2282, 0
          %v2346 = vsel %vm448, %v2283, 0
          %v2349 = vsel %vm448, %v2284, 0
          %v2352 = vsel %vm448, %v2285, 0
          %v2355 = vsel %vm448, %v2286, 0
          %vm2357 = vcmask 1042432
          %v2359 = vsel %vm2357, %v2332, 0
          %2361 = vmatprep.subr.mxu0 0.0
          %v2362 = vand.u32 %v2359, 4294901760
          %2363 = vmatpush1.msra.mxu0 %v2362
          %2364 = vmatprep.subr.mxu0 0.0
          %2365 = vmatpush1.msra.mxu0 0.0
          %2366 = vmatprep.subr.mxu0 0.0
          %2367 = vmatpush1.msra.mxu0 0.0
          %2368 = vmatprep.subr.mxu0 0.0
          %2369 = vmatpush1.msra.mxu0 0.0
          %2370 = vmatprep.subr.mxu0 0.0
          %2371 = vmatpush1.msra.mxu0 0.0
          %2372 = vmatprep.subr.mxu0 0.0
          %2373 = vmatpush1.msra.mxu0 0.0
          %2374 = vmatprep.subr.mxu0 0.0
          %2375 = vmatpush1.msra.mxu0 0.0
          %2376 = vmatprep.subr.mxu0 0.0
          %2377 = vmatpush1.msra.mxu0 0.0
          %2378 = vmatprep.subr.mxu0 0.0
          %2379 = vmatpush1.msra.mxu0 0.0
          %2380 = vmatprep.subr.mxu0 0.0
          %2381 = vmatpush1.msra.mxu0 0.0
          %2382 = vmatprep.subr.mxu0 0.0
          %2383 = vmatpush1.msra.mxu0 0.0
          %2384 = vmatprep.subr.mxu0 0.0
          %2385 = vmatpush1.msra.mxu0 0.0
          %2386 = vmatprep.subr.mxu0 0.0
          %2387 = vmatpush1.msra.mxu0 0.0
          %2388 = vmatprep.subr.mxu0 0.0
          %2389 = vmatpush1.msra.mxu0 0.0
          %2390 = vmatprep.subr.mxu0 0.0
          %2391 = vmatpush1.msra.mxu0 0.0
          %2392 = vmatprep.subr.mxu0 0.0
          %2393 = vmatpush1.msra.mxu0 0.0
          %2394 = vmatprep.subr.mxu0 0.0
          %2395 = vmatpush1.msra.mxu0 0.0
          %2396 = vmatprep.subr.mxu0 0.0
          %2397 = vmatpush1.msra.mxu0 0.0
          %2398 = vmatprep.subr.mxu0 0.0
          %2399 = vmatpush1.msra.mxu0 0.0
          %2400 = vmatprep.subr.mxu0 0.0
          %2401 = vmatpush1.msra.mxu0 0.0
          %2402 = vmatprep.subr.mxu0 0.0
          %2403 = vmatpush1.msra.mxu0 0.0
          %2404 = vmatprep.subr.mxu0 0.0
          %2405 = vmatpush1.msra.mxu0 0.0
          %2406 = vmatprep.subr.mxu0 0.0
          %2407 = vmatpush1.msra.mxu0 0.0
          %2408 = vmatprep.subr.mxu0 0.0
          %2409 = vmatpush1.msra.mxu0 0.0
          %2410 = vmatprep.subr.mxu0 0.0
          %2411 = vmatpush1.msra.mxu0 0.0
          %2412 = vmatprep.subr.mxu0 0.0
          %2413 = vmatpush1.msra.mxu0 0.0
          %2414 = vmatprep.subr.mxu0 0.0
          %2415 = vmatpush1.msra.mxu0 0.0
          %2416 = vmatprep.subr.mxu0 0.0
          %2417 = vmatpush1.msra.mxu0 0.0
          %2418 = vmatprep.subr.mxu0 0.0
          %2419 = vmatpush1.msra.mxu0 0.0
          %2420 = vmatprep.subr.mxu0 0.0
          %2421 = vmatpush1.msra.mxu0 0.0
          %2422 = vmatprep.subr.mxu0 0.0
          %2423 = vmatpush1.msra.mxu0 0.0
          %2424 = vmatprep.subr.mxu0 0.0
          %2425 = vmatpush1.msra.mxu0 0.0
          %2426 = vmatprep.mubr.f32.mxu0 0.0
          %v2427 = vand.u32 %v2334, 4294901760
          %v2428 = vsub.f32 %v2334, %v2427
          %v2429 = vand.u32 %v2428, 4294901760
          %v2430 = vsub.f32 %v2428, %v2429
          %v2431 = vand.u32 %v2430, 4294901760
          %2432 = vmatmul.mubr.f32.gmra.mrb[0].mxu0 %v2431
          %v2433 = vpop.f32.mrb[0].mxu0
          %v2434 = vadd.f32 0.0, %v2433
          %v2435 = vpop.f32.mrb[0].mxu0
          %2436 = vmatprep.mubr.f32.mxu0 0.0
          %v2437 = vand.u32 %v2337, 4294901760
          %v2438 = vsub.f32 %v2337, %v2437
          %v2439 = vand.u32 %v2438, 4294901760
          %v2440 = vsub.f32 %v2438, %v2439
          %v2441 = vand.u32 %v2440, 4294901760
          %2442 = vmatmul.mubr.f32.gmra.mrb[0].mxu0 %v2441
          %v2443 = vpop.f32.mrb[0].mxu0
          %v2444 = vadd.f32 0.0, %v2443
          %v2445 = vpop.f32.mrb[0].mxu0
          %2446 = vmatprep.mubr.f32.mxu0 0.0
          %v2447 = vand.u32 %v2340, 4294901760
          %v2448 = vsub.f32 %v2340, %v2447
          %v2449 = vand.u32 %v2448, 4294901760
          %v2450 = vsub.f32 %v2448, %v2449
          %v2451 = vand.u32 %v2450, 4294901760
          %2452 = vmatmul.mubr.f32.gmra.mrb[0].mxu0 %v2451
          %v2453 = vpop.f32.mrb[0].mxu0
          %v2454 = vadd.f32 0.0, %v2453
          %v2455 = vpop.f32.mrb[0].mxu0
          %2456 = vmatprep.mubr.f32.mxu0 0.0
          %v2457 = vand.u32 %v2343, 4294901760
          %v2458 = vsub.f32 %v2343, %v2457
          %v2459 = vand.u32 %v2458, 4294901760
          %v2460 = vsub.f32 %v2458, %v2459
          %v2461 = vand.u32 %v2460, 4294901760
          %2462 = vmatmul.mubr.f32.gmra.mrb[0].mxu0 %v2461
          %v2463 = vpop.f32.mrb[0].mxu0
          %v2464 = vadd.f32 0.0, %v2463
          %v2465 = vpop.f32.mrb[0].mxu0
          %2466 = vmatprep.mubr.f32.mxu0 0.0
          %v2467 = vand.u32 %v2346, 4294901760
          %v2468 = vsub.f32 %v2346, %v2467
          %v2469 = vand.u32 %v2468, 4294901760
          %v2470 = vsub.f32 %v2468, %v2469
          %v2471 = vand.u32 %v2470, 4294901760
          %2472 = vmatmul.mubr.f32.gmra.mrb[0].mxu0 %v2471
          %v2473 = vpop.f32.mrb[0].mxu0
          %v2474 = vadd.f32 0.0, %v2473
          %v2475 = vpop.f32.mrb[0].mxu0
          %2476 = vmatprep.mubr.f32.mxu0 0.0
          %v2477 = vand.u32 %v2349, 4294901760
          %v2478 = vsub.f32 %v2349, %v2477
          %v2479 = vand.u32 %v2478, 4294901760
          %v2480 = vsub.f32 %v2478, %v2479
          %v2481 = vand.u32 %v2480, 4294901760
          %2482 = vmatmul.mubr.f32.gmra.mrb[0].mxu0 %v2481
          %v2483 = vpop.f32.mrb[0].mxu0
          %v2484 = vadd.f32 0.0, %v2483
          %v2485 = vpop.f32.mrb[0].mxu0
          %2486 = vmatprep.mubr.f32.mxu0 0.0
          %v2487 = vand.u32 %v2352, 4294901760
          %v2488 = vsub.f32 %v2352, %v2487
          %v2489 = vand.u32 %v2488, 4294901760
          %v2490 = vsub.f32 %v2488, %v2489
          %v2491 = vand.u32 %v2490, 4294901760
          %2492 = vmatmul.mubr.f32.gmra.mrb[0].mxu0 %v2491
          %v2493 = vpop.f32.mrb[0].mxu0
          %v2494 = vadd.f32 0.0, %v2493
          %v2495 = vpop.f32.mrb[0].mxu0
          %2496 = vmatprep.mubr.f32.mxu0 0.0
          %v2497 = vand.u32 %v2355, 4294901760
          %v2498 = vsub.f32 %v2355, %v2497
          %v2499 = vand.u32 %v2498, 4294901760
          %v2500 = vsub.f32 %v2498, %v2499
          %v2501 = vand.u32 %v2500, 4294901760
          %2502 = vmatmul.mubr.f32.gmra.mrb[0].mxu0 %v2501
          %v2503 = vpop.f32.mrb[0].mxu0
          %v2504 = vadd.f32 0.0, %v2503
          %v2505 = vpop.f32.mrb[0].mxu0
          %2506 = vdwg.mxu0
          %2507 = vmatprep.subr.mxu0 0.0
          %v2508 = vand.u32 %v2359, 4294901760
          %v2509 = vsub.f32 %v2359, %v2508
          %v2510 = vand.u32 %v2509, 4294901760
          %v2511 = vsub.f32 %v2509, %v2510
          %v2512 = vand.u32 %v2511, 4294901760
          %2513 = vmatpush1.msra.mxu0 %v2512
          %2514 = vmatprep.subr.mxu0 0.0
          %2515 = vmatpush1.msra.mxu0 0.0
          %2516 = vmatprep.subr.mxu0 0.0
          %2517 = vmatpush1.msra.mxu0 0.0
          %2518 = vmatprep.subr.mxu0 0.0
          %2519 = vmatpush1.msra.mxu0 0.0
          %2520 = vmatprep.subr.mxu0 0.0
          %2521 = vmatpush1.msra.mxu0 0.0
          %2522 = vmatprep.subr.mxu0 0.0
          %2523 = vmatpush1.msra.mxu0 0.0
          %2524 = vmatprep.subr.mxu0 0.0
          %2525 = vmatpush1.msra.mxu0 0.0
          %2526 = vmatprep.subr.mxu0 0.0
          %2527 = vmatpush1.msra.mxu0 0.0
          %2528 = vmatprep.subr.mxu0 0.0
          %2529 = vmatpush1.msra.mxu0 0.0
          %2530 = vmatprep.subr.mxu0 0.0
          %2531 = vmatpush1.msra.mxu0 0.0
          %2532 = vmatprep.subr.mxu0 0.0
          %2533 = vmatpush1.msra.mxu0 0.0
          %2534 = vmatprep.subr.mxu0 0.0
          %2535 = vmatpush1.msra.mxu0 0.0
          %2536 = vmatprep.subr.mxu0 0.0
          %2537 = vmatpush1.msra.mxu0 0.0
          %2538 = vmatprep.subr.mxu0 0.0
          %2539 = vmatpush1.msra.mxu0 0.0
          %2540 = vmatprep.subr.mxu0 0.0
          %2541 = vmatpush1.msra.mxu0 0.0
          %2542 = vmatprep.subr.mxu0 0.0
          %2543 = vmatpush1.msra.mxu0 0.0
          %2544 = vmatprep.subr.mxu0 0.0
          %2545 = vmatpush1.msra.mxu0 0.0
          %2546 = vmatprep.subr.mxu0 0.0
          %2547 = vmatpush1.msra.mxu0 0.0
          %2548 = vmatprep.subr.mxu0 0.0
          %2549 = vmatpush1.msra.mxu0 0.0
          %2550 = vmatprep.subr.mxu0 0.0
          %2551 = vmatpush1.msra.mxu0 0.0
          %2552 = vmatprep.subr.mxu0 0.0
          %2553 = vmatpush1.msra.mxu0 0.0
          %2554 = vmatprep.subr.mxu0 0.0
          %2555 = vmatpush1.msra.mxu0 0.0
          %2556 = vmatprep.subr.mxu0 0.0
          %2557 = vmatpush1.msra.mxu0 0.0
          %2558 = vmatprep.subr.mxu0 0.0
          %2559 = vmatpush1.msra.mxu0 0.0
          %2560 = vmatprep.subr.mxu0 0.0
          %2561 = vmatpush1.msra.mxu0 0.0
          %2562 = vmatprep.subr.mxu0 0.0
          %2563 = vmatpush1.msra.mxu0 0.0
          %2564 = vmatprep.subr.mxu0 0.0
          %2565 = vmatpush1.msra.mxu0 0.0
          %2566 = vmatprep.subr.mxu0 0.0
          %2567 = vmatpush1.msra.mxu0 0.0
          %2568 = vmatprep.subr.mxu0 0.0
          %2569 = vmatpush1.msra.mxu0 0.0
          %2570 = vmatprep.subr.mxu0 0.0
          %2571 = vmatpush1.msra.mxu0 0.0
          %2572 = vmatprep.subr.mxu0 0.0
          %2573 = vmatpush1.msra.mxu0 0.0
          %2574 = vmatprep.subr.mxu0 0.0
          %2575 = vmatpush1.msra.mxu0 0.0
          %2576 = vmatprep.mubr.f32.mxu0 0.0
          %v2577 = vand.u32 %v2334, 4294901760
          %2578 = vmatmul.mubr.f32.gmra.mrb[0].mxu0 %v2577
          %v2579 = vpop.f32.mrb[0].mxu0
          %v2580 = vadd.f32 %v2434, %v2579
          %v2581 = vpop.f32.mrb[0].mxu0
          %2582 = vmatprep.mubr.f32.mxu0 0.0
          %v2583 = vand.u32 %v2337, 4294901760
          %2584 = vmatmul.mubr.f32.gmra.mrb[0].mxu0 %v2583
          %v2585 = vpop.f32.mrb[0].mxu0
          %v2586 = vadd.f32 %v2444, %v2585
          %v2587 = vpop.f32.mrb[0].mxu0
          %2588 = vmatprep.mubr.f32.mxu0 0.0
          %v2589 = vand.u32 %v2340, 4294901760
          %2590 = vmatmul.mubr.f32.gmra.mrb[0].mxu0 %v2589
          %v2591 = vpop.f32.mrb[0].mxu0
          %v2592 = vadd.f32 %v2454, %v2591
          %v2593 = vpop.f32.mrb[0].mxu0
          %2594 = vmatprep.mubr.f32.mxu0 0.0
          %v2595 = vand.u32 %v2343, 4294901760
          %2596 = vmatmul.mubr.f32.gmra.mrb[0].mxu0 %v2595
          %v2597 = vpop.f32.mrb[0].mxu0
          %v2598 = vadd.f32 %v2464, %v2597
          %v2599 = vpop.f32.mrb[0].mxu0
          %2600 = vmatprep.mubr.f32.mxu0 0.0
          %v2601 = vand.u32 %v2346, 4294901760
          %2602 = vmatmul.mubr.f32.gmra.mrb[0].mxu0 %v2601
          %v2603 = vpop.f32.mrb[0].mxu0
          %v2604 = vadd.f32 %v2474, %v2603
          %v2605 = vpop.f32.mrb[0].mxu0
          %2606 = vmatprep.mubr.f32.mxu0 0.0
          %v2607 = vand.u32 %v2349, 4294901760
          %2608 = vmatmul.mubr.f32.gmra.mrb[0].mxu0 %v2607
          %v2609 = vpop.f32.mrb[0].mxu0
          %v2610 = vadd.f32 %v2484, %v2609
          %v2611 = vpop.f32.mrb[0].mxu0
          %2612 = vmatprep.mubr.f32.mxu0 0.0
          %v2613 = vand.u32 %v2352, 4294901760
          %2614 = vmatmul.mubr.f32.gmra.mrb[0].mxu0 %v2613
          %v2615 = vpop.f32.mrb[0].mxu0
          %v2616 = vadd.f32 %v2494, %v2615
          %v2617 = vpop.f32.mrb[0].mxu0
          %2618 = vmatprep.mubr.f32.mxu0 0.0
          %v2619 = vand.u32 %v2355, 4294901760
          %2620 = vmatmul.mubr.f32.gmra.mrb[0].mxu0 %v2619
          %v2621 = vpop.f32.mrb[0].mxu0
          %v2622 = vadd.f32 %v2504, %v2621
          %v2623 = vpop.f32.mrb[0].mxu0
          %2624 = vdwg.mxu0
          %2625 = vmatprep.subr.mxu0 0.0
          %v2626 = vand.u32 %v2359, 4294901760
          %v2627 = vsub.f32 %v2359, %v2626
          %2628 = vmatpush1.msra.mxu0 %v2627
          %2629 = vmatprep.subr.mxu0 0.0
          %2630 = vmatpush1.msra.mxu0 0.0
          %2631 = vmatprep.subr.mxu0 0.0
          %2632 = vmatpush1.msra.mxu0 0.0
          %2633 = vmatprep.subr.mxu0 0.0
          %2634 = vmatpush1.msra.mxu0 0.0
          %2635 = vmatprep.subr.mxu0 0.0
          %2636 = vmatpush1.msra.mxu0 0.0
          %2637 = vmatprep.subr.mxu0 0.0
          %2638 = vmatpush1.msra.mxu0 0.0
          %2639 = vmatprep.subr.mxu0 0.0
          %2640 = vmatpush1.msra.mxu0 0.0
          %2641 = vmatprep.subr.mxu0 0.0
          %2642 = vmatpush1.msra.mxu0 0.0
          %2643 = vmatprep.subr.mxu0 0.0
          %2644 = vmatpush1.msra.mxu0 0.0
          %2645 = vmatprep.subr.mxu0 0.0
          %2646 = vmatpush1.msra.mxu0 0.0
          %2647 = vmatprep.subr.mxu0 0.0
          %2648 = vmatpush1.msra.mxu0 0.0
          %2649 = vmatprep.subr.mxu0 0.0
          %2650 = vmatpush1.msra.mxu0 0.0
          %2651 = vmatprep.subr.mxu0 0.0
          %2652 = vmatpush1.msra.mxu0 0.0
          %2653 = vmatprep.subr.mxu0 0.0
          %2654 = vmatpush1.msra.mxu0 0.0
          %2655 = vmatprep.subr.mxu0 0.0
          %2656 = vmatpush1.msra.mxu0 0.0
          %2657 = vmatprep.subr.mxu0 0.0
          %2658 = vmatpush1.msra.mxu0 0.0
          %2659 = vmatprep.subr.mxu0 0.0
          %2660 = vmatpush1.msra.mxu0 0.0
          %2661 = vmatprep.subr.mxu0 0.0
          %2662 = vmatpush1.msra.mxu0 0.0
          %2663 = vmatprep.subr.mxu0 0.0
          %2664 = vmatpush1.msra.mxu0 0.0
          %2665 = vmatprep.subr.mxu0 0.0
          %2666 = vmatpush1.msra.mxu0 0.0
          %2667 = vmatprep.subr.mxu0 0.0
          %2668 = vmatpush1.msra.mxu0 0.0
          %2669 = vmatprep.subr.mxu0 0.0
          %2670 = vmatpush1.msra.mxu0 0.0
          %2671 = vmatprep.subr.mxu0 0.0
          %2672 = vmatpush1.msra.mxu0 0.0
          %2673 = vmatprep.subr.mxu0 0.0
          %2674 = vmatpush1.msra.mxu0 0.0
          %2675 = vmatprep.subr.mxu0 0.0
          %2676 = vmatpush1.msra.mxu0 0.0
          %2677 = vmatprep.subr.mxu0 0.0
          %2678 = vmatpush1.msra.mxu0 0.0
          %2679 = vmatprep.subr.mxu0 0.0
          %2680 = vmatpush1.msra.mxu0 0.0
          %2681 = vmatprep.subr.mxu0 0.0
          %2682 = vmatpush1.msra.mxu0 0.0
          %2683 = vmatprep.subr.mxu0 0.0
          %2684 = vmatpush1.msra.mxu0 0.0
          %2685 = vmatprep.subr.mxu0 0.0
          %2686 = vmatpush1.msra.mxu0 0.0
          %2687 = vmatprep.subr.mxu0 0.0
          %2688 = vmatpush1.msra.mxu0 0.0
          %2689 = vmatprep.subr.mxu0 0.0
          %2690 = vmatpush1.msra.mxu0 0.0
          %2691 = vmatprep.mubr.f32.mxu0 0.0
          %v2692 = vand.u32 %v2334, 4294901760
          %v2693 = vsub.f32 %v2334, %v2692
          %2694 = vmatmul.mubr.f32.gmra.mrb[0].mxu0 %v2693
          %v2695 = vpop.f32.mrb[0].mxu0
          %v2696 = vadd.f32 %v2580, %v2695
          %v2697 = vpop.f32.mrb[0].mxu0
          %2698 = vmatprep.mubr.f32.mxu0 0.0
          %v2699 = vand.u32 %v2337, 4294901760
          %v2700 = vsub.f32 %v2337, %v2699
          %2701 = vmatmul.mubr.f32.gmra.mrb[0].mxu0 %v2700
          %v2702 = vpop.f32.mrb[0].mxu0
          %v2703 = vadd.f32 %v2586, %v2702
          %v2704 = vpop.f32.mrb[0].mxu0
          %2705 = vmatprep.mubr.f32.mxu0 0.0
          %v2706 = vand.u32 %v2340, 4294901760
          %v2707 = vsub.f32 %v2340, %v2706
          %2708 = vmatmul.mubr.f32.gmra.mrb[0].mxu0 %v2707
          %v2709 = vpop.f32.mrb[0].mxu0
          %v2710 = vadd.f32 %v2592, %v2709
          %v2711 = vpop.f32.mrb[0].mxu0
          %2712 = vmatprep.mubr.f32.mxu0 0.0
          %v2713 = vand.u32 %v2343, 4294901760
          %v2714 = vsub.f32 %v2343, %v2713
          %2715 = vmatmul.mubr.f32.gmra.mrb[0].mxu0 %v2714
          %v2716 = vpop.f32.mrb[0].mxu0
          %v2717 = vadd.f32 %v2598, %v2716
          %v2718 = vpop.f32.mrb[0].mxu0
          %2719 = vmatprep.mubr.f32.mxu0 0.0
          %v2720 = vand.u32 %v2346, 4294901760
          %v2721 = vsub.f32 %v2346, %v2720
          %2722 = vmatmul.mubr.f32.gmra.mrb[0].mxu0 %v2721
          %v2723 = vpop.f32.mrb[0].mxu0
          %v2724 = vadd.f32 %v2604, %v2723
          %v2725 = vpop.f32.mrb[0].mxu0
          %2726 = vmatprep.mubr.f32.mxu0 0.0
          %v2727 = vand.u32 %v2349, 4294901760
          %v2728 = vsub.f32 %v2349, %v2727
          %2729 = vmatmul.mubr.f32.gmra.mrb[0].mxu0 %v2728
          %v2730 = vpop.f32.mrb[0].mxu0
          %v2731 = vadd.f32 %v2610, %v2730
          %v2732 = vpop.f32.mrb[0].mxu0
          %2733 = vmatprep.mubr.f32.mxu0 0.0
          %v2734 = vand.u32 %v2352, 4294901760
          %v2735 = vsub.f32 %v2352, %v2734
          %2736 = vmatmul.mubr.f32.gmra.mrb[0].mxu0 %v2735
          %v2737 = vpop.f32.mrb[0].mxu0
          %v2738 = vadd.f32 %v2616, %v2737
          %v2739 = vpop.f32.mrb[0].mxu0
          %2740 = vmatprep.mubr.f32.mxu0 0.0
          %v2741 = vand.u32 %v2355, 4294901760
          %v2742 = vsub.f32 %v2355, %v2741
          %2743 = vmatmul.mubr.f32.gmra.mrb[0].mxu0 %v2742
          %v2744 = vpop.f32.mrb[0].mxu0
          %v2745 = vadd.f32 %v2622, %v2744
          %v2746 = vpop.f32.mrb[0].mxu0
          %2747 = vdwg.mxu0
          %2748 = vmatprep.subr.mxu0 0.0
          %v2749 = vand.u32 %v2359, 4294901760
          %2750 = vmatpush1.msra.mxu0 %v2749
          %2751 = vmatprep.subr.mxu0 0.0
          %2752 = vmatpush1.msra.mxu0 0.0
          %2753 = vmatprep.subr.mxu0 0.0
          %2754 = vmatpush1.msra.mxu0 0.0
          %2755 = vmatprep.subr.mxu0 0.0
          %2756 = vmatpush1.msra.mxu0 0.0
          %2757 = vmatprep.subr.mxu0 0.0
          %2758 = vmatpush1.msra.mxu0 0.0
          %2759 = vmatprep.subr.mxu0 0.0
          %2760 = vmatpush1.msra.mxu0 0.0
          %2761 = vmatprep.subr.mxu0 0.0
          %2762 = vmatpush1.msra.mxu0 0.0
          %2763 = vmatprep.subr.mxu0 0.0
          %2764 = vmatpush1.msra.mxu0 0.0
          %2765 = vmatprep.subr.mxu0 0.0
          %2766 = vmatpush1.msra.mxu0 0.0
          %2767 = vmatprep.subr.mxu0 0.0
          %2768 = vmatpush1.msra.mxu0 0.0
          %2769 = vmatprep.subr.mxu0 0.0
          %2770 = vmatpush1.msra.mxu0 0.0
          %2771 = vmatprep.subr.mxu0 0.0
          %2772 = vmatpush1.msra.mxu0 0.0
          %2773 = vmatprep.subr.mxu0 0.0
          %2774 = vmatpush1.msra.mxu0 0.0
          %2775 = vmatprep.subr.mxu0 0.0
          %2776 = vmatpush1.msra.mxu0 0.0
          %2777 = vmatprep.subr.mxu0 0.0
          %2778 = vmatpush1.msra.mxu0 0.0
          %2779 = vmatprep.subr.mxu0 0.0
          %2780 = vmatpush1.msra.mxu0 0.0
          %2781 = vmatprep.subr.mxu0 0.0
          %2782 = vmatpush1.msra.mxu0 0.0
          %2783 = vmatprep.subr.mxu0 0.0
          %2784 = vmatpush1.msra.mxu0 0.0
          %2785 = vmatprep.subr.mxu0 0.0
          %2786 = vmatpush1.msra.mxu0 0.0
          %2787 = vmatprep.subr.mxu0 0.0
          %2788 = vmatpush1.msra.mxu0 0.0
          %2789 = vmatprep.subr.mxu0 0.0
          %2790 = vmatpush1.msra.mxu0 0.0
          %2791 = vmatprep.subr.mxu0 0.0
          %2792 = vmatpush1.msra.mxu0 0.0
          %2793 = vmatprep.subr.mxu0 0.0
          %2794 = vmatpush1.msra.mxu0 0.0
          %2795 = vmatprep.subr.mxu0 0.0
          %2796 = vmatpush1.msra.mxu0 0.0
          %2797 = vmatprep.subr.mxu0 0.0
          %2798 = vmatpush1.msra.mxu0 0.0
          %2799 = vmatprep.subr.mxu0 0.0
          %2800 = vmatpush1.msra.mxu0 0.0
          %2801 = vmatprep.subr.mxu0 0.0
          %2802 = vmatpush1.msra.mxu0 0.0
          %2803 = vmatprep.subr.mxu0 0.0
          %2804 = vmatpush1.msra.mxu0 0.0
          %2805 = vmatprep.subr.mxu0 0.0
          %2806 = vmatpush1.msra.mxu0 0.0
          %2807 = vmatprep.subr.mxu0 0.0
          %2808 = vmatpush1.msra.mxu0 0.0
          %2809 = vmatprep.subr.mxu0 0.0
          %2810 = vmatpush1.msra.mxu0 0.0
          %2811 = vmatprep.subr.mxu0 0.0
          %2812 = vmatpush1.msra.mxu0 0.0
          %2813 = vmatprep.mubr.f32.mxu0 0.0
          %v2814 = vand.u32 %v2334, 4294901760
          %v2815 = vsub.f32 %v2334, %v2814
          %v2816 = vand.u32 %v2815, 4294901760
          %2817 = vmatmul.mubr.f32.gmra.mrb[0].mxu0 %v2816
          %v2818 = vpop.f32.mrb[0].mxu0
          %v2819 = vadd.f32 %v2696, %v2818
          %v2820 = vpop.f32.mrb[0].mxu0
          %2821 = vmatprep.mubr.f32.mxu0 0.0
          %v2822 = vand.u32 %v2337, 4294901760
          %v2823 = vsub.f32 %v2337, %v2822
          %v2824 = vand.u32 %v2823, 4294901760
          %2825 = vmatmul.mubr.f32.gmra.mrb[0].mxu0 %v2824
          %v2826 = vpop.f32.mrb[0].mxu0
          %v2827 = vadd.f32 %v2703, %v2826
          %v2828 = vpop.f32.mrb[0].mxu0
          %2829 = vmatprep.mubr.f32.mxu0 0.0
          %v2830 = vand.u32 %v2340, 4294901760
          %v2831 = vsub.f32 %v2340, %v2830
          %v2832 = vand.u32 %v2831, 4294901760
          %2833 = vmatmul.mubr.f32.gmra.mrb[0].mxu0 %v2832
          %v2834 = vpop.f32.mrb[0].mxu0
          %v2835 = vadd.f32 %v2710, %v2834
          %v2836 = vpop.f32.mrb[0].mxu0
          %2837 = vmatprep.mubr.f32.mxu0 0.0
          %v2838 = vand.u32 %v2343, 4294901760
          %v2839 = vsub.f32 %v2343, %v2838
          %v2840 = vand.u32 %v2839, 4294901760
          %2841 = vmatmul.mubr.f32.gmra.mrb[0].mxu0 %v2840
          %v2842 = vpop.f32.mrb[0].mxu0
          %v2843 = vadd.f32 %v2717, %v2842
          %v2844 = vpop.f32.mrb[0].mxu0
          %2845 = vmatprep.mubr.f32.mxu0 0.0
          %v2846 = vand.u32 %v2346, 4294901760
          %v2847 = vsub.f32 %v2346, %v2846
          %v2848 = vand.u32 %v2847, 4294901760
          %2849 = vmatmul.mubr.f32.gmra.mrb[0].mxu0 %v2848
          %v2850 = vpop.f32.mrb[0].mxu0
          %v2851 = vadd.f32 %v2724, %v2850
          %v2852 = vpop.f32.mrb[0].mxu0
          %2853 = vmatprep.mubr.f32.mxu0 0.0
          %v2854 = vand.u32 %v2349, 4294901760
          %v2855 = vsub.f32 %v2349, %v2854
          %v2856 = vand.u32 %v2855, 4294901760
          %2857 = vmatmul.mubr.f32.gmra.mrb[0].mxu0 %v2856
          %v2858 = vpop.f32.mrb[0].mxu0
          %v2859 = vadd.f32 %v2731, %v2858
          %v2860 = vpop.f32.mrb[0].mxu0
          %2861 = vmatprep.mubr.f32.mxu0 0.0
          %v2862 = vand.u32 %v2352, 4294901760
          %v2863 = vsub.f32 %v2352, %v2862
          %v2864 = vand.u32 %v2863, 4294901760
          %2865 = vmatmul.mubr.f32.gmra.mrb[0].mxu0 %v2864
          %v2866 = vpop.f32.mrb[0].mxu0
          %v2867 = vadd.f32 %v2738, %v2866
          %v2868 = vpop.f32.mrb[0].mxu0
          %2869 = vmatprep.mubr.f32.mxu0 0.0
          %v2870 = vand.u32 %v2355, 4294901760
          %v2871 = vsub.f32 %v2355, %v2870
          %v2872 = vand.u32 %v2871, 4294901760
          %2873 = vmatmul.mubr.f32.gmra.mrb[0].mxu0 %v2872
          %v2874 = vpop.f32.mrb[0].mxu0
          %v2875 = vadd.f32 %v2745, %v2874
          %v2876 = vpop.f32.mrb[0].mxu0
          %2877 = vdwg.mxu0
          %2878 = vmatprep.subr.mxu0 0.0
          %v2879 = vand.u32 %v2359, 4294901760
          %v2880 = vsub.f32 %v2359, %v2879
          %v2881 = vand.u32 %v2880, 4294901760
          %2882 = vmatpush1.msra.mxu0 %v2881
          %2883 = vmatprep.subr.mxu0 0.0
          %2884 = vmatpush1.msra.mxu0 0.0
          %2885 = vmatprep.subr.mxu0 0.0
          %2886 = vmatpush1.msra.mxu0 0.0
          %2887 = vmatprep.subr.mxu0 0.0
          %2888 = vmatpush1.msra.mxu0 0.0
          %2889 = vmatprep.subr.mxu0 0.0
          %2890 = vmatpush1.msra.mxu0 0.0
          %2891 = vmatprep.subr.mxu0 0.0
          %2892 = vmatpush1.msra.mxu0 0.0
          %2893 = vmatprep.subr.mxu0 0.0
          %2894 = vmatpush1.msra.mxu0 0.0
          %2895 = vmatprep.subr.mxu0 0.0
          %2896 = vmatpush1.msra.mxu0 0.0
          %2897 = vmatprep.subr.mxu0 0.0
          %2898 = vmatpush1.msra.mxu0 0.0
          %2899 = vmatprep.subr.mxu0 0.0
          %2900 = vmatpush1.msra.mxu0 0.0
          %2901 = vmatprep.subr.mxu0 0.0
          %2902 = vmatpush1.msra.mxu0 0.0
          %2903 = vmatprep.subr.mxu0 0.0
          %2904 = vmatpush1.msra.mxu0 0.0
          %2905 = vmatprep.subr.mxu0 0.0
          %2906 = vmatpush1.msra.mxu0 0.0
          %2907 = vmatprep.subr.mxu0 0.0
          %2908 = vmatpush1.msra.mxu0 0.0
          %2909 = vmatprep.subr.mxu0 0.0
          %2910 = vmatpush1.msra.mxu0 0.0
          %2911 = vmatprep.subr.mxu0 0.0
          %2912 = vmatpush1.msra.mxu0 0.0
          %2913 = vmatprep.subr.mxu0 0.0
          %2914 = vmatpush1.msra.mxu0 0.0
          %2915 = vmatprep.subr.mxu0 0.0
          %2916 = vmatpush1.msra.mxu0 0.0
          %2917 = vmatprep.subr.mxu0 0.0
          %2918 = vmatpush1.msra.mxu0 0.0
          %2919 = vmatprep.subr.mxu0 0.0
          %2920 = vmatpush1.msra.mxu0 0.0
          %2921 = vmatprep.subr.mxu0 0.0
          %2922 = vmatpush1.msra.mxu0 0.0
          %2923 = vmatprep.subr.mxu0 0.0
          %2924 = vmatpush1.msra.mxu0 0.0
          %2925 = vmatprep.subr.mxu0 0.0
          %2926 = vmatpush1.msra.mxu0 0.0
          %2927 = vmatprep.subr.mxu0 0.0
          %2928 = vmatpush1.msra.mxu0 0.0
          %2929 = vmatprep.subr.mxu0 0.0
          %2930 = vmatpush1.msra.mxu0 0.0
          %2931 = vmatprep.subr.mxu0 0.0
          %2932 = vmatpush1.msra.mxu0 0.0
          %2933 = vmatprep.subr.mxu0 0.0
          %2934 = vmatpush1.msra.mxu0 0.0
          %2935 = vmatprep.subr.mxu0 0.0
          %2936 = vmatpush1.msra.mxu0 0.0
          %2937 = vmatprep.subr.mxu0 0.0
          %2938 = vmatpush1.msra.mxu0 0.0
          %2939 = vmatprep.subr.mxu0 0.0
          %2940 = vmatpush1.msra.mxu0 0.0
          %2941 = vmatprep.subr.mxu0 0.0
          %2942 = vmatpush1.msra.mxu0 0.0
          %2943 = vmatprep.subr.mxu0 0.0
          %2944 = vmatpush1.msra.mxu0 0.0
          %2945 = vmatprep.mubr.f32.mxu0 0.0
          %v2946 = vand.u32 %v2334, 4294901760
          %2947 = vmatmul.mubr.f32.gmra.mrb[0].mxu0 %v2946
          %v2948 = vpop.f32.mrb[0].mxu0
          %v2949 = vadd.f32 %v2819, %v2948
          %v2950 = vpop.f32.mrb[0].mxu0
          %2951 = vmatprep.mubr.f32.mxu0 0.0
          %v2952 = vand.u32 %v2337, 4294901760
          %2953 = vmatmul.mubr.f32.gmra.mrb[0].mxu0 %v2952
          %v2954 = vpop.f32.mrb[0].mxu0
          %v2955 = vadd.f32 %v2827, %v2954
          %v2956 = vpop.f32.mrb[0].mxu0
          %2957 = vmatprep.mubr.f32.mxu0 0.0
          %v2958 = vand.u32 %v2340, 4294901760
          %2959 = vmatmul.mubr.f32.gmra.mrb[0].mxu0 %v2958
          %v2960 = vpop.f32.mrb[0].mxu0
          %v2961 = vadd.f32 %v2835, %v2960
          %v2962 = vpop.f32.mrb[0].mxu0
          %2963 = vmatprep.mubr.f32.mxu0 0.0
          %v2964 = vand.u32 %v2343, 4294901760
          %2965 = vmatmul.mubr.f32.gmra.mrb[0].mxu0 %v2964
          %v2966 = vpop.f32.mrb[0].mxu0
          %v2967 = vadd.f32 %v2843, %v2966
          %v2968 = vpop.f32.mrb[0].mxu0
          %2969 = vmatprep.mubr.f32.mxu0 0.0
          %v2970 = vand.u32 %v2346, 4294901760
          %2971 = vmatmul.mubr.f32.gmra.mrb[0].mxu0 %v2970
          %v2972 = vpop.f32.mrb[0].mxu0
          %v2973 = vadd.f32 %v2851, %v2972
          %v2974 = vpop.f32.mrb[0].mxu0
          %2975 = vmatprep.mubr.f32.mxu0 0.0
          %v2976 = vand.u32 %v2349, 4294901760
          %2977 = vmatmul.mubr.f32.gmra.mrb[0].mxu0 %v2976
          %v2978 = vpop.f32.mrb[0].mxu0
          %v2979 = vadd.f32 %v2859, %v2978
          %v2980 = vpop.f32.mrb[0].mxu0
          %2981 = vmatprep.mubr.f32.mxu0 0.0
          %v2982 = vand.u32 %v2352, 4294901760
          %2983 = vmatmul.mubr.f32.gmra.mrb[0].mxu0 %v2982
          %v2984 = vpop.f32.mrb[0].mxu0
          %v2985 = vadd.f32 %v2867, %v2984
          %v2986 = vpop.f32.mrb[0].mxu0
          %2987 = vmatprep.mubr.f32.mxu0 0.0
          %v2988 = vand.u32 %v2355, 4294901760
          %2989 = vmatmul.mubr.f32.gmra.mrb[0].mxu0 %v2988
          %v2990 = vpop.f32.mrb[0].mxu0
          %v2991 = vadd.f32 %v2875, %v2990
          %v2992 = vpop.f32.mrb[0].mxu0
          %2993 = vdwg.mxu0
          %2994 = vmatprep.subr.mxu0 0.0
          %v2995 = vand.u32 %v2359, 4294901760
          %2996 = vmatpush1.msra.mxu0 %v2995
          %2997 = vmatprep.subr.mxu0 0.0
          %2998 = vmatpush1.msra.mxu0 0.0
          %2999 = vmatprep.subr.mxu0 0.0
          %3000 = vmatpush1.msra.mxu0 0.0
          %3001 = vmatprep.subr.mxu0 0.0
          %3002 = vmatpush1.msra.mxu0 0.0
          %3003 = vmatprep.subr.mxu0 0.0
          %3004 = vmatpush1.msra.mxu0 0.0
          %3005 = vmatprep.subr.mxu0 0.0
          %3006 = vmatpush1.msra.mxu0 0.0
          %3007 = vmatprep.subr.mxu0 0.0
          %3008 = vmatpush1.msra.mxu0 0.0
          %3009 = vmatprep.subr.mxu0 0.0
          %3010 = vmatpush1.msra.mxu0 0.0
          %3011 = vmatprep.subr.mxu0 0.0
          %3012 = vmatpush1.msra.mxu0 0.0
          %3013 = vmatprep.subr.mxu0 0.0
          %3014 = vmatpush1.msra.mxu0 0.0
          %3015 = vmatprep.subr.mxu0 0.0
          %3016 = vmatpush1.msra.mxu0 0.0
          %3017 = vmatprep.subr.mxu0 0.0
          %3018 = vmatpush1.msra.mxu0 0.0
          %3019 = vmatprep.subr.mxu0 0.0
          %3020 = vmatpush1.msra.mxu0 0.0
          %3021 = vmatprep.subr.mxu0 0.0
          %3022 = vmatpush1.msra.mxu0 0.0
          %3023 = vmatprep.subr.mxu0 0.0
          %3024 = vmatpush1.msra.mxu0 0.0
          %3025 = vmatprep.subr.mxu0 0.0
          %3026 = vmatpush1.msra.mxu0 0.0
          %3027 = vmatprep.subr.mxu0 0.0
          %3028 = vmatpush1.msra.mxu0 0.0
          %3029 = vmatprep.subr.mxu0 0.0
          %3030 = vmatpush1.msra.mxu0 0.0
          %3031 = vmatprep.subr.mxu0 0.0
          %3032 = vmatpush1.msra.mxu0 0.0
          %3033 = vmatprep.subr.mxu0 0.0
          %3034 = vmatpush1.msra.mxu0 0.0
          %3035 = vmatprep.subr.mxu0 0.0
          %3036 = vmatpush1.msra.mxu0 0.0
          %3037 = vmatprep.subr.mxu0 0.0
          %3038 = vmatpush1.msra.mxu0 0.0
          %3039 = vmatprep.subr.mxu0 0.0
          %3040 = vmatpush1.msra.mxu0 0.0
          %3041 = vmatprep.subr.mxu0 0.0
          %3042 = vmatpush1.msra.mxu0 0.0
          %3043 = vmatprep.subr.mxu0 0.0
          %3044 = vmatpush1.msra.mxu0 0.0
          %3045 = vmatprep.subr.mxu0 0.0
          %3046 = vmatpush1.msra.mxu0 0.0
          %3047 = vmatprep.subr.mxu0 0.0
          %3048 = vmatpush1.msra.mxu0 0.0
          %3049 = vmatprep.subr.mxu0 0.0
          %3050 = vmatpush1.msra.mxu0 0.0
          %3051 = vmatprep.subr.mxu0 0.0
          %3052 = vmatpush1.msra.mxu0 0.0
          %3053 = vmatprep.subr.mxu0 0.0
          %3054 = vmatpush1.msra.mxu0 0.0
          %3055 = vmatprep.subr.mxu0 0.0
          %3056 = vmatpush1.msra.mxu0 0.0
          %3057 = vmatprep.subr.mxu0 0.0
          %3058 = vmatpush1.msra.mxu0 0.0
          %3059 = vmatprep.mubr.f32.mxu0 0.0
          %v3060 = vand.u32 %v2334, 4294901760
          %3061 = vmatmul.mubr.f32.gmra.mrb[0].mxu0 %v3060
          %v3062 = vpop.f32.mrb[0].mxu0
          %v3063 = vadd.f32 %v2949, %v3062
          %v3064 = vpop.f32.mrb[0].mxu0
          %3065 = vmatprep.mubr.f32.mxu0 0.0
          %v3066 = vand.u32 %v2337, 4294901760
          %3067 = vmatmul.mubr.f32.gmra.mrb[0].mxu0 %v3066
          %v3068 = vpop.f32.mrb[0].mxu0
          %v3069 = vadd.f32 %v2955, %v3068
          %v3070 = vpop.f32.mrb[0].mxu0
          %3071 = vmatprep.mubr.f32.mxu0 0.0
          %v3072 = vand.u32 %v2340, 4294901760
          %3073 = vmatmul.mubr.f32.gmra.mrb[0].mxu0 %v3072
          %v3074 = vpop.f32.mrb[0].mxu0
          %v3075 = vadd.f32 %v2961, %v3074
          %v3076 = vpop.f32.mrb[0].mxu0
          %3077 = vmatprep.mubr.f32.mxu0 0.0
          %v3078 = vand.u32 %v2343, 4294901760
          %3079 = vmatmul.mubr.f32.gmra.mrb[0].mxu0 %v3078
          %v3080 = vpop.f32.mrb[0].mxu0
          %v3081 = vadd.f32 %v2967, %v3080
          %v3082 = vpop.f32.mrb[0].mxu0
          %3083 = vmatprep.mubr.f32.mxu0 0.0
          %v3084 = vand.u32 %v2346, 4294901760
          %3085 = vmatmul.mubr.f32.gmra.mrb[0].mxu0 %v3084
          %v3086 = vpop.f32.mrb[0].mxu0
          %v3087 = vadd.f32 %v2973, %v3086
          %v3088 = vpop.f32.mrb[0].mxu0
          %3089 = vmatprep.mubr.f32.mxu0 0.0
          %v3090 = vand.u32 %v2349, 4294901760
          %3091 = vmatmul.mubr.f32.gmra.mrb[0].mxu0 %v3090
          %v3092 = vpop.f32.mrb[0].mxu0
          %v3093 = vadd.f32 %v2979, %v3092
          %v3094 = vpop.f32.mrb[0].mxu0
          %3095 = vmatprep.mubr.f32.mxu0 0.0
          %v3096 = vand.u32 %v2352, 4294901760
          %3097 = vmatmul.mubr.f32.gmra.mrb[0].mxu0 %v3096
          %v3098 = vpop.f32.mrb[0].mxu0
          %v3099 = vadd.f32 %v2985, %v3098
          %v3100 = vpop.f32.mrb[0].mxu0
          %3101 = vmatprep.mubr.f32.mxu0 0.0
          %v3102 = vand.u32 %v2355, 4294901760
          %3103 = vmatmul.mubr.f32.gmra.mrb[0].mxu0 %v3102
          %v3104 = vpop.f32.mrb[0].mxu0
          %v3105 = vadd.f32 %v2991, %v3104
          %v3106 = vpop.f32.mrb[0].mxu0
          %3107 = vdwg.mxu0
          %v3108 = vmul.f32 %v3063, 2.0
          %v3109 = vmul.f32 %v3069, 2.0
          %v3110 = vmul.f32 %v3075, 2.0
          %v3111 = vmul.f32 %v3081, 2.0
          %v3112 = vmul.f32 %v3087, 2.0
          %v3113 = vmul.f32 %v3093, 2.0
          %v3114 = vmul.f32 %v3099, 2.0
          %v3115 = vmul.f32 %v3105, 2.0
          %v3116 = vsub.f32 %v2297, %v3108
          %v3117 = vsub.f32 %v2300, %v3109
          %v3118 = vsub.f32 %v2303, %v3110
          %v3119 = vsub.f32 %v2306, %v3111
          %v3120 = vsub.f32 %v2309, %v3112
          %v3121 = vsub.f32 %v2312, %v3113
          %v3122 = vsub.f32 %v2315, %v3114
          %v3123 = vsub.f32 %v2318, %v3115
          %vm3124 = vcmask 523264
          %v3125 = vsel %vm3124, %v3116, inf
          %v3126 = vsel %vm3124, %v3117, inf
          %v3127 = vsel %vm3124, %v3118, inf
          %v3128 = vsel %vm3124, %v3119, inf
          %v3129 = vsel %vm3124, %v3120, inf
          %v3130 = vmin.f32 %v3125, %v3129
          %v3131 = vsel %vm3124, %v3121, inf
          %v3132 = vmin.f32 %v3126, %v3131
          %v3133 = vsel %vm3124, %v3122, inf
          %v3134 = vmin.f32 %v3127, %v3133
          %v3135 = vsel %vm3124, %v3123, inf
          %v3136 = vmin.f32 %v3128, %v3135
          %v3137 = vmin.f32 %v3130, %v3132
          %v3138 = vmin.f32 %v3134, %v3136
          %v3139 = vmin.f32 %v3137, %v3138
          %v3140 = vrot.slane %v3139, 4
          %v3141 = vmin.f32 %v3139, %v3140
          %v3142 = vrot.slane %v3141, 2
          %v3143 = vmin.f32 %v3141, %v3142
          %v3144 = vrot.slane %v3143, 1
          %v3145 = vmin.f32 %v3143, %v3144
          %v3146 = vmul.f32 %v2332, %v2332
          %vm3147 = vcmask 518144
          %v3148 = vsel %vm3147, %v3146, 0.0
          %v3149 = vrot.slane %v3148, 4
          %v3150 = vadd.f32 %v3148, %v3149
          %v3151 = vrot.slane %v3150, 2
          %v3152 = vadd.f32 %v3150, %v3151
          %v3153 = vrot.slane %v3152, 1
          %v3154 = vadd.f32 %v3152, %v3153
          %v3155 = vadd.f32 %v3145, %v3154
          %v3156 = vmax.f32 %v3155, 0.0
          %v3157 = vrsqrt.pop %v3156
          %v3158 = vmul.f32 %v3156, %v3157
          %vm3159 = vcmp.eq.f32.partialorder %v3156, inf
          %v3160 = vsel %vm3159, %v3156, %v3158
          %vm3161 = vcmp.eq.f32.partialorder %v3156, 0.0
          %v3162 = vand.u32 %v3156, 2147483648
          %v3163 = vsel %vm3161, %v3162, %v3160
          %vm3164 = vcmask 516096
          %v3165 = vsel %vm3164, %v3163, 0.0
          %3166 = vadd.xlane.f32.xlu0 %v3165
          %v3167 = vpop.xlane.xlu0 %3166
          %v3168 = vrot.slane %v3167, 4
          %v3169 = vadd.f32 %v3167, %v3168
          %v3170 = vrot.slane %v3169, 2
          %v3171 = vadd.f32 %v3169, %v3170
          %v3172 = vrot.slane %v3171, 1
          %v3173 = vadd.f32 %v3171, %v3172
          %s3174 = vtos %v3173
          %s3175 = smul.f32 %s3174, 0.015625
          %3176 = sst [smem:[%s477]] %s3175
        $region80: #{tpu_custom_call.1} parent=47 // pred_fallthru
          _
        %p3177 = pnand %p2319, %p2322
        %p3178 = pneg %p3177
        // Predicated region
        $region81: #{tpu_custom_call.1} parent=47 // pred_check
          _
        $region82: #{tpu_custom_call.1} parent=47 // pred_check_branch
          %3180 = sbr.rel (%p3177) target = $region84
        $region83: #{tpu_custom_call.1} parent=47 // pred_region
          %s3181 = scalar_lea.vmem %s404, 4
          %v3182 = vld [vmem:[%s3181] sm:$0x7]
          %v3183 = vsub.f32 %v3182, %v2277
          %v3184 = vmul.f32 %v3183, %v3183
          %vm3185 = vcmask 518144
          %v3186 = vsel %vm3185, %v3184, 0.0
          %v3187 = vrot.slane %v3186, 4
          %v3188 = vadd.f32 %v3186, %v3187
          %v3189 = vrot.slane %v3188, 2
          %v3190 = vadd.f32 %v3188, %v3189
          %v3191 = vrot.slane %v3190, 1
          %v3192 = vadd.f32 %v3190, %v3191
          %v3193 = vrsqrt.pop %v3192
          %v3194 = vmul.f32 %v3192, %v3193
          %vm3195 = vcmp.eq.f32.partialorder %v3192, inf
          %v3196 = vsel %vm3195, %v3192, %v3194
          %vm3197 = vcmp.eq.f32.partialorder %v3192, 0.0
          %v3198 = vand.u32 %v3192, 2147483648
          %v3199 = vsel %vm3197, %v3198, %v3196
          %vm3200 = vcmask 516096
          %v3201 = vsel %vm3200, %v3199, 0.0
          %3202 = vadd.xlane.f32.xlu0 %v3201
          %v3203 = vpop.xlane.xlu0 %3202
          %v3204 = vrot.slane %v3203, 4
          %v3205 = vadd.f32 %v3203, %v3204
          %v3206 = vrot.slane %v3205, 2
          %v3207 = vadd.f32 %v3205, %v3206
          %v3208 = vrot.slane %v3207, 1
          %v3209 = vadd.f32 %v3207, %v3208
          %s3210 = vtos %v3209
          %s3211 = smul.f32 %s3210, 0.015625
          %3212 = sst [smem:[%s479]] %s3211
        $region84: #{tpu_custom_call.1} parent=47 // pred_fallthru
          _
        %p3213 = pnand %p2320, %p2321
        %p3214 = pneg %p3213
        // Predicated region
        $region85: #{tpu_custom_call.1} parent=47 // pred_check
          _
        $region86: #{tpu_custom_call.1} parent=47 // pred_check_branch
          %3216 = sbr.rel (%p3213) target = $region88
        $region87: #{tpu_custom_call.1} parent=47 // pred_region
          %s3217 = scalar_lea.vmem %s410, 4
          %v3218 = vld [vmem:[%s3217] sm:$0x7]
          %v3220 = vsel %vm448, %v2279, 0
          %v3223 = vsel %vm448, %v2280, 0
          %v3226 = vsel %vm448, %v2281, 0
          %v3229 = vsel %vm448, %v2282, 0
          %v3232 = vsel %vm448, %v2283, 0
          %v3235 = vsel %vm448, %v2284, 0
          %v3238 = vsel %vm448, %v2285, 0
          %v3241 = vsel %vm448, %v2286, 0
          %vm3243 = vcmask 1042432
          %v3245 = vsel %vm3243, %v3218, 0
          %3247 = vmatprep.subr.mxu0 0.0
          %v3248 = vand.u32 %v3245, 4294901760
          %3249 = vmatpush1.msra.mxu0 %v3248
          %3250 = vmatprep.subr.mxu0 0.0
          %3251 = vmatpush1.msra.mxu0 0.0
          %3252 = vmatprep.subr.mxu0 0.0
          %3253 = vmatpush1.msra.mxu0 0.0
          %3254 = vmatprep.subr.mxu0 0.0
          %3255 = vmatpush1.msra.mxu0 0.0
          %3256 = vmatprep.subr.mxu0 0.0
          %3257 = vmatpush1.msra.mxu0 0.0
          %3258 = vmatprep.subr.mxu0 0.0
          %3259 = vmatpush1.msra.mxu0 0.0
          %3260 = vmatprep.subr.mxu0 0.0
          %3261 = vmatpush1.msra.mxu0 0.0
          %3262 = vmatprep.subr.mxu0 0.0
          %3263 = vmatpush1.msra.mxu0 0.0
          %3264 = vmatprep.subr.mxu0 0.0
          %3265 = vmatpush1.msra.mxu0 0.0
          %3266 = vmatprep.subr.mxu0 0.0
          %3267 = vmatpush1.msra.mxu0 0.0
          %3268 = vmatprep.subr.mxu0 0.0
          %3269 = vmatpush1.msra.mxu0 0.0
          %3270 = vmatprep.subr.mxu0 0.0
          %3271 = vmatpush1.msra.mxu0 0.0
          %3272 = vmatprep.subr.mxu0 0.0
          %3273 = vmatpush1.msra.mxu0 0.0
          %3274 = vmatprep.subr.mxu0 0.0
          %3275 = vmatpush1.msra.mxu0 0.0
          %3276 = vmatprep.subr.mxu0 0.0
          %3277 = vmatpush1.msra.mxu0 0.0
          %3278 = vmatprep.subr.mxu0 0.0
          %3279 = vmatpush1.msra.mxu0 0.0
          %3280 = vmatprep.subr.mxu0 0.0
          %3281 = vmatpush1.msra.mxu0 0.0
          %3282 = vmatprep.subr.mxu0 0.0
          %3283 = vmatpush1.msra.mxu0 0.0
          %3284 = vmatprep.subr.mxu0 0.0
          %3285 = vmatpush1.msra.mxu0 0.0
          %3286 = vmatprep.subr.mxu0 0.0
          %3287 = vmatpush1.msra.mxu0 0.0
          %3288 = vmatprep.subr.mxu0 0.0
          %3289 = vmatpush1.msra.mxu0 0.0
          %3290 = vmatprep.subr.mxu0 0.0
          %3291 = vmatpush1.msra.mxu0 0.0
          %3292 = vmatprep.subr.mxu0 0.0
          %3293 = vmatpush1.msra.mxu0 0.0
          %3294 = vmatprep.subr.mxu0 0.0
          %3295 = vmatpush1.msra.mxu0 0.0
          %3296 = vmatprep.subr.mxu0 0.0
          %3297 = vmatpush1.msra.mxu0 0.0
          %3298 = vmatprep.subr.mxu0 0.0
          %3299 = vmatpush1.msra.mxu0 0.0
          %3300 = vmatprep.subr.mxu0 0.0
          %3301 = vmatpush1.msra.mxu0 0.0
          %3302 = vmatprep.subr.mxu0 0.0
          %3303 = vmatpush1.msra.mxu0 0.0
          %3304 = vmatprep.subr.mxu0 0.0
          %3305 = vmatpush1.msra.mxu0 0.0
          %3306 = vmatprep.subr.mxu0 0.0
          %3307 = vmatpush1.msra.mxu0 0.0
          %3308 = vmatprep.subr.mxu0 0.0
          %3309 = vmatpush1.msra.mxu0 0.0
          %3310 = vmatprep.subr.mxu0 0.0
          %3311 = vmatpush1.msra.mxu0 0.0
          %3312 = vmatprep.mubr.f32.mxu0 0.0
          %v3313 = vand.u32 %v3220, 4294901760
          %v3314 = vsub.f32 %v3220, %v3313
          %v3315 = vand.u32 %v3314, 4294901760
          %v3316 = vsub.f32 %v3314, %v3315
          %v3317 = vand.u32 %v3316, 4294901760
          %3318 = vmatmul.mubr.f32.gmra.mrb[0].mxu0 %v3317
          %v3319 = vpop.f32.mrb[0].mxu0
          %v3320 = vadd.f32 0.0, %v3319
          %v3321 = vpop.f32.mrb[0].mxu0
          %3322 = vmatprep.mubr.f32.mxu0 0.0
          %v3323 = vand.u32 %v3223, 4294901760
          %v3324 = vsub.f32 %v3223, %v3323
          %v3325 = vand.u32 %v3324, 4294901760
          %v3326 = vsub.f32 %v3324, %v3325
          %v3327 = vand.u32 %v3326, 4294901760
          %3328 = vmatmul.mubr.f32.gmra.mrb[0].mxu0 %v3327
          %v3329 = vpop.f32.mrb[0].mxu0
          %v3330 = vadd.f32 0.0, %v3329
          %v3331 = vpop.f32.mrb[0].mxu0
          %3332 = vmatprep.mubr.f32.mxu0 0.0
          %v3333 = vand.u32 %v3226, 4294901760
          %v3334 = vsub.f32 %v3226, %v3333
          %v3335 = vand.u32 %v3334, 4294901760
          %v3336 = vsub.f32 %v3334, %v3335
          %v3337 = vand.u32 %v3336, 4294901760
          %3338 = vmatmul.mubr.f32.gmra.mrb[0].mxu0 %v3337
          %v3339 = vpop.f32.mrb[0].mxu0
          %v3340 = vadd.f32 0.0, %v3339
          %v3341 = vpop.f32.mrb[0].mxu0
          %3342 = vmatprep.mubr.f32.mxu0 0.0
          %v3343 = vand.u32 %v3229, 4294901760
          %v3344 = vsub.f32 %v3229, %v3343
          %v3345 = vand.u32 %v3344, 4294901760
          %v3346 = vsub.f32 %v3344, %v3345
          %v3347 = vand.u32 %v3346, 4294901760
          %3348 = vmatmul.mubr.f32.gmra.mrb[0].mxu0 %v3347
          %v3349 = vpop.f32.mrb[0].mxu0
          %v3350 = vadd.f32 0.0, %v3349
          %v3351 = vpop.f32.mrb[0].mxu0
          %3352 = vmatprep.mubr.f32.mxu0 0.0
          %v3353 = vand.u32 %v3232, 4294901760
          %v3354 = vsub.f32 %v3232, %v3353
          %v3355 = vand.u32 %v3354, 4294901760
          %v3356 = vsub.f32 %v3354, %v3355
          %v3357 = vand.u32 %v3356, 4294901760
          %3358 = vmatmul.mubr.f32.gmra.mrb[0].mxu0 %v3357
          %v3359 = vpop.f32.mrb[0].mxu0
          %v3360 = vadd.f32 0.0, %v3359
          %v3361 = vpop.f32.mrb[0].mxu0
          %3362 = vmatprep.mubr.f32.mxu0 0.0
          %v3363 = vand.u32 %v3235, 4294901760
          %v3364 = vsub.f32 %v3235, %v3363
          %v3365 = vand.u32 %v3364, 4294901760
          %v3366 = vsub.f32 %v3364, %v3365
          %v3367 = vand.u32 %v3366, 4294901760
          %3368 = vmatmul.mubr.f32.gmra.mrb[0].mxu0 %v3367
          %v3369 = vpop.f32.mrb[0].mxu0
          %v3370 = vadd.f32 0.0, %v3369
          %v3371 = vpop.f32.mrb[0].mxu0
          %3372 = vmatprep.mubr.f32.mxu0 0.0
          %v3373 = vand.u32 %v3238, 4294901760
          %v3374 = vsub.f32 %v3238, %v3373
          %v3375 = vand.u32 %v3374, 4294901760
          %v3376 = vsub.f32 %v3374, %v3375
          %v3377 = vand.u32 %v3376, 4294901760
          %3378 = vmatmul.mubr.f32.gmra.mrb[0].mxu0 %v3377
          %v3379 = vpop.f32.mrb[0].mxu0
          %v3380 = vadd.f32 0.0, %v3379
          %v3381 = vpop.f32.mrb[0].mxu0
          %3382 = vmatprep.mubr.f32.mxu0 0.0
          %v3383 = vand.u32 %v3241, 4294901760
          %v3384 = vsub.f32 %v3241, %v3383
          %v3385 = vand.u32 %v3384, 4294901760
          %v3386 = vsub.f32 %v3384, %v3385
          %v3387 = vand.u32 %v3386, 4294901760
          %3388 = vmatmul.mubr.f32.gmra.mrb[0].mxu0 %v3387
          %v3389 = vpop.f32.mrb[0].mxu0
          %v3390 = vadd.f32 0.0, %v3389
          %v3391 = vpop.f32.mrb[0].mxu0
          %3392 = vdwg.mxu0
          %3393 = vmatprep.subr.mxu0 0.0
          %v3394 = vand.u32 %v3245, 4294901760
          %v3395 = vsub.f32 %v3245, %v3394
          %v3396 = vand.u32 %v3395, 4294901760
          %v3397 = vsub.f32 %v3395, %v3396
          %v3398 = vand.u32 %v3397, 4294901760
          %3399 = vmatpush1.msra.mxu0 %v3398
          %3400 = vmatprep.subr.mxu0 0.0
          %3401 = vmatpush1.msra.mxu0 0.0
          %3402 = vmatprep.subr.mxu0 0.0
          %3403 = vmatpush1.msra.mxu0 0.0
          %3404 = vmatprep.subr.mxu0 0.0
          %3405 = vmatpush1.msra.mxu0 0.0
          %3406 = vmatprep.subr.mxu0 0.0
          %3407 = vmatpush1.msra.mxu0 0.0
          %3408 = vmatprep.subr.mxu0 0.0
          %3409 = vmatpush1.msra.mxu0 0.0
          %3410 = vmatprep.subr.mxu0 0.0
          %3411 = vmatpush1.msra.mxu0 0.0
          %3412 = vmatprep.subr.mxu0 0.0
          %3413 = vmatpush1.msra.mxu0 0.0
          %3414 = vmatprep.subr.mxu0 0.0
          %3415 = vmatpush1.msra.mxu0 0.0
          %3416 = vmatprep.subr.mxu0 0.0
          %3417 = vmatpush1.msra.mxu0 0.0
          %3418 = vmatprep.subr.mxu0 0.0
          %3419 = vmatpush1.msra.mxu0 0.0
          %3420 = vmatprep.subr.mxu0 0.0
          %3421 = vmatpush1.msra.mxu0 0.0
          %3422 = vmatprep.subr.mxu0 0.0
          %3423 = vmatpush1.msra.mxu0 0.0
          %3424 = vmatprep.subr.mxu0 0.0
          %3425 = vmatpush1.msra.mxu0 0.0
          %3426 = vmatprep.subr.mxu0 0.0
          %3427 = vmatpush1.msra.mxu0 0.0
          %3428 = vmatprep.subr.mxu0 0.0
          %3429 = vmatpush1.msra.mxu0 0.0
          %3430 = vmatprep.subr.mxu0 0.0
          %3431 = vmatpush1.msra.mxu0 0.0
          %3432 = vmatprep.subr.mxu0 0.0
          %3433 = vmatpush1.msra.mxu0 0.0
          %3434 = vmatprep.subr.mxu0 0.0
          %3435 = vmatpush1.msra.mxu0 0.0
          %3436 = vmatprep.subr.mxu0 0.0
          %3437 = vmatpush1.msra.mxu0 0.0
          %3438 = vmatprep.subr.mxu0 0.0
          %3439 = vmatpush1.msra.mxu0 0.0
          %3440 = vmatprep.subr.mxu0 0.0
          %3441 = vmatpush1.msra.mxu0 0.0
          %3442 = vmatprep.subr.mxu0 0.0
          %3443 = vmatpush1.msra.mxu0 0.0
          %3444 = vmatprep.subr.mxu0 0.0
          %3445 = vmatpush1.msra.mxu0 0.0
          %3446 = vmatprep.subr.mxu0 0.0
          %3447 = vmatpush1.msra.mxu0 0.0
          %3448 = vmatprep.subr.mxu0 0.0
          %3449 = vmatpush1.msra.mxu0 0.0
          %3450 = vmatprep.subr.mxu0 0.0
          %3451 = vmatpush1.msra.mxu0 0.0
          %3452 = vmatprep.subr.mxu0 0.0
          %3453 = vmatpush1.msra.mxu0 0.0
          %3454 = vmatprep.subr.mxu0 0.0
          %3455 = vmatpush1.msra.mxu0 0.0
          %3456 = vmatprep.subr.mxu0 0.0
          %3457 = vmatpush1.msra.mxu0 0.0
          %3458 = vmatprep.subr.mxu0 0.0
          %3459 = vmatpush1.msra.mxu0 0.0
          %3460 = vmatprep.subr.mxu0 0.0
          %3461 = vmatpush1.msra.mxu0 0.0
          %3462 = vmatprep.mubr.f32.mxu0 0.0
          %v3463 = vand.u32 %v3220, 4294901760
          %3464 = vmatmul.mubr.f32.gmra.mrb[0].mxu0 %v3463
          %v3465 = vpop.f32.mrb[0].mxu0
          %v3466 = vadd.f32 %v3320, %v3465
          %v3467 = vpop.f32.mrb[0].mxu0
          %3468 = vmatprep.mubr.f32.mxu0 0.0
          %v3469 = vand.u32 %v3223, 4294901760
          %3470 = vmatmul.mubr.f32.gmra.mrb[0].mxu0 %v3469
          %v3471 = vpop.f32.mrb[0].mxu0
          %v3472 = vadd.f32 %v3330, %v3471
          %v3473 = vpop.f32.mrb[0].mxu0
          %3474 = vmatprep.mubr.f32.mxu0 0.0
          %v3475 = vand.u32 %v3226, 4294901760
          %3476 = vmatmul.mubr.f32.gmra.mrb[0].mxu0 %v3475
          %v3477 = vpop.f32.mrb[0].mxu0
          %v3478 = vadd.f32 %v3340, %v3477
          %v3479 = vpop.f32.mrb[0].mxu0
          %3480 = vmatprep.mubr.f32.mxu0 0.0
          %v3481 = vand.u32 %v3229, 4294901760
          %3482 = vmatmul.mubr.f32.gmra.mrb[0].mxu0 %v3481
          %v3483 = vpop.f32.mrb[0].mxu0
          %v3484 = vadd.f32 %v3350, %v3483
          %v3485 = vpop.f32.mrb[0].mxu0
          %3486 = vmatprep.mubr.f32.mxu0 0.0
          %v3487 = vand.u32 %v3232, 4294901760
          %3488 = vmatmul.mubr.f32.gmra.mrb[0].mxu0 %v3487
          %v3489 = vpop.f32.mrb[0].mxu0
          %v3490 = vadd.f32 %v3360, %v3489
          %v3491 = vpop.f32.mrb[0].mxu0
          %3492 = vmatprep.mubr.f32.mxu0 0.0
          %v3493 = vand.u32 %v3235, 4294901760
          %3494 = vmatmul.mubr.f32.gmra.mrb[0].mxu0 %v3493
          %v3495 = vpop.f32.mrb[0].mxu0
          %v3496 = vadd.f32 %v3370, %v3495
          %v3497 = vpop.f32.mrb[0].mxu0
          %3498 = vmatprep.mubr.f32.mxu0 0.0
          %v3499 = vand.u32 %v3238, 4294901760
          %3500 = vmatmul.mubr.f32.gmra.mrb[0].mxu0 %v3499
          %v3501 = vpop.f32.mrb[0].mxu0
          %v3502 = vadd.f32 %v3380, %v3501
          %v3503 = vpop.f32.mrb[0].mxu0
          %3504 = vmatprep.mubr.f32.mxu0 0.0
          %v3505 = vand.u32 %v3241, 4294901760
          %3506 = vmatmul.mubr.f32.gmra.mrb[0].mxu0 %v3505
          %v3507 = vpop.f32.mrb[0].mxu0
          %v3508 = vadd.f32 %v3390, %v3507
          %v3509 = vpop.f32.mrb[0].mxu0
          %3510 = vdwg.mxu0
          %3511 = vmatprep.subr.mxu0 0.0
          %v3512 = vand.u32 %v3245, 4294901760
          %v3513 = vsub.f32 %v3245, %v3512
          %3514 = vmatpush1.msra.mxu0 %v3513
          %3515 = vmatprep.subr.mxu0 0.0
          %3516 = vmatpush1.msra.mxu0 0.0
          %3517 = vmatprep.subr.mxu0 0.0
          %3518 = vmatpush1.msra.mxu0 0.0
          %3519 = vmatprep.subr.mxu0 0.0
          %3520 = vmatpush1.msra.mxu0 0.0
          %3521 = vmatprep.subr.mxu0 0.0
          %3522 = vmatpush1.msra.mxu0 0.0
          %3523 = vmatprep.subr.mxu0 0.0
          %3524 = vmatpush1.msra.mxu0 0.0
          %3525 = vmatprep.subr.mxu0 0.0
          %3526 = vmatpush1.msra.mxu0 0.0
          %3527 = vmatprep.subr.mxu0 0.0
          %3528 = vmatpush1.msra.mxu0 0.0
          %3529 = vmatprep.subr.mxu0 0.0
          %3530 = vmatpush1.msra.mxu0 0.0
          %3531 = vmatprep.subr.mxu0 0.0
          %3532 = vmatpush1.msra.mxu0 0.0
          %3533 = vmatprep.subr.mxu0 0.0
          %3534 = vmatpush1.msra.mxu0 0.0
          %3535 = vmatprep.subr.mxu0 0.0
          %3536 = vmatpush1.msra.mxu0 0.0
          %3537 = vmatprep.subr.mxu0 0.0
          %3538 = vmatpush1.msra.mxu0 0.0
          %3539 = vmatprep.subr.mxu0 0.0
          %3540 = vmatpush1.msra.mxu0 0.0
          %3541 = vmatprep.subr.mxu0 0.0
          %3542 = vmatpush1.msra.mxu0 0.0
          %3543 = vmatprep.subr.mxu0 0.0
          %3544 = vmatpush1.msra.mxu0 0.0
          %3545 = vmatprep.subr.mxu0 0.0
          %3546 = vmatpush1.msra.mxu0 0.0
          %3547 = vmatprep.subr.mxu0 0.0
          %3548 = vmatpush1.msra.mxu0 0.0
          %3549 = vmatprep.subr.mxu0 0.0
          %3550 = vmatpush1.msra.mxu0 0.0
          %3551 = vmatprep.subr.mxu0 0.0
          %3552 = vmatpush1.msra.mxu0 0.0
          %3553 = vmatprep.subr.mxu0 0.0
          %3554 = vmatpush1.msra.mxu0 0.0
          %3555 = vmatprep.subr.mxu0 0.0
          %3556 = vmatpush1.msra.mxu0 0.0
          %3557 = vmatprep.subr.mxu0 0.0
          %3558 = vmatpush1.msra.mxu0 0.0
          %3559 = vmatprep.subr.mxu0 0.0
          %3560 = vmatpush1.msra.mxu0 0.0
          %3561 = vmatprep.subr.mxu0 0.0
          %3562 = vmatpush1.msra.mxu0 0.0
          %3563 = vmatprep.subr.mxu0 0.0
          %3564 = vmatpush1.msra.mxu0 0.0
          %3565 = vmatprep.subr.mxu0 0.0
          %3566 = vmatpush1.msra.mxu0 0.0
          %3567 = vmatprep.subr.mxu0 0.0
          %3568 = vmatpush1.msra.mxu0 0.0
          %3569 = vmatprep.subr.mxu0 0.0
          %3570 = vmatpush1.msra.mxu0 0.0
          %3571 = vmatprep.subr.mxu0 0.0
          %3572 = vmatpush1.msra.mxu0 0.0
          %3573 = vmatprep.subr.mxu0 0.0
          %3574 = vmatpush1.msra.mxu0 0.0
          %3575 = vmatprep.subr.mxu0 0.0
          %3576 = vmatpush1.msra.mxu0 0.0
          %3577 = vmatprep.mubr.f32.mxu0 0.0
          %v3578 = vand.u32 %v3220, 4294901760
          %v3579 = vsub.f32 %v3220, %v3578
          %3580 = vmatmul.mubr.f32.gmra.mrb[0].mxu0 %v3579
          %v3581 = vpop.f32.mrb[0].mxu0
          %v3582 = vadd.f32 %v3466, %v3581
          %v3583 = vpop.f32.mrb[0].mxu0
          %3584 = vmatprep.mubr.f32.mxu0 0.0
          %v3585 = vand.u32 %v3223, 4294901760
          %v3586 = vsub.f32 %v3223, %v3585
          %3587 = vmatmul.mubr.f32.gmra.mrb[0].mxu0 %v3586
          %v3588 = vpop.f32.mrb[0].mxu0
          %v3589 = vadd.f32 %v3472, %v3588
          %v3590 = vpop.f32.mrb[0].mxu0
          %3591 = vmatprep.mubr.f32.mxu0 0.0
          %v3592 = vand.u32 %v3226, 4294901760
          %v3593 = vsub.f32 %v3226, %v3592
          %3594 = vmatmul.mubr.f32.gmra.mrb[0].mxu0 %v3593
          %v3595 = vpop.f32.mrb[0].mxu0
          %v3596 = vadd.f32 %v3478, %v3595
          %v3597 = vpop.f32.mrb[0].mxu0
          %3598 = vmatprep.mubr.f32.mxu0 0.0
          %v3599 = vand.u32 %v3229, 4294901760
          %v3600 = vsub.f32 %v3229, %v3599
          %3601 = vmatmul.mubr.f32.gmra.mrb[0].mxu0 %v3600
          %v3602 = vpop.f32.mrb[0].mxu0
          %v3603 = vadd.f32 %v3484, %v3602
          %v3604 = vpop.f32.mrb[0].mxu0
          %3605 = vmatprep.mubr.f32.mxu0 0.0
          %v3606 = vand.u32 %v3232, 4294901760
          %v3607 = vsub.f32 %v3232, %v3606
          %3608 = vmatmul.mubr.f32.gmra.mrb[0].mxu0 %v3607
          %v3609 = vpop.f32.mrb[0].mxu0
          %v3610 = vadd.f32 %v3490, %v3609
          %v3611 = vpop.f32.mrb[0].mxu0
          %3612 = vmatprep.mubr.f32.mxu0 0.0
          %v3613 = vand.u32 %v3235, 4294901760
          %v3614 = vsub.f32 %v3235, %v3613
          %3615 = vmatmul.mubr.f32.gmra.mrb[0].mxu0 %v3614
          %v3616 = vpop.f32.mrb[0].mxu0
          %v3617 = vadd.f32 %v3496, %v3616
          %v3618 = vpop.f32.mrb[0].mxu0
          %3619 = vmatprep.mubr.f32.mxu0 0.0
          %v3620 = vand.u32 %v3238, 4294901760
          %v3621 = vsub.f32 %v3238, %v3620
          %3622 = vmatmul.mubr.f32.gmra.mrb[0].mxu0 %v3621
          %v3623 = vpop.f32.mrb[0].mxu0
          %v3624 = vadd.f32 %v3502, %v3623
          %v3625 = vpop.f32.mrb[0].mxu0
          %3626 = vmatprep.mubr.f32.mxu0 0.0
          %v3627 = vand.u32 %v3241, 4294901760
          %v3628 = vsub.f32 %v3241, %v3627
          %3629 = vmatmul.mubr.f32.gmra.mrb[0].mxu0 %v3628
          %v3630 = vpop.f32.mrb[0].mxu0
          %v3631 = vadd.f32 %v3508, %v3630
          %v3632 = vpop.f32.mrb[0].mxu0
          %3633 = vdwg.mxu0
          %3634 = vmatprep.subr.mxu0 0.0
          %v3635 = vand.u32 %v3245, 4294901760
          %3636 = vmatpush1.msra.mxu0 %v3635
          %3637 = vmatprep.subr.mxu0 0.0
          %3638 = vmatpush1.msra.mxu0 0.0
          %3639 = vmatprep.subr.mxu0 0.0
          %3640 = vmatpush1.msra.mxu0 0.0
          %3641 = vmatprep.subr.mxu0 0.0
          %3642 = vmatpush1.msra.mxu0 0.0
          %3643 = vmatprep.subr.mxu0 0.0
          %3644 = vmatpush1.msra.mxu0 0.0
          %3645 = vmatprep.subr.mxu0 0.0
          %3646 = vmatpush1.msra.mxu0 0.0
          %3647 = vmatprep.subr.mxu0 0.0
          %3648 = vmatpush1.msra.mxu0 0.0
          %3649 = vmatprep.subr.mxu0 0.0
          %3650 = vmatpush1.msra.mxu0 0.0
          %3651 = vmatprep.subr.mxu0 0.0
          %3652 = vmatpush1.msra.mxu0 0.0
          %3653 = vmatprep.subr.mxu0 0.0
          %3654 = vmatpush1.msra.mxu0 0.0
          %3655 = vmatprep.subr.mxu0 0.0
          %3656 = vmatpush1.msra.mxu0 0.0
          %3657 = vmatprep.subr.mxu0 0.0
          %3658 = vmatpush1.msra.mxu0 0.0
          %3659 = vmatprep.subr.mxu0 0.0
          %3660 = vmatpush1.msra.mxu0 0.0
          %3661 = vmatprep.subr.mxu0 0.0
          %3662 = vmatpush1.msra.mxu0 0.0
          %3663 = vmatprep.subr.mxu0 0.0
          %3664 = vmatpush1.msra.mxu0 0.0
          %3665 = vmatprep.subr.mxu0 0.0
          %3666 = vmatpush1.msra.mxu0 0.0
          %3667 = vmatprep.subr.mxu0 0.0
          %3668 = vmatpush1.msra.mxu0 0.0
          %3669 = vmatprep.subr.mxu0 0.0
          %3670 = vmatpush1.msra.mxu0 0.0
          %3671 = vmatprep.subr.mxu0 0.0
          %3672 = vmatpush1.msra.mxu0 0.0
          %3673 = vmatprep.subr.mxu0 0.0
          %3674 = vmatpush1.msra.mxu0 0.0
          %3675 = vmatprep.subr.mxu0 0.0
          %3676 = vmatpush1.msra.mxu0 0.0
          %3677 = vmatprep.subr.mxu0 0.0
          %3678 = vmatpush1.msra.mxu0 0.0
          %3679 = vmatprep.subr.mxu0 0.0
          %3680 = vmatpush1.msra.mxu0 0.0
          %3681 = vmatprep.subr.mxu0 0.0
          %3682 = vmatpush1.msra.mxu0 0.0
          %3683 = vmatprep.subr.mxu0 0.0
          %3684 = vmatpush1.msra.mxu0 0.0
          %3685 = vmatprep.subr.mxu0 0.0
          %3686 = vmatpush1.msra.mxu0 0.0
          %3687 = vmatprep.subr.mxu0 0.0
          %3688 = vmatpush1.msra.mxu0 0.0
          %3689 = vmatprep.subr.mxu0 0.0
          %3690 = vmatpush1.msra.mxu0 0.0
          %3691 = vmatprep.subr.mxu0 0.0
          %3692 = vmatpush1.msra.mxu0 0.0
          %3693 = vmatprep.subr.mxu0 0.0
          %3694 = vmatpush1.msra.mxu0 0.0
          %3695 = vmatprep.subr.mxu0 0.0
          %3696 = vmatpush1.msra.mxu0 0.0
          %3697 = vmatprep.subr.mxu0 0.0
          %3698 = vmatpush1.msra.mxu0 0.0
          %3699 = vmatprep.mubr.f32.mxu0 0.0
          %v3700 = vand.u32 %v3220, 4294901760
          %v3701 = vsub.f32 %v3220, %v3700
          %v3702 = vand.u32 %v3701, 4294901760
          %3703 = vmatmul.mubr.f32.gmra.mrb[0].mxu0 %v3702
          %v3704 = vpop.f32.mrb[0].mxu0
          %v3705 = vadd.f32 %v3582, %v3704
          %v3706 = vpop.f32.mrb[0].mxu0
          %3707 = vmatprep.mubr.f32.mxu0 0.0
          %v3708 = vand.u32 %v3223, 4294901760
          %v3709 = vsub.f32 %v3223, %v3708
          %v3710 = vand.u32 %v3709, 4294901760
          %3711 = vmatmul.mubr.f32.gmra.mrb[0].mxu0 %v3710
          %v3712 = vpop.f32.mrb[0].mxu0
          %v3713 = vadd.f32 %v3589, %v3712
          %v3714 = vpop.f32.mrb[0].mxu0
          %3715 = vmatprep.mubr.f32.mxu0 0.0
          %v3716 = vand.u32 %v3226, 4294901760
          %v3717 = vsub.f32 %v3226, %v3716
          %v3718 = vand.u32 %v3717, 4294901760
          %3719 = vmatmul.mubr.f32.gmra.mrb[0].mxu0 %v3718
          %v3720 = vpop.f32.mrb[0].mxu0
          %v3721 = vadd.f32 %v3596, %v3720
          %v3722 = vpop.f32.mrb[0].mxu0
          %3723 = vmatprep.mubr.f32.mxu0 0.0
          %v3724 = vand.u32 %v3229, 4294901760
          %v3725 = vsub.f32 %v3229, %v3724
          %v3726 = vand.u32 %v3725, 4294901760
          %3727 = vmatmul.mubr.f32.gmra.mrb[0].mxu0 %v3726
          %v3728 = vpop.f32.mrb[0].mxu0
          %v3729 = vadd.f32 %v3603, %v3728
          %v3730 = vpop.f32.mrb[0].mxu0
          %3731 = vmatprep.mubr.f32.mxu0 0.0
          %v3732 = vand.u32 %v3232, 4294901760
          %v3733 = vsub.f32 %v3232, %v3732
          %v3734 = vand.u32 %v3733, 4294901760
          %3735 = vmatmul.mubr.f32.gmra.mrb[0].mxu0 %v3734
          %v3736 = vpop.f32.mrb[0].mxu0
          %v3737 = vadd.f32 %v3610, %v3736
          %v3738 = vpop.f32.mrb[0].mxu0
          %3739 = vmatprep.mubr.f32.mxu0 0.0
          %v3740 = vand.u32 %v3235, 4294901760
          %v3741 = vsub.f32 %v3235, %v3740
          %v3742 = vand.u32 %v3741, 4294901760
          %3743 = vmatmul.mubr.f32.gmra.mrb[0].mxu0 %v3742
          %v3744 = vpop.f32.mrb[0].mxu0
          %v3745 = vadd.f32 %v3617, %v3744
          %v3746 = vpop.f32.mrb[0].mxu0
          %3747 = vmatprep.mubr.f32.mxu0 0.0
          %v3748 = vand.u32 %v3238, 4294901760
          %v3749 = vsub.f32 %v3238, %v3748
          %v3750 = vand.u32 %v3749, 4294901760
          %3751 = vmatmul.mubr.f32.gmra.mrb[0].mxu0 %v3750
          %v3752 = vpop.f32.mrb[0].mxu0
          %v3753 = vadd.f32 %v3624, %v3752
          %v3754 = vpop.f32.mrb[0].mxu0
          %3755 = vmatprep.mubr.f32.mxu0 0.0
          %v3756 = vand.u32 %v3241, 4294901760
          %v3757 = vsub.f32 %v3241, %v3756
          %v3758 = vand.u32 %v3757, 4294901760
          %3759 = vmatmul.mubr.f32.gmra.mrb[0].mxu0 %v3758
          %v3760 = vpop.f32.mrb[0].mxu0
          %v3761 = vadd.f32 %v3631, %v3760
          %v3762 = vpop.f32.mrb[0].mxu0
          %3763 = vdwg.mxu0
          %3764 = vmatprep.subr.mxu0 0.0
          %v3765 = vand.u32 %v3245, 4294901760
          %v3766 = vsub.f32 %v3245, %v3765
          %v3767 = vand.u32 %v3766, 4294901760
          %3768 = vmatpush1.msra.mxu0 %v3767
          %3769 = vmatprep.subr.mxu0 0.0
          %3770 = vmatpush1.msra.mxu0 0.0
          %3771 = vmatprep.subr.mxu0 0.0
          %3772 = vmatpush1.msra.mxu0 0.0
          %3773 = vmatprep.subr.mxu0 0.0
          %3774 = vmatpush1.msra.mxu0 0.0
          %3775 = vmatprep.subr.mxu0 0.0
          %3776 = vmatpush1.msra.mxu0 0.0
          %3777 = vmatprep.subr.mxu0 0.0
          %3778 = vmatpush1.msra.mxu0 0.0
          %3779 = vmatprep.subr.mxu0 0.0
          %3780 = vmatpush1.msra.mxu0 0.0
          %3781 = vmatprep.subr.mxu0 0.0
          %3782 = vmatpush1.msra.mxu0 0.0
          %3783 = vmatprep.subr.mxu0 0.0
          %3784 = vmatpush1.msra.mxu0 0.0
          %3785 = vmatprep.subr.mxu0 0.0
          %3786 = vmatpush1.msra.mxu0 0.0
          %3787 = vmatprep.subr.mxu0 0.0
          %3788 = vmatpush1.msra.mxu0 0.0
          %3789 = vmatprep.subr.mxu0 0.0
          %3790 = vmatpush1.msra.mxu0 0.0
          %3791 = vmatprep.subr.mxu0 0.0
          %3792 = vmatpush1.msra.mxu0 0.0
          %3793 = vmatprep.subr.mxu0 0.0
          %3794 = vmatpush1.msra.mxu0 0.0
          %3795 = vmatprep.subr.mxu0 0.0
          %3796 = vmatpush1.msra.mxu0 0.0
          %3797 = vmatprep.subr.mxu0 0.0
          %3798 = vmatpush1.msra.mxu0 0.0
          %3799 = vmatprep.subr.mxu0 0.0
          %3800 = vmatpush1.msra.mxu0 0.0
          %3801 = vmatprep.subr.mxu0 0.0
          %3802 = vmatpush1.msra.mxu0 0.0
          %3803 = vmatprep.subr.mxu0 0.0
          %3804 = vmatpush1.msra.mxu0 0.0
          %3805 = vmatprep.subr.mxu0 0.0
          %3806 = vmatpush1.msra.mxu0 0.0
          %3807 = vmatprep.subr.mxu0 0.0
          %3808 = vmatpush1.msra.mxu0 0.0
          %3809 = vmatprep.subr.mxu0 0.0
          %3810 = vmatpush1.msra.mxu0 0.0
          %3811 = vmatprep.subr.mxu0 0.0
          %3812 = vmatpush1.msra.mxu0 0.0
          %3813 = vmatprep.subr.mxu0 0.0
          %3814 = vmatpush1.msra.mxu0 0.0
          %3815 = vmatprep.subr.mxu0 0.0
          %3816 = vmatpush1.msra.mxu0 0.0
          %3817 = vmatprep.subr.mxu0 0.0
          %3818 = vmatpush1.msra.mxu0 0.0
          %3819 = vmatprep.subr.mxu0 0.0
          %3820 = vmatpush1.msra.mxu0 0.0
          %3821 = vmatprep.subr.mxu0 0.0
          %3822 = vmatpush1.msra.mxu0 0.0
          %3823 = vmatprep.subr.mxu0 0.0
          %3824 = vmatpush1.msra.mxu0 0.0
          %3825 = vmatprep.subr.mxu0 0.0
          %3826 = vmatpush1.msra.mxu0 0.0
          %3827 = vmatprep.subr.mxu0 0.0
          %3828 = vmatpush1.msra.mxu0 0.0
          %3829 = vmatprep.subr.mxu0 0.0
          %3830 = vmatpush1.msra.mxu0 0.0
          %3831 = vmatprep.mubr.f32.mxu0 0.0
          %v3832 = vand.u32 %v3220, 4294901760
          %3833 = vmatmul.mubr.f32.gmra.mrb[0].mxu0 %v3832
          %v3834 = vpop.f32.mrb[0].mxu0
          %v3835 = vadd.f32 %v3705, %v3834
          %v3836 = vpop.f32.mrb[0].mxu0
          %3837 = vmatprep.mubr.f32.mxu0 0.0
          %v3838 = vand.u32 %v3223, 4294901760
          %3839 = vmatmul.mubr.f32.gmra.mrb[0].mxu0 %v3838
          %v3840 = vpop.f32.mrb[0].mxu0
          %v3841 = vadd.f32 %v3713, %v3840
          %v3842 = vpop.f32.mrb[0].mxu0
          %3843 = vmatprep.mubr.f32.mxu0 0.0
          %v3844 = vand.u32 %v3226, 4294901760
          %3845 = vmatmul.mubr.f32.gmra.mrb[0].mxu0 %v3844
          %v3846 = vpop.f32.mrb[0].mxu0
          %v3847 = vadd.f32 %v3721, %v3846
          %v3848 = vpop.f32.mrb[0].mxu0
          %3849 = vmatprep.mubr.f32.mxu0 0.0
          %v3850 = vand.u32 %v3229, 4294901760
          %3851 = vmatmul.mubr.f32.gmra.mrb[0].mxu0 %v3850
          %v3852 = vpop.f32.mrb[0].mxu0
          %v3853 = vadd.f32 %v3729, %v3852
          %v3854 = vpop.f32.mrb[0].mxu0
          %3855 = vmatprep.mubr.f32.mxu0 0.0
          %v3856 = vand.u32 %v3232, 4294901760
          %3857 = vmatmul.mubr.f32.gmra.mrb[0].mxu0 %v3856
          %v3858 = vpop.f32.mrb[0].mxu0
          %v3859 = vadd.f32 %v3737, %v3858
          %v3860 = vpop.f32.mrb[0].mxu0
          %3861 = vmatprep.mubr.f32.mxu0 0.0
          %v3862 = vand.u32 %v3235, 4294901760
          %3863 = vmatmul.mubr.f32.gmra.mrb[0].mxu0 %v3862
          %v3864 = vpop.f32.mrb[0].mxu0
          %v3865 = vadd.f32 %v3745, %v3864
          %v3866 = vpop.f32.mrb[0].mxu0
          %3867 = vmatprep.mubr.f32.mxu0 0.0
          %v3868 = vand.u32 %v3238, 4294901760
          %3869 = vmatmul.mubr.f32.gmra.mrb[0].mxu0 %v3868
          %v3870 = vpop.f32.mrb[0].mxu0
          %v3871 = vadd.f32 %v3753, %v3870
          %v3872 = vpop.f32.mrb[0].mxu0
          %3873 = vmatprep.mubr.f32.mxu0 0.0
          %v3874 = vand.u32 %v3241, 4294901760
          %3875 = vmatmul.mubr.f32.gmra.mrb[0].mxu0 %v3874
          %v3876 = vpop.f32.mrb[0].mxu0
          %v3877 = vadd.f32 %v3761, %v3876
          %v3878 = vpop.f32.mrb[0].mxu0
          %3879 = vdwg.mxu0
          %3880 = vmatprep.subr.mxu0 0.0
          %v3881 = vand.u32 %v3245, 4294901760
          %3882 = vmatpush1.msra.mxu0 %v3881
          %3883 = vmatprep.subr.mxu0 0.0
          %3884 = vmatpush1.msra.mxu0 0.0
          %3885 = vmatprep.subr.mxu0 0.0
          %3886 = vmatpush1.msra.mxu0 0.0
          %3887 = vmatprep.subr.mxu0 0.0
          %3888 = vmatpush1.msra.mxu0 0.0
          %3889 = vmatprep.subr.mxu0 0.0
          %3890 = vmatpush1.msra.mxu0 0.0
          %3891 = vmatprep.subr.mxu0 0.0
          %3892 = vmatpush1.msra.mxu0 0.0
          %3893 = vmatprep.subr.mxu0 0.0
          %3894 = vmatpush1.msra.mxu0 0.0
          %3895 = vmatprep.subr.mxu0 0.0
          %3896 = vmatpush1.msra.mxu0 0.0
          %3897 = vmatprep.subr.mxu0 0.0
          %3898 = vmatpush1.msra.mxu0 0.0
          %3899 = vmatprep.subr.mxu0 0.0
          %3900 = vmatpush1.msra.mxu0 0.0
          %3901 = vmatprep.subr.mxu0 0.0
          %3902 = vmatpush1.msra.mxu0 0.0
          %3903 = vmatprep.subr.mxu0 0.0
          %3904 = vmatpush1.msra.mxu0 0.0
          %3905 = vmatprep.subr.mxu0 0.0
          %3906 = vmatpush1.msra.mxu0 0.0
          %3907 = vmatprep.subr.mxu0 0.0
          %3908 = vmatpush1.msra.mxu0 0.0
          %3909 = vmatprep.subr.mxu0 0.0
          %3910 = vmatpush1.msra.mxu0 0.0
          %3911 = vmatprep.subr.mxu0 0.0
          %3912 = vmatpush1.msra.mxu0 0.0
          %3913 = vmatprep.subr.mxu0 0.0
          %3914 = vmatpush1.msra.mxu0 0.0
          %3915 = vmatprep.subr.mxu0 0.0
          %3916 = vmatpush1.msra.mxu0 0.0
          %3917 = vmatprep.subr.mxu0 0.0
          %3918 = vmatpush1.msra.mxu0 0.0
          %3919 = vmatprep.subr.mxu0 0.0
          %3920 = vmatpush1.msra.mxu0 0.0
          %3921 = vmatprep.subr.mxu0 0.0
          %3922 = vmatpush1.msra.mxu0 0.0
          %3923 = vmatprep.subr.mxu0 0.0
          %3924 = vmatpush1.msra.mxu0 0.0
          %3925 = vmatprep.subr.mxu0 0.0
          %3926 = vmatpush1.msra.mxu0 0.0
          %3927 = vmatprep.subr.mxu0 0.0
          %3928 = vmatpush1.msra.mxu0 0.0
          %3929 = vmatprep.subr.mxu0 0.0
          %3930 = vmatpush1.msra.mxu0 0.0
          %3931 = vmatprep.subr.mxu0 0.0
          %3932 = vmatpush1.msra.mxu0 0.0
          %3933 = vmatprep.subr.mxu0 0.0
          %3934 = vmatpush1.msra.mxu0 0.0
          %3935 = vmatprep.subr.mxu0 0.0
          %3936 = vmatpush1.msra.mxu0 0.0
          %3937 = vmatprep.subr.mxu0 0.0
          %3938 = vmatpush1.msra.mxu0 0.0
          %3939 = vmatprep.subr.mxu0 0.0
          %3940 = vmatpush1.msra.mxu0 0.0
          %3941 = vmatprep.subr.mxu0 0.0
          %3942 = vmatpush1.msra.mxu0 0.0
          %3943 = vmatprep.subr.mxu0 0.0
          %3944 = vmatpush1.msra.mxu0 0.0
          %3945 = vmatprep.mubr.f32.mxu0 0.0
          %v3946 = vand.u32 %v3220, 4294901760
          %3947 = vmatmul.mubr.f32.gmra.mrb[0].mxu0 %v3946
          %v3948 = vpop.f32.mrb[0].mxu0
          %v3949 = vadd.f32 %v3835, %v3948
          %v3950 = vpop.f32.mrb[0].mxu0
          %3951 = vmatprep.mubr.f32.mxu0 0.0
          %v3952 = vand.u32 %v3223, 4294901760
          %3953 = vmatmul.mubr.f32.gmra.mrb[0].mxu0 %v3952
          %v3954 = vpop.f32.mrb[0].mxu0
          %v3955 = vadd.f32 %v3841, %v3954
          %v3956 = vpop.f32.mrb[0].mxu0
          %3957 = vmatprep.mubr.f32.mxu0 0.0
          %v3958 = vand.u32 %v3226, 4294901760
          %3959 = vmatmul.mubr.f32.gmra.mrb[0].mxu0 %v3958
          %v3960 = vpop.f32.mrb[0].mxu0
          %v3961 = vadd.f32 %v3847, %v3960
          %v3962 = vpop.f32.mrb[0].mxu0
          %3963 = vmatprep.mubr.f32.mxu0 0.0
          %v3964 = vand.u32 %v3229, 4294901760
          %3965 = vmatmul.mubr.f32.gmra.mrb[0].mxu0 %v3964
          %v3966 = vpop.f32.mrb[0].mxu0
          %v3967 = vadd.f32 %v3853, %v3966
          %v3968 = vpop.f32.mrb[0].mxu0
          %3969 = vmatprep.mubr.f32.mxu0 0.0
          %v3970 = vand.u32 %v3232, 4294901760
          %3971 = vmatmul.mubr.f32.gmra.mrb[0].mxu0 %v3970
          %v3972 = vpop.f32.mrb[0].mxu0
          %v3973 = vadd.f32 %v3859, %v3972
          %v3974 = vpop.f32.mrb[0].mxu0
          %3975 = vmatprep.mubr.f32.mxu0 0.0
          %v3976 = vand.u32 %v3235, 4294901760
          %3977 = vmatmul.mubr.f32.gmra.mrb[0].mxu0 %v3976
          %v3978 = vpop.f32.mrb[0].mxu0
          %v3979 = vadd.f32 %v3865, %v3978
          %v3980 = vpop.f32.mrb[0].mxu0
          %3981 = vmatprep.mubr.f32.mxu0 0.0
          %v3982 = vand.u32 %v3238, 4294901760
          %3983 = vmatmul.mubr.f32.gmra.mrb[0].mxu0 %v3982
          %v3984 = vpop.f32.mrb[0].mxu0
          %v3985 = vadd.f32 %v3871, %v3984
          %v3986 = vpop.f32.mrb[0].mxu0
          %3987 = vmatprep.mubr.f32.mxu0 0.0
          %v3988 = vand.u32 %v3241, 4294901760
          %3989 = vmatmul.mubr.f32.gmra.mrb[0].mxu0 %v3988
          %v3990 = vpop.f32.mrb[0].mxu0
          %v3991 = vadd.f32 %v3877, %v3990
          %v3992 = vpop.f32.mrb[0].mxu0
          %3993 = vdwg.mxu0
          %v3994 = vmul.f32 %v3949, 2.0
          %v3995 = vmul.f32 %v3955, 2.0
          %v3996 = vmul.f32 %v3961, 2.0
          %v3997 = vmul.f32 %v3967, 2.0
          %v3998 = vmul.f32 %v3973, 2.0
          %v3999 = vmul.f32 %v3979, 2.0
          %v4000 = vmul.f32 %v3985, 2.0
          %v4001 = vmul.f32 %v3991, 2.0
          %v4002 = vsub.f32 %v2297, %v3994
          %v4003 = vsub.f32 %v2300, %v3995
          %v4004 = vsub.f32 %v2303, %v3996
          %v4005 = vsub.f32 %v2306, %v3997
          %v4006 = vsub.f32 %v2309, %v3998
          %v4007 = vsub.f32 %v2312, %v3999
          %v4008 = vsub.f32 %v2315, %v4000
          %v4009 = vsub.f32 %v2318, %v4001
          %vm4010 = vcmask 523264
          %v4011 = vsel %vm4010, %v4002, inf
          %v4012 = vsel %vm4010, %v4003, inf
          %v4013 = vsel %vm4010, %v4004, inf
          %v4014 = vsel %vm4010, %v4005, inf
          %v4015 = vsel %vm4010, %v4006, inf
          %v4016 = vmin.f32 %v4011, %v4015
          %v4017 = vsel %vm4010, %v4007, inf
          %v4018 = vmin.f32 %v4012, %v4017
          %v4019 = vsel %vm4010, %v4008, inf
          %v4020 = vmin.f32 %v4013, %v4019
          %v4021 = vsel %vm4010, %v4009, inf
          %v4022 = vmin.f32 %v4014, %v4021
          %v4023 = vmin.f32 %v4016, %v4018
          %v4024 = vmin.f32 %v4020, %v4022
          %v4025 = vmin.f32 %v4023, %v4024
          %v4026 = vrot.slane %v4025, 4
          %v4027 = vmin.f32 %v4025, %v4026
          %v4028 = vrot.slane %v4027, 2
          %v4029 = vmin.f32 %v4027, %v4028
          %v4030 = vrot.slane %v4029, 1
          %v4031 = vmin.f32 %v4029, %v4030
          %v4032 = vmul.f32 %v3218, %v3218
          %vm4033 = vcmask 518144
          %v4034 = vsel %vm4033, %v4032, 0.0
          %v4035 = vrot.slane %v4034, 4
          %v4036 = vadd.f32 %v4034, %v4035
          %v4037 = vrot.slane %v4036, 2
          %v4038 = vadd.f32 %v4036, %v4037
          %v4039 = vrot.slane %v4038, 1
          %v4040 = vadd.f32 %v4038, %v4039
          %v4041 = vadd.f32 %v4031, %v4040
          %v4042 = vmax.f32 %v4041, 0.0
          %v4043 = vrsqrt.pop %v4042
          %v4044 = vmul.f32 %v4042, %v4043
          %vm4045 = vcmp.eq.f32.partialorder %v4042, inf
          %v4046 = vsel %vm4045, %v4042, %v4044
          %vm4047 = vcmp.eq.f32.partialorder %v4042, 0.0
          %v4048 = vand.u32 %v4042, 2147483648
          %v4049 = vsel %vm4047, %v4048, %v4046
          %vm4050 = vcmask 516096
          %v4051 = vsel %vm4050, %v4049, 0.0
          %4052 = vadd.xlane.f32.xlu0 %v4051
          %v4053 = vpop.xlane.xlu0 %4052
          %v4054 = vrot.slane %v4053, 4
          %v4055 = vadd.f32 %v4053, %v4054
          %v4056 = vrot.slane %v4055, 2
          %v4057 = vadd.f32 %v4055, %v4056
          %v4058 = vrot.slane %v4057, 1
          %v4059 = vadd.f32 %v4057, %v4058
          %s4060 = vtos %v4059
          %s4061 = smul.f32 %s4060, 0.015625
          %4062 = sst [smem:[%s481]] %s4061
        $region88: #{tpu_custom_call.1} parent=47 // pred_fallthru
          _
        %p4063 = pnand %p2320, %p2322
        %p4064 = pneg %p4063
        // Predicated region
        $region89: #{tpu_custom_call.1} parent=47 // pred_check
          _
        $region90: #{tpu_custom_call.1} parent=47 // pred_check_branch
          %4066 = sbr.rel (%p4063) target = $region92
        $region91: #{tpu_custom_call.1} parent=47 // pred_region
          %s4067 = scalar_lea.vmem %s410, 4
          %v4068 = vld [vmem:[%s4067] sm:$0x7]
          %v4069 = vsub.f32 %v4068, %v2277
          %v4070 = vmul.f32 %v4069, %v4069
          %vm4071 = vcmask 518144
          %v4072 = vsel %vm4071, %v4070, 0.0
          %v4073 = vrot.slane %v4072, 4
          %v4074 = vadd.f32 %v4072, %v4073
          %v4075 = vrot.slane %v4074, 2
          %v4076 = vadd.f32 %v4074, %v4075
          %v4077 = vrot.slane %v4076, 1
          %v4078 = vadd.f32 %v4076, %v4077
          %v4079 = vrsqrt.pop %v4078
          %v4080 = vmul.f32 %v4078, %v4079
          %vm4081 = vcmp.eq.f32.partialorder %v4078, inf
          %v4082 = vsel %vm4081, %v4078, %v4080
          %vm4083 = vcmp.eq.f32.partialorder %v4078, 0.0
          %v4084 = vand.u32 %v4078, 2147483648
          %v4085 = vsel %vm4083, %v4084, %v4082
          %vm4086 = vcmask 516096
          %v4087 = vsel %vm4086, %v4085, 0.0
          %4088 = vadd.xlane.f32.xlu0 %v4087
          %v4089 = vpop.xlane.xlu0 %4088
          %v4090 = vrot.slane %v4089, 4
          %v4091 = vadd.f32 %v4089, %v4090
          %v4092 = vrot.slane %v4091, 2
          %v4093 = vadd.f32 %v4091, %v4092
          %v4094 = vrot.slane %v4093, 1
          %v4095 = vadd.f32 %v4093, %v4094
          %s4096 = vtos %v4095
          %s4097 = smul.f32 %s4096, 0.015625
          %4098 = sst [smem:[%s483]] %s4097
        $region92: #{tpu_custom_call.1} parent=47 // pred_fallthru
          _
        %s4099 = sld [smem:[#allocation2]]
        %s4100 = smul.f32 %s2275, %s4099
        %s4101 = ssub.f32 1.0, %s2275
        %s4102 = sld [smem:[#allocation2 + $0x1]]
        %s4103 = smul.f32 %s4101, %s4102
        %s4104 = sadd.f32 %s4100, %s4103
        %s4105 = smul.f32 %s2273, %s4104
        %s4106 = sld [smem:[#allocation2 + $0x2]]
        %s4107 = smul.f32 %s2275, %s4106
        %s4108 = sld [smem:[#allocation2 + $0x3]]
        %s4109 = smul.f32 %s4101, %s4108
        %s4110 = sadd.f32 %s4107, %s4109
        %s4111 = smul.f32 %s2274, %s4110
        %v4112 = vstv %s4105
        %v4113 = vadd.f32 %v4112, 0.0
        %s4114 = scalar_lea.vmem %s392, 8 [#allocation9]
        %4115 = vst [vmem:[%s4114] sm:$0xff] %v4113
        %v4116 = vstv %s4111
        %v4117 = vadd.f32 %v4116, 0.0
        %s4118 = scalar_lea.vmem %s399, 8 [#allocation10]
        %4119 = vst [vmem:[%s4118] sm:$0xff] %v4117
        %s4120 = sand.u32 %s203, 1
        %s4121 = scalar_lea.sflag [#allocation4], %s4120
        %s4122 = sand.u32 %s203, 1
        %s4123 = smul.addr %s4122, 16
        %s4124 = scalar_lea.vmem [#allocation9], %s4123
        %s4125 = sand.u32 %s229, 1
        %s4126 = scalar_lea.sflag [#allocation11], %s4125
        %s4127 = sand.u32 %s229, 1
        %s4128 = smul.addr %s4127, 16
        %s4129 = scalar_lea.vmem [#allocation10], %s4128
        // Predicated region
        $region93: #{tpu_custom_call.1} parent=47 // pred_check
          %p4130 = pneg %p213
        $region94: #{tpu_custom_call.1} parent=47 // pred_check_branch
          %4132 = sbr.rel (%p4130) target = $region96
        $region95: #{tpu_custom_call.1} parent=47 // pred_region
          %s4133 = smul.u32 2, %s28
          %s4135 = ssub.s32 256, 256
          %4136 = vsyncadd %s4121, %s4135
          %s4137 = smul.addr %s4133, 128
          %s4138 = scalar_lea.hbm %s7, %s4137
          %s4139 = sshll.u32 %s4124, 4
          %s4140 = int_to_ptr.vmem [resolvable:$true] %s4139
          %4145 = dma.vmem_to_hbm [thread:$0]  %s4140, 256, %s4138, %s4121, 128, 128, 8
        $region96: #{tpu_custom_call.1} parent=47 // pred_fallthru
          _
        // Predicated region
        $region97: #{tpu_custom_call.1} parent=47 // pred_check
          %p4146 = pneg %p239
        $region98: #{tpu_custom_call.1} parent=47 // pred_check_branch
          %4148 = sbr.rel (%p4146) target = $region100
        $region99: #{tpu_custom_call.1} parent=47 // pred_region
          %s4149 = smul.u32 2, %s28
          %s4151 = ssub.s32 256, 256
          %4152 = vsyncadd %s4126, %s4151
          %s4153 = smul.addr %s4149, 128
          %s4154 = scalar_lea.hbm %s8, %s4153
          %s4155 = sshll.u32 %s4129, 4
          %s4156 = int_to_ptr.vmem [resolvable:$true] %s4155
          %4161 = dma.vmem_to_hbm [thread:$0]  %s4156, 256, %s4154, %s4126, 128, 128, 8
        $region100: #{tpu_custom_call.1} parent=47 // pred_fallthru
          _
      $region48: #{tpu_custom_call.1} parent=5 // pred_fallthru
        _
      %p4162 = scmp.le.s32.totalorder 2, %s23
      // Predicated region
      $region101: #{tpu_custom_call.1} parent=5 // pred_check
        %p4163 = pneg %p4162
      $region102: #{tpu_custom_call.1} parent=5 // pred_check_branch
        %4165 = sbr.rel (%p4163) target = $region104
      $region103: #{tpu_custom_call.1} parent=5 // pred_region
        %s4166 = ssub.s32 %s23, 2
        // Predicated region
        $region105: #{tpu_custom_call.1} parent=103 // pred_check
          %p4167 = pneg %p219
        $region106: #{tpu_custom_call.1} parent=103 // pred_check_branch
          %4169 = sbr.rel (%p4167) target = $region108
        $region107: #{tpu_custom_call.1} parent=103 // pred_region
          %s4170 = sand.u32 %s204, 1
          %s4171 = scalar_lea.sflag [#allocation4], %s4170
          %s4172 = sand.u32 %s204, 1
          %s4173 = smul.addr %s4172, 16
          %s4174 = scalar_lea.vmem [#allocation9], %s4173
          %4175 = dma.done %s4171, 256
        $region108: #{tpu_custom_call.1} parent=103 // pred_fallthru
          _
        // Predicated region
        $region109: #{tpu_custom_call.1} parent=103 // pred_check
          %p4176 = pneg %p245
        $region110: #{tpu_custom_call.1} parent=103 // pred_check_branch
          %4178 = sbr.rel (%p4176) target = $region112
        $region111: #{tpu_custom_call.1} parent=103 // pred_region
          %s4179 = sand.u32 %s230, 1
          %s4180 = scalar_lea.sflag [#allocation11], %s4179
          %s4181 = sand.u32 %s230, 1
          %s4182 = smul.addr %s4181, 16
          %s4183 = scalar_lea.vmem [#allocation10], %s4182
          %4184 = dma.done %s4180, 256
        $region112: #{tpu_custom_call.1} parent=103 // pred_fallthru
          _
      $region104: #{tpu_custom_call.1} parent=5 // pred_fallthru
        _
    $region6: #{tpu_custom_call.1} parent=1 // loop_footer
      %s27 = sadd.s32 1, %s23
    $region7: #{tpu_custom_call.1} parent=1 // loop_footer_branch
      %22 = sbr.rel target = $region3
    $region8: #{tpu_custom_call.1} parent=1 // loop_exit
      _
    %4185 = vsyncpa [#allocation4], 1
    %s4186 = scalar_lea.sflag [#allocation4], 1
    %4187 = vsyncpa %s4186, 1
    %4188 = vsyncpa [#allocation11], 1
    %s4189 = scalar_lea.sflag [#allocation11], 1
    %4190 = vsyncpa %s4189, 1
    %4191 = vsyncpa [#allocation5], 1
    %s4192 = scalar_lea.sflag [#allocation5], 1
    %4193 = vsyncpa %s4192, 1
    %4194 = vsyncpa [#allocation7], 1

</llo_original>
